<compile_context>
chip_gen: v7x
topology: tpu7x:2x2x1
jax: 0.10.0
libtpu: 0.0.40
codegen_flags: <defaults>
</compile_context>

<pallas_src>
import functools

import jax
import jax.numpy as jnp
from jax import lax
from jax.experimental import pallas as pl
from jax.experimental.pallas import tpu as pltpu


def _lstm_kernel(x_ref, wih0_ref, bias_ref, wbig_ref, wf_ref, bf_ref,
                 y_ref, xgb_ref, hseq_ref, *, batch, hidden):
    """Whole 2-layer LSTM + final Linear in a single kernel invocation.

    x_ref     : ((T+1)*BP, D)   bf16  time-major input, batch padded to BP, +1 zero step
    wih0_ref  : (D, 8H)         bf16  layer-0 input weights in interleaved gate layout
                                      (layer-1 columns are zero)
    bias_ref  : (1, 8H)         f32   interleaved [b0_k | b1_k] per gate k (b_ih + b_hh)
    wbig_ref  : (2H, 8H)        bf16  block-diagonal [[Whh0, Wih1], [0, Whh1]], gate-interleaved
    wf_ref    : (2H, 128)       bf16  final Linear weight; h1 rows zero, cols padded to 128
    bf_ref    : (1, 128)        f32   final Linear bias, lane-padded
    y_ref     : (T*BP, 128)     f32   output (lane-padded; wrapper slices [:, :O])
    xgb_ref   : ((T+1)*BP, 8H)  f32   scratch: hoisted input projection + biases
    hseq_ref  : (T*BP, 2H)      bf16  scratch: [h1_{t+1} | h2_t] per step (epilogue Linear)
    """
    BP, H = batch, hidden
    G = 2 * H                          # 128-lane gate group: [layer-0 | layer-1]
    T = hseq_ref.shape[0] // BP        # real number of timesteps

    # ---- Prologue: layer-0 input projection + both biases for ALL timesteps in ONE
    # MXU call (no sequential dependence). Columns are already gate-interleaved.
    xgb_ref[...] = (
        jnp.dot(x_ref[...], wih0_ref[...], preferred_element_type=jnp.float32)
        + bias_ref[...])

    def gate_math(gates, cc_prev):
        # gates: (BP, 8H) interleaved [i0 i1 | f0 f1 | g0 g1 | o0 o1]; every slice is a
        # full 128-lane, 128-aligned block -> no lane rotates. PyTorch gate order i,f,g,o.
        i_g = jax.nn.sigmoid(gates[:, 0 * G:1 * G])
        f_g = jax.nn.sigmoid(gates[:, 1 * G:2 * G])
        g_g = jnp.tanh(gates[:, 2 * G:3 * G])
        o_g = jax.nn.sigmoid(gates[:, 3 * G:4 * G])
        cc_new = f_g * cc_prev + i_g * g_g
        return o_g * jnp.tanh(cc_new), cc_new

    # ---- Skew prologue ("iteration -1"): h1_0 / c1_0 come from xgb[0] alone (all
    # recurrent terms are zero). The layer-1 half of this gate_math is junk and is
    # masked to zero so step 0 correctly sees h2_{-1} = c2_{-1} = 0.
    lane = lax.broadcasted_iota(jnp.int32, (BP, G), 1)
    l0_mask = (lane < H).astype(jnp.float32)
    hh, cc = gate_math(xgb_ref[0:BP, :], jnp.zeros((BP, G), jnp.float32))
    hh = hh * l0_mask                      # hh = [h1_0 | 0]
    cc = cc * l0_mask                      # cc = [c1_0 | 0]
    hh_bf = hh.astype(jnp.bfloat16)

    # ---- Time recurrence: fully unrolled static loop (T is small & static); state lives
    # in vregs, exactly ONE (bf16) MXU matmul per step on the serial critical path.
    # TODO(synk): for large T switch to lax.fori_loop(..., unroll=k) and a time-tiled grid.
    for t in range(T):
        r = (t + 1) * BP                   # static, sublane-tile aligned (BP % 8 == 0)
        # [h1_t | h2_{t-1}] @ [[Whh0, Wih1],[0, Whh1]]:
        #   layer-0 cols -> recurrent term of step t+1, layer-1 cols -> gates of step t.
        fused = jnp.dot(hh_bf, wbig_ref[...], preferred_element_type=jnp.float32)
        gates = fused + xgb_ref[r:r + BP, :]
        hh, cc = gate_math(gates, cc)      # -> [h1_{t+1} | h2_t], [c1_{t+1} | c2_t]
        hh_bf = hh.astype(jnp.bfloat16)
        hseq_ref[t * BP:(t + 1) * BP, :] = hh_bf   # h1 half is zeroed by wf_ref later

    # ---- Epilogue: ONE final Linear over the whole sequence; single unmasked,
    # lane-dense (128-wide) output write.
    y_ref[...] = (
        jnp.dot(hseq_ref[...], wf_ref[...], preferred_element_type=jnp.float32)
        + bf_ref[...])


def prepare_params(p):
    """One-time weight fusion / reordering into the kernel's interleaved layout."""
    H = p["whh0"].shape[0]                 # whh0 is (H, 4H)
    D = p["wih0"].shape[0]                 # wih0 is (D, 4H)
    O = p["wf"].shape[1]                   # wf   is (H, O)
    OP = 128                               # lane-padded output width

    def gate(w, k):                        # k-th gate column block (PyTorch order i,f,g,o)
        return w[:, k * H:(k + 1) * H]

    zH = jnp.zeros((H, H), jnp.float32)
    # Block-diagonal recurrent matrix, gate-interleaved columns:
    #   rows 0:H <- h1, rows H:2H <- h2
    #   cols [k*2H : k*2H+H]     = layer-0 gate k (Whh0 from h1, 0 from h2)
    #   cols [k*2H+H : (k+1)*2H] = layer-1 gate k (Wih1 from h1, Whh1 from h2)
    wbig = jnp.concatenate(
        [jnp.concatenate(
            [jnp.concatenate([gate(p["whh0"], k), gate(p["wih1"], k)], axis=1),
             jnp.concatenate([zH, gate(p["whh1"], k)], axis=1)], axis=0)
         for k in range(4)], axis=1)                                    # (2H, 8H)

    zD = jnp.zeros((D, H), jnp.float32)
    wih0b = jnp.concatenate(
        [jnp.concatenate([gate(p["wih0"], k), zD], axis=1) for k in range(4)],
        axis=1)                                                         # (D, 8H)

    biasb = jnp.concatenate(
        [jnp.concatenate([p["b0"][:, k * H:(k + 1) * H],
                          p["b1"][:, k * H:(k + 1) * H]], axis=1)
         for k in range(4)], axis=1)                                    # (1, 8H)

    wfb = jnp.zeros((2 * H, OP), jnp.float32).at[H:, :O].set(p["wf"])   # (2H, 128)
    bfb = jnp.zeros((1, OP), jnp.float32).at[:, :O].set(p["bf"])        # (1, 128)

    return {
        "wih0b": wih0b.astype(jnp.bfloat16),
        "biasb": biasb,
        "wbig": wbig.astype(jnp.bfloat16),
        "wfb": wfb.astype(jnp.bfloat16),
        "bfb": bfb,
        "hidden": int(H),
        "out_dim": int(O),
    }


@functools.partial(jax.jit, static_argnames=("hidden", "out_dim"))
def _forward_impl(x, wih0b, biasb, wbig, wfb, bfb, *, hidden, out_dim):
    B, T, D = x.shape
    H = hidden
    BP = ((B + 7) // 8) * 8                # pad batch to a full sublane tile (>= 8)

    # Time-major rows (row t*BP + b holds x[b, t, :]); pad batch and append ONE zero
    # timestep so the skewed schedule's last iteration has an input row.
    x_t = jnp.transpose(x, (1, 0, 2))                       # (T, B, D)
    x_t = jnp.pad(x_t, ((0, 1), (0, BP - B), (0, 0)))       # (T+1, BP, D)
    x_flat = x_t.reshape((T + 1) * BP, D).astype(jnp.bfloat16)

    kernel = functools.partial(_lstm_kernel, batch=BP, hidden=H)

    flops = 2 * ((T + 1) * BP * D * 8 * H          # prologue input projection
                 + T * BP * (2 * H) * 8 * H        # fused recurrence
                 + T * BP * (2 * H) * 128)         # epilogue Linear
    transcendentals = (T + 1) * BP * 8 * H         # sigmoid/tanh lanes (approx)
    bytes_accessed = (x_flat.size * 2 + wih0b.size * 2 + wbig.size * 2
                      + wfb.size * 2 + biasb.size * 4 + bfb.size * 4
                      + T * BP * 128 * 4)

    # Gridless call: every operand lives fully in VMEM for the whole kernel; output is
    # DMA'd back to HBM exactly once.  (With a real batch, add a "parallel" grid axis
    # over batch groups to use v7x's second TensorCore.)
    y_pad = pl.pallas_call(
        kernel,
        out_shape=jax.ShapeDtypeStruct((T * BP, 128), jnp.float32),
        scratch_shapes=[
            pltpu.VMEM(((T + 1) * BP, 8 * H), jnp.float32),   # hoisted input projection
            pltpu.VMEM((T * BP, 2 * H), jnp.bfloat16),        # [h1|h2] sequence
        ],
        cost_estimate=pl.CostEstimate(flops=flops,
                                      transcendentals=transcendentals,
                                      bytes_accessed=bytes_accessed),
    )(x_flat, wih0b, biasb, wbig, wfb, bfb)

    y = y_pad.reshape(T, BP, 128)[:, :B, :out_dim]           # drop batch/lane padding
    return jnp.transpose(y, (1, 0, 2))                       # (B, T, O)


def basic_lstm_forward(x, fused_params):
    """x: (B, T, D) float32 -> y: (B, T, O) float32 (nn.LSTM batch_first + nn.Linear)."""
    return _forward_impl(
        x, fused_params["wih0b"], fused_params["biasb"], fused_params["wbig"],
        fused_params["wfb"], fused_params["bfb"],
        hidden=fused_params["hidden"], out_dim=fused_params["out_dim"])


def init_params(key, input_dim=38, hidden=64, output_dim=1):
    """Deterministic init mirroring nn.LSTM / nn.Linear shapes (uniform +-1/sqrt(H))."""
    ks = jax.random.split(key, 10)
    s = 1.0 / jnp.sqrt(hidden)
    u = lambda k, shape: jax.random.uniform(k, shape, jnp.float32, -s, s)

    # PyTorch stores weight_ih_l0: (4H, D) etc.; we pre-transpose to (in, out).
    w_ih0 = u(ks[0], (4 * hidden, input_dim))
    w_hh0 = u(ks[1], (4 * hidden, hidden))
    b_ih0 = u(ks[2], (4 * hidden,))
    b_hh0 = u(ks[3], (4 * hidden,))
    w_ih1 = u(ks[4], (4 * hidden, hidden))
    w_hh1 = u(ks[5], (4 * hidden, hidden))
    b_ih1 = u(ks[6], (4 * hidden,))
    b_hh1 = u(ks[7], (4 * hidden,))
    w_f = u(ks[8], (output_dim, hidden))
    b_f = u(ks[9], (output_dim,))

    return {
        "wih0": w_ih0.T, "whh0": w_hh0.T, "b0": (b_ih0 + b_hh0)[None, :],
        "wih1": w_ih1.T, "whh1": w_hh1.T, "b1": (b_ih1 + b_hh1)[None, :],
        "wf": w_f.T, "bf": b_f[None, :],
    }


def lstm_reference(x, p):
    """Pure-JAX f32 reference (lax.scan) for correctness checking."""
    B, T, D = x.shape
    H = p["whh0"].shape[0]

    def cell(x_in, h, c, wih, whh, b):
        gates = x_in @ wih + h @ whh + b
        i = jax.nn.sigmoid(gates[:, 0 * H:1 * H])
        f = jax.nn.sigmoid(gates[:, 1 * H:2 * H])
        g = jnp.tanh(gates[:, 2 * H:3 * H])
        o = jax.nn.sigmoid(gates[:, 3 * H:4 * H])
        c_new = f * c + i * g
        return o * jnp.tanh(c_new), c_new

    def step(carry, x_t):
        h1, c1, h2, c2 = carry
        h1, c1 = cell(x_t, h1, c1, p["wih0"], p["whh0"], p["b0"])
        h2, c2 = cell(h1, h2, c2, p["wih1"], p["whh1"], p["b1"])
        y_t = h2 @ p["wf"] + p["bf"]
        return (h1, c1, h2, c2), y_t

    z = jnp.zeros((B, H), jnp.float32)
    _, ys = lax.scan(step, (z, z, z, z), jnp.transpose(x, (1, 0, 2)))
    return jnp.transpose(ys, (1, 0, 2))


if __name__ == "__main__":
    B, T, D, H, O = 2, 8, 38, 64, 1

    key = jax.random.PRNGKey(0)
    k_x, k_p = jax.random.split(key)
    x = jax.random.normal(k_x, (B, T, D), jnp.float32)
    params = init_params(k_p, input_dim=D, hidden=H, output_dim=O)
    fused = prepare_params(params)

    y = jax.block_until_ready(basic_lstm_forward(x, fused))
    y_ref = jax.block_until_ready(lstm_reference(x, params))

    assert y.shape == (B, T, O)
    max_diff = jnp.max(jnp.abs(y - y_ref))
    # bf16 MXU operands with f32 accumulation -> compare against the f32 reference at a
    # bf16-appropriate tolerance.
    assert jnp.allclose(y, y_ref, atol=2e-2, rtol=2e-2), \
        f"mismatch: max abs diff {max_diff}"

    print("KERNEL_OK")
</pallas_src>

<mosaic_0001>
module attributes {stable_mosaic.version = 11 : i64} {
  func.func @_lstm_kernel(%arg0: memref<72x38xbf16, #tpu.memory_space<vmem>>, %arg1: memref<38x512xbf16, #tpu.memory_space<vmem>>, %arg2: memref<1x512xf32, #tpu.memory_space<vmem>>, %arg3: memref<128x512xbf16, #tpu.memory_space<vmem>>, %arg4: memref<128x128xbf16, #tpu.memory_space<vmem>>, %arg5: memref<1x128xf32, #tpu.memory_space<vmem>>, %arg6: memref<64x128xf32, #tpu.memory_space<vmem>>, %arg7: memref<72x512xf32, #tpu.memory_space<vmem>>, %arg8: memref<64x128xbf16, #tpu.memory_space<vmem>>) attributes {dimension_semantics = [], scalar_prefetch = 0 : i64, scratch_operands = 2 : i64, tpu.core_type = #tpu.core_type<tc>} {
    %c0 = arith.constant 0 : index
    %c0_0 = arith.constant 0 : index
    %0 = vector.load %arg0[%c0, %c0_0] : memref<72x38xbf16, #tpu.memory_space<vmem>>, vector<72x38xbf16>
    %c0_1 = arith.constant 0 : index
    %c0_2 = arith.constant 0 : index
    %1 = vector.load %arg1[%c0_1, %c0_2] : memref<38x512xbf16, #tpu.memory_space<vmem>>, vector<38x512xbf16>
    %cst = arith.constant dense<0.000000e+00> : vector<72x512xf32>
    %2 = tpu.matmul %0, %1, %cst {dimension_numbers = #tpu.dot_dimension_numbers<[1], [0], [0], [1], [0, 0, 1, 1], [], []>} : vector<72x38xbf16>, vector<38x512xbf16>, vector<72x512xf32> -> vector<72x512xf32>
    %c0_3 = arith.constant 0 : index
    %c0_4 = arith.constant 0 : index
    %3 = vector.load %arg2[%c0_3, %c0_4] : memref<1x512xf32, #tpu.memory_space<vmem>>, vector<1x512xf32>
    %4 = vector.broadcast %3 : vector<1x512xf32> to vector<72x512xf32>
    %5 = arith.addf %2, %4 : vector<72x512xf32>
    %c0_5 = arith.constant 0 : index
    %c0_6 = arith.constant 0 : index
    %6 = vector.load %arg7[%c0_5, %c0_6] : memref<72x512xf32, #tpu.memory_space<vmem>>, vector<72x512xf32>
    tpu.vector_store %arg7[%c0_5, %c0_6], %5 {strides = array<i32>} : memref<72x512xf32, #tpu.memory_space<vmem>>, vector<72x512xf32>,
    %7 = tpu.iota {dimensions = array<i32: 1>} : vector<8x128xi32>
    %c64_i32 = arith.constant 64 : i32
    %8 = vector.broadcast %c64_i32 : i32 to vector<8x128xi32>
    %9 = arith.cmpi slt, %7, %8 : vector<8x128xi32>
    %10 = arith.extui %9 : vector<8x128xi1> to vector<8x128xi32>
    %11 = arith.sitofp %10 : vector<8x128xi32> to vector<8x128xf32>
    %c0_7 = arith.constant 0 : index
    %c0_8 = arith.constant 0 : index
    %12 = vector.load %arg7[%c0_7, %c0_8] : memref<72x512xf32, #tpu.memory_space<vmem>>, vector<8x512xf32>
    %cst_9 = arith.constant 0.000000e+00 : f32
    %13 = vector.broadcast %cst_9 : f32 to vector<8x128xf32>
    %14 = vector.extract_strided_slice %12 {offsets = [0, 0], sizes = [8, 128], strides = [1, 1]} : vector<8x512xf32> to vector<8x128xf32>
    %15 = arith.negf %14 : vector<8x128xf32>
    %16 = math.exp %15 : vector<8x128xf32>
    %cst_10 = arith.constant 1.000000e+00 : f32
    %17 = vector.broadcast %cst_10 : f32 to vector<8x128xf32>
    %18 = arith.addf %17, %16 : vector<8x128xf32>
    %19 = arith.divf %17, %18 : vector<8x128xf32>
    %20 = vector.extract_strided_slice %12 {offsets = [0, 128], sizes = [8, 128], strides = [1, 1]} : vector<8x512xf32> to vector<8x128xf32>
    %21 = arith.negf %20 : vector<8x128xf32>
    %22 = math.exp %21 : vector<8x128xf32>
    %cst_11 = arith.constant 1.000000e+00 : f32
    %23 = vector.broadcast %cst_11 : f32 to vector<8x128xf32>
    %24 = arith.addf %23, %22 : vector<8x128xf32>
    %25 = arith.divf %23, %24 : vector<8x128xf32>
    %26 = vector.extract_strided_slice %12 {offsets = [0, 256], sizes = [8, 128], strides = [1, 1]} : vector<8x512xf32> to vector<8x128xf32>
    %27 = math.tanh %26 : vector<8x128xf32>
    %28 = vector.extract_strided_slice %12 {offsets = [0, 384], sizes = [8, 128], strides = [1, 1]} : vector<8x512xf32> to vector<8x128xf32>
    %29 = arith.negf %28 : vector<8x128xf32>
    %30 = math.exp %29 : vector<8x128xf32>
    %cst_12 = arith.constant 1.000000e+00 : f32
    %31 = vector.broadcast %cst_12 : f32 to vector<8x128xf32>
    %32 = arith.addf %31, %30 : vector<8x128xf32>
    %33 = arith.divf %31, %32 : vector<8x128xf32>
    %34 = arith.mulf %25, %13 : vector<8x128xf32>
    %35 = arith.mulf %19, %27 : vector<8x128xf32>
    %36 = arith.addf %34, %35 : vector<8x128xf32>
    %37 = math.tanh %36 : vector<8x128xf32>
    %38 = arith.mulf %33, %37 : vector<8x128xf32>
    %39 = arith.mulf %38, %11 : vector<8x128xf32>
    %40 = arith.mulf %36, %11 : vector<8x128xf32>
    %41 = arith.truncf %39 : vector<8x128xf32> to vector<8x128xbf16>
    %c0_13 = arith.constant 0 : index
    %c0_14 = arith.constant 0 : index
    %42 = vector.load %arg3[%c0_13, %c0_14] : memref<128x512xbf16, #tpu.memory_space<vmem>>, vector<128x512xbf16>
    %cst_15 = arith.constant dense<0.000000e+00> : vector<8x512xf32>
    %43 = tpu.matmul %41, %42, %cst_15 {dimension_numbers = #tpu.dot_dimension_numbers<[1], [0], [0], [1], [0, 0, 1, 1], [], []>} : vector<8x128xbf16>, vector<128x512xbf16>, vector<8x512xf32> -> vector<8x512xf32>
    %c8 = arith.constant 8 : index
    %c0_16 = arith.constant 0 : index
    %44 = vector.load %arg7[%c8, %c0_16] : memref<72x512xf32, #tpu.memory_space<vmem>>, vector<8x512xf32>
    %45 = arith.addf %43, %44 : vector<8x512xf32>
    %46 = vector.extract_strided_slice %45 {offsets = [0, 0], sizes = [8, 128], strides = [1, 1]} : vector<8x512xf32> to vector<8x128xf32>
    %47 = arith.negf %46 : vector<8x128xf32>
    %48 = math.exp %47 : vector<8x128xf32>
    %cst_17 = arith.constant 1.000000e+00 : f32
    %49 = vector.broadcast %cst_17 : f32 to vector<8x128xf32>
    %50 = arith.addf %49, %48 : vector<8x128xf32>
    %51 = arith.divf %49, %50 : vector<8x128xf32>
    %52 = vector.extract_strided_slice %45 {offsets = [0, 128], sizes = [8, 128], strides = [1, 1]} : vector<8x512xf32> to vector<8x128xf32>
    %53 = arith.negf %52 : vector<8x128xf32>
    %54 = math.exp %53 : vector<8x128xf32>
    %cst_18 = arith.constant 1.000000e+00 : f32
    %55 = vector.broadcast %cst_18 : f32 to vector<8x128xf32>
    %56 = arith.addf %55, %54 : vector<8x128xf32>
    %57 = arith.divf %55, %56 : vector<8x128xf32>
    %58 = vector.extract_strided_slice %45 {offsets = [0, 256], sizes = [8, 128], strides = [1, 1]} : vector<8x512xf32> to vector<8x128xf32>
    %59 = math.tanh %58 : vector<8x128xf32>
    %60 = vector.extract_strided_slice %45 {offsets = [0, 384], sizes = [8, 128], strides = [1, 1]} : vector<8x512xf32> to vector<8x128xf32>
    %61 = arith.negf %60 : vector<8x128xf32>
    %62 = math.exp %61 : vector<8x128xf32>
    %cst_19 = arith.constant 1.000000e+00 : f32
    %63 = vector.broadcast %cst_19 : f32 to vector<8x128xf32>
    %64 = arith.addf %63, %62 : vector<8x128xf32>
    %65 = arith.divf %63, %64 : vector<8x128xf32>
    %66 = arith.mulf %57, %40 : vector<8x128xf32>
    %67 = arith.mulf %51, %59 : vector<8x128xf32>
    %68 = arith.addf %66, %67 : vector<8x128xf32>
    %69 = math.tanh %68 : vector<8x128xf32>
    %70 = arith.mulf %65, %69 : vector<8x128xf32>
    %71 = arith.truncf %70 : vector<8x128xf32> to vector<8x128xbf16>
    %c0_20 = arith.constant 0 : index
    %c0_21 = arith.constant 0 : index
    %72 = vector.load %arg8[%c0_20, %c0_21] : memref<64x128xbf16, #tpu.memory_space<vmem>>, vector<8x128xbf16>
    tpu.vector_store %arg8[%c0_20, %c0_21], %71 {strides = array<i32>} : memref<64x128xbf16, #tpu.memory_space<vmem>>, vector<8x128xbf16>,
    %c0_22 = arith.constant 0 : index
    %c0_23 = arith.constant 0 : index
    %73 = vector.load %arg3[%c0_22, %c0_23] : memref<128x512xbf16, #tpu.memory_space<vmem>>, vector<128x512xbf16>
    %cst_24 = arith.constant dense<0.000000e+00> : vector<8x512xf32>
    %74 = tpu.matmul %71, %73, %cst_24 {dimension_numbers = #tpu.dot_dimension_numbers<[1], [0], [0], [1], [0, 0, 1, 1], [], []>} : vector<8x128xbf16>, vector<128x512xbf16>, vector<8x512xf32> -> vector<8x512xf32>
    %c16 = arith.constant 16 : index
    %c0_25 = arith.constant 0 : index
    %75 = vector.load %arg7[%c16, %c0_25] : memref<72x512xf32, #tpu.memory_space<vmem>>, vector<8x512xf32>
    %76 = arith.addf %74, %75 : vector<8x512xf32>
    %77 = vector.extract_strided_slice %76 {offsets = [0, 0], sizes = [8, 128], strides = [1, 1]} : vector<8x512xf32> to vector<8x128xf32>
    %78 = arith.negf %77 : vector<8x128xf32>
    %79 = math.exp %78 : vector<8x128xf32>
    %cst_26 = arith.constant 1.000000e+00 : f32
    %80 = vector.broadcast %cst_26 : f32 to vector<8x128xf32>
    %81 = arith.addf %80, %79 : vector<8x128xf32>
    %82 = arith.divf %80, %81 : vector<8x128xf32>
    %83 = vector.extract_strided_slice %76 {offsets = [0, 128], sizes = [8, 128], strides = [1, 1]} : vector<8x512xf32> to vector<8x128xf32>
    %84 = arith.negf %83 : vector<8x128xf32>
    %85 = math.exp %84 : vector<8x128xf32>
    %cst_27 = arith.constant 1.000000e+00 : f32
    %86 = vector.broadcast %cst_27 : f32 to vector<8x128xf32>
    %87 = arith.addf %86, %85 : vector<8x128xf32>
    %88 = arith.divf %86, %87 : vector<8x128xf32>
    %89 = vector.extract_strided_slice %76 {offsets = [0, 256], sizes = [8, 128], strides = [1, 1]} : vector<8x512xf32> to vector<8x128xf32>
    %90 = math.tanh %89 : vector<8x128xf32>
    %91 = vector.extract_strided_slice %76 {offsets = [0, 384], sizes = [8, 128], strides = [1, 1]} : vector<8x512xf32> to vector<8x128xf32>
    %92 = arith.negf %91 : vector<8x128xf32>
    %93 = math.exp %92 : vector<8x128xf32>
    %cst_28 = arith.constant 1.000000e+00 : f32
    %94 = vector.broadcast %cst_28 : f32 to vector<8x128xf32>
    %95 = arith.addf %94, %93 : vector<8x128xf32>
    %96 = arith.divf %94, %95 : vector<8x128xf32>
    %97 = arith.mulf %88, %68 : vector<8x128xf32>
    %98 = arith.mulf %82, %90 : vector<8x128xf32>
    %99 = arith.addf %97, %98 : vector<8x128xf32>
    %100 = math.tanh %99 : vector<8x128xf32>
    %101 = arith.mulf %96, %100 : vector<8x128xf32>
    %102 = arith.truncf %101 : vector<8x128xf32> to vector<8x128xbf16>
    %c8_29 = arith.constant 8 : index
    %c0_30 = arith.constant 0 : index
    %103 = vector.load %arg8[%c8_29, %c0_30] : memref<64x128xbf16, #tpu.memory_space<vmem>>, vector<8x128xbf16>
    tpu.vector_store %arg8[%c8_29, %c0_30], %102 {strides = array<i32>} : memref<64x128xbf16, #tpu.memory_space<vmem>>, vector<8x128xbf16>,
    %c0_31 = arith.constant 0 : index
    %c0_32 = arith.constant 0 : index
    %104 = vector.load %arg3[%c0_31, %c0_32] : memref<128x512xbf16, #tpu.memory_space<vmem>>, vector<128x512xbf16>
    %cst_33 = arith.constant dense<0.000000e+00> : vector<8x512xf32>
    %105 = tpu.matmul %102, %104, %cst_33 {dimension_numbers = #tpu.dot_dimension_numbers<[1], [0], [0], [1], [0, 0, 1, 1], [], []>} : vector<8x128xbf16>, vector<128x512xbf16>, vector<8x512xf32> -> vector<8x512xf32>
    %c24 = arith.constant 24 : index
    %c0_34 = arith.constant 0 : index
    %106 = vector.load %arg7[%c24, %c0_34] : memref<72x512xf32, #tpu.memory_space<vmem>>, vector<8x512xf32>
    %107 = arith.addf %105, %106 : vector<8x512xf32>
    %108 = vector.extract_strided_slice %107 {offsets = [0, 0], sizes = [8, 128], strides = [1, 1]} : vector<8x512xf32> to vector<8x128xf32>
    %109 = arith.negf %108 : vector<8x128xf32>
    %110 = math.exp %109 : vector<8x128xf32>
    %cst_35 = arith.constant 1.000000e+00 : f32
    %111 = vector.broadcast %cst_35 : f32 to vector<8x128xf32>
    %112 = arith.addf %111, %110 : vector<8x128xf32>
    %113 = arith.divf %111, %112 : vector<8x128xf32>
    %114 = vector.extract_strided_slice %107 {offsets = [0, 128], sizes = [8, 128], strides = [1, 1]} : vector<8x512xf32> to vector<8x128xf32>
    %115 = arith.negf %114 : vector<8x128xf32>
    %116 = math.exp %115 : vector<8x128xf32>
    %cst_36 = arith.constant 1.000000e+00 : f32
    %117 = vector.broadcast %cst_36 : f32 to vector<8x128xf32>
    %118 = arith.addf %117, %116 : vector<8x128xf32>
    %119 = arith.divf %117, %118 : vector<8x128xf32>
    %120 = vector.extract_strided_slice %107 {offsets = [0, 256], sizes = [8, 128], strides = [1, 1]} : vector<8x512xf32> to vector<8x128xf32>
    %121 = math.tanh %120 : vector<8x128xf32>
    %122 = vector.extract_strided_slice %107 {offsets = [0, 384], sizes = [8, 128], strides = [1, 1]} : vector<8x512xf32> to vector<8x128xf32>
    %123 = arith.negf %122 : vector<8x128xf32>
    %124 = math.exp %123 : vector<8x128xf32>
    %cst_37 = arith.constant 1.000000e+00 : f32
    %125 = vector.broadcast %cst_37 : f32 to vector<8x128xf32>
    %126 = arith.addf %125, %124 : vector<8x128xf32>
    %127 = arith.divf %125, %126 : vector<8x128xf32>
    %128 = arith.mulf %119, %99 : vector<8x128xf32>
    %129 = arith.mulf %113, %121 : vector<8x128xf32>
    %130 = arith.addf %128, %129 : vector<8x128xf32>
    %131 = math.tanh %130 : vector<8x128xf32>
    %132 = arith.mulf %127, %131 : vector<8x128xf32>
    %133 = arith.truncf %132 : vector<8x128xf32> to vector<8x128xbf16>
    %c16_38 = arith.constant 16 : index
    %c0_39 = arith.constant 0 : index
    %134 = vector.load %arg8[%c16_38, %c0_39] : memref<64x128xbf16, #tpu.memory_space<vmem>>, vector<8x128xbf16>
    tpu.vector_store %arg8[%c16_38, %c0_39], %133 {strides = array<i32>} : memref<64x128xbf16, #tpu.memory_space<vmem>>, vector<8x128xbf16>,
    %c0_40 = arith.constant 0 : index
    %c0_41 = arith.constant 0 : index
    %135 = vector.load %arg3[%c0_40, %c0_41] : memref<128x512xbf16, #tpu.memory_space<vmem>>, vector<128x512xbf16>
    %cst_42 = arith.constant dense<0.000000e+00> : vector<8x512xf32>
    %136 = tpu.matmul %133, %135, %cst_42 {dimension_numbers = #tpu.dot_dimension_numbers<[1], [0], [0], [1], [0, 0, 1, 1], [], []>} : vector<8x128xbf16>, vector<128x512xbf16>, vector<8x512xf32> -> vector<8x512xf32>
    %c32 = arith.constant 32 : index
    %c0_43 = arith.constant 0 : index
    %137 = vector.load %arg7[%c32, %c0_43] : memref<72x512xf32, #tpu.memory_space<vmem>>, vector<8x512xf32>
    %138 = arith.addf %136, %137 : vector<8x512xf32>
    %139 = vector.extract_strided_slice %138 {offsets = [0, 0], sizes = [8, 128], strides = [1, 1]} : vector<8x512xf32> to vector<8x128xf32>
    %140 = arith.negf %139 : vector<8x128xf32>
    %141 = math.exp %140 : vector<8x128xf32>
    %cst_44 = arith.constant 1.000000e+00 : f32
    %142 = vector.broadcast %cst_44 : f32 to vector<8x128xf32>
    %143 = arith.addf %142, %141 : vector<8x128xf32>
    %144 = arith.divf %142, %143 : vector<8x128xf32>
    %145 = vector.extract_strided_slice %138 {offsets = [0, 128], sizes = [8, 128], strides = [1, 1]} : vector<8x512xf32> to vector<8x128xf32>
    %146 = arith.negf %145 : vector<8x128xf32>
    %147 = math.exp %146 : vector<8x128xf32>
    %cst_45 = arith.constant 1.000000e+00 : f32
    %148 = vector.broadcast %cst_45 : f32 to vector<8x128xf32>
    %149 = arith.addf %148, %147 : vector<8x128xf32>
    %150 = arith.divf %148, %149 : vector<8x128xf32>
    %151 = vector.extract_strided_slice %138 {offsets = [0, 256], sizes = [8, 128], strides = [1, 1]} : vector<8x512xf32> to vector<8x128xf32>
    %152 = math.tanh %151 : vector<8x128xf32>
    %153 = vector.extract_strided_slice %138 {offsets = [0, 384], sizes = [8, 128], strides = [1, 1]} : vector<8x512xf32> to vector<8x128xf32>
    %154 = arith.negf %153 : vector<8x128xf32>
    %155 = math.exp %154 : vector<8x128xf32>
    %cst_46 = arith.constant 1.000000e+00 : f32
    %156 = vector.broadcast %cst_46 : f32 to vector<8x128xf32>
    %157 = arith.addf %156, %155 : vector<8x128xf32>
    %158 = arith.divf %156, %157 : vector<8x128xf32>
    %159 = arith.mulf %150, %130 : vector<8x128xf32>
    %160 = arith.mulf %144, %152 : vector<8x128xf32>
    %161 = arith.addf %159, %160 : vector<8x128xf32>
    %162 = math.tanh %161 : vector<8x128xf32>
    %163 = arith.mulf %158, %162 : vector<8x128xf32>
    %164 = arith.truncf %163 : vector<8x128xf32> to vector<8x128xbf16>
    %c24_47 = arith.constant 24 : index
    %c0_48 = arith.constant 0 : index
    %165 = vector.load %arg8[%c24_47, %c0_48] : memref<64x128xbf16, #tpu.memory_space<vmem>>, vector<8x128xbf16>
    tpu.vector_store %arg8[%c24_47, %c0_48], %164 {strides = array<i32>} : memref<64x128xbf16, #tpu.memory_space<vmem>>, vector<8x128xbf16>,
    %c0_49 = arith.constant 0 : index
    %c0_50 = arith.constant 0 : index
    %166 = vector.load %arg3[%c0_49, %c0_50] : memref<128x512xbf16, #tpu.memory_space<vmem>>, vector<128x512xbf16>
    %cst_51 = arith.constant dense<0.000000e+00> : vector<8x512xf32>
    %167 = tpu.matmul %164, %166, %cst_51 {dimension_numbers = #tpu.dot_dimension_numbers<[1], [0], [0], [1], [0, 0, 1, 1], [], []>} : vector<8x128xbf16>, vector<128x512xbf16>, vector<8x512xf32> -> vector<8x512xf32>
    %c40 = arith.constant 40 : index
    %c0_52 = arith.constant 0 : index
    %168 = vector.load %arg7[%c40, %c0_52] : memref<72x512xf32, #tpu.memory_space<vmem>>, vector<8x512xf32>
    %169 = arith.addf %167, %168 : vector<8x512xf32>
    %170 = vector.extract_strided_slice %169 {offsets = [0, 0], sizes = [8, 128], strides = [1, 1]} : vector<8x512xf32> to vector<8x128xf32>
    %171 = arith.negf %170 : vector<8x128xf32>
    %172 = math.exp %171 : vector<8x128xf32>
    %cst_53 = arith.constant 1.000000e+00 : f32
    %173 = vector.broadcast %cst_53 : f32 to vector<8x128xf32>
    %174 = arith.addf %173, %172 : vector<8x128xf32>
    %175 = arith.divf %173, %174 : vector<8x128xf32>
    %176 = vector.extract_strided_slice %169 {offsets = [0, 128], sizes = [8, 128], strides = [1, 1]} : vector<8x512xf32> to vector<8x128xf32>
    %177 = arith.negf %176 : vector<8x128xf32>
    %178 = math.exp %177 : vector<8x128xf32>
    %cst_54 = arith.constant 1.000000e+00 : f32
    %179 = vector.broadcast %cst_54 : f32 to vector<8x128xf32>
    %180 = arith.addf %179, %178 : vector<8x128xf32>
    %181 = arith.divf %179, %180 : vector<8x128xf32>
    %182 = vector.extract_strided_slice %169 {offsets = [0, 256], sizes = [8, 128], strides = [1, 1]} : vector<8x512xf32> to vector<8x128xf32>
    %183 = math.tanh %182 : vector<8x128xf32>
    %184 = vector.extract_strided_slice %169 {offsets = [0, 384], sizes = [8, 128], strides = [1, 1]} : vector<8x512xf32> to vector<8x128xf32>
    %185 = arith.negf %184 : vector<8x128xf32>
    %186 = math.exp %185 : vector<8x128xf32>
    %cst_55 = arith.constant 1.000000e+00 : f32
    %187 = vector.broadcast %cst_55 : f32 to vector<8x128xf32>
    %188 = arith.addf %187, %186 : vector<8x128xf32>
    %189 = arith.divf %187, %188 : vector<8x128xf32>
    %190 = arith.mulf %181, %161 : vector<8x128xf32>
    %191 = arith.mulf %175, %183 : vector<8x128xf32>
    %192 = arith.addf %190, %191 : vector<8x128xf32>
    %193 = math.tanh %192 : vector<8x128xf32>
    %194 = arith.mulf %189, %193 : vector<8x128xf32>
    %195 = arith.truncf %194 : vector<8x128xf32> to vector<8x128xbf16>
    %c32_56 = arith.constant 32 : index
    %c0_57 = arith.constant 0 : index
    %196 = vector.load %arg8[%c32_56, %c0_57] : memref<64x128xbf16, #tpu.memory_space<vmem>>, vector<8x128xbf16>
    tpu.vector_store %arg8[%c32_56, %c0_57], %195 {strides = array<i32>} : memref<64x128xbf16, #tpu.memory_space<vmem>>, vector<8x128xbf16>,
    %c0_58 = arith.constant 0 : index
    %c0_59 = arith.constant 0 : index
    %197 = vector.load %arg3[%c0_58, %c0_59] : memref<128x512xbf16, #tpu.memory_space<vmem>>, vector<128x512xbf16>
    %cst_60 = arith.constant dense<0.000000e+00> : vector<8x512xf32>
    %198 = tpu.matmul %195, %197, %cst_60 {dimension_numbers = #tpu.dot_dimension_numbers<[1], [0], [0], [1], [0, 0, 1, 1], [], []>} : vector<8x128xbf16>, vector<128x512xbf16>, vector<8x512xf32> -> vector<8x512xf32>
    %c48 = arith.constant 48 : index
    %c0_61 = arith.constant 0 : index
    %199 = vector.load %arg7[%c48, %c0_61] : memref<72x512xf32, #tpu.memory_space<vmem>>, vector<8x512xf32>
    %200 = arith.addf %198, %199 : vector<8x512xf32>
    %201 = vector.extract_strided_slice %200 {offsets = [0, 0], sizes = [8, 128], strides = [1, 1]} : vector<8x512xf32> to vector<8x128xf32>
    %202 = arith.negf %201 : vector<8x128xf32>
    %203 = math.exp %202 : vector<8x128xf32>
    %cst_62 = arith.constant 1.000000e+00 : f32
    %204 = vector.broadcast %cst_62 : f32 to vector<8x128xf32>
    %205 = arith.addf %204, %203 : vector<8x128xf32>
    %206 = arith.divf %204, %205 : vector<8x128xf32>
    %207 = vector.extract_strided_slice %200 {offsets = [0, 128], sizes = [8, 128], strides = [1, 1]} : vector<8x512xf32> to vector<8x128xf32>
    %208 = arith.negf %207 : vector<8x128xf32>
    %209 = math.exp %208 : vector<8x128xf32>
    %cst_63 = arith.constant 1.000000e+00 : f32
    %210 = vector.broadcast %cst_63 : f32 to vector<8x128xf32>
    %211 = arith.addf %210, %209 : vector<8x128xf32>
    %212 = arith.divf %210, %211 : vector<8x128xf32>
    %213 = vector.extract_strided_slice %200 {offsets = [0, 256], sizes = [8, 128], strides = [1, 1]} : vector<8x512xf32> to vector<8x128xf32>
    %214 = math.tanh %213 : vector<8x128xf32>
    %215 = vector.extract_strided_slice %200 {offsets = [0, 384], sizes = [8, 128], strides = [1, 1]} : vector<8x512xf32> to vector<8x128xf32>
    %216 = arith.negf %215 : vector<8x128xf32>
    %217 = math.exp %216 : vector<8x128xf32>
    %cst_64 = arith.constant 1.000000e+00 : f32
    %218 = vector.broadcast %cst_64 : f32 to vector<8x128xf32>
    %219 = arith.addf %218, %217 : vector<8x128xf32>
    %220 = arith.divf %218, %219 : vector<8x128xf32>
    %221 = arith.mulf %212, %192 : vector<8x128xf32>
    %222 = arith.mulf %206, %214 : vector<8x128xf32>
    %223 = arith.addf %221, %222 : vector<8x128xf32>
    %224 = math.tanh %223 : vector<8x128xf32>
    %225 = arith.mulf %220, %224 : vector<8x128xf32>
    %226 = arith.truncf %225 : vector<8x128xf32> to vector<8x128xbf16>
    %c40_65 = arith.constant 40 : index
    %c0_66 = arith.constant 0 : index
    %227 = vector.load %arg8[%c40_65, %c0_66] : memref<64x128xbf16, #tpu.memory_space<vmem>>, vector<8x128xbf16>
    tpu.vector_store %arg8[%c40_65, %c0_66], %226 {strides = array<i32>} : memref<64x128xbf16, #tpu.memory_space<vmem>>, vector<8x128xbf16>,
    %c0_67 = arith.constant 0 : index
    %c0_68 = arith.constant 0 : index
    %228 = vector.load %arg3[%c0_67, %c0_68] : memref<128x512xbf16, #tpu.memory_space<vmem>>, vector<128x512xbf16>
    %cst_69 = arith.constant dense<0.000000e+00> : vector<8x512xf32>
    %229 = tpu.matmul %226, %228, %cst_69 {dimension_numbers = #tpu.dot_dimension_numbers<[1], [0], [0], [1], [0, 0, 1, 1], [], []>} : vector<8x128xbf16>, vector<128x512xbf16>, vector<8x512xf32> -> vector<8x512xf32>
    %c56 = arith.constant 56 : index
    %c0_70 = arith.constant 0 : index
    %230 = vector.load %arg7[%c56, %c0_70] : memref<72x512xf32, #tpu.memory_space<vmem>>, vector<8x512xf32>
    %231 = arith.addf %229, %230 : vector<8x512xf32>
    %232 = vector.extract_strided_slice %231 {offsets = [0, 0], sizes = [8, 128], strides = [1, 1]} : vector<8x512xf32> to vector<8x128xf32>
    %233 = arith.negf %232 : vector<8x128xf32>
    %234 = math.exp %233 : vector<8x128xf32>
    %cst_71 = arith.constant 1.000000e+00 : f32
    %235 = vector.broadcast %cst_71 : f32 to vector<8x128xf32>
    %236 = arith.addf %235, %234 : vector<8x128xf32>
    %237 = arith.divf %235, %236 : vector<8x128xf32>
    %238 = vector.extract_strided_slice %231 {offsets = [0, 128], sizes = [8, 128], strides = [1, 1]} : vector<8x512xf32> to vector<8x128xf32>
    %239 = arith.negf %238 : vector<8x128xf32>
    %240 = math.exp %239 : vector<8x128xf32>
    %cst_72 = arith.constant 1.000000e+00 : f32
    %241 = vector.broadcast %cst_72 : f32 to vector<8x128xf32>
    %242 = arith.addf %241, %240 : vector<8x128xf32>
    %243 = arith.divf %241, %242 : vector<8x128xf32>
    %244 = vector.extract_strided_slice %231 {offsets = [0, 256], sizes = [8, 128], strides = [1, 1]} : vector<8x512xf32> to vector<8x128xf32>
    %245 = math.tanh %244 : vector<8x128xf32>
    %246 = vector.extract_strided_slice %231 {offsets = [0, 384], sizes = [8, 128], strides = [1, 1]} : vector<8x512xf32> to vector<8x128xf32>
    %247 = arith.negf %246 : vector<8x128xf32>
    %248 = math.exp %247 : vector<8x128xf32>
    %cst_73 = arith.constant 1.000000e+00 : f32
    %249 = vector.broadcast %cst_73 : f32 to vector<8x128xf32>
    %250 = arith.addf %249, %248 : vector<8x128xf32>
    %251 = arith.divf %249, %250 : vector<8x128xf32>
    %252 = arith.mulf %243, %223 : vector<8x128xf32>
    %253 = arith.mulf %237, %245 : vector<8x128xf32>
    %254 = arith.addf %252, %253 : vector<8x128xf32>
    %255 = math.tanh %254 : vector<8x128xf32>
    %256 = arith.mulf %251, %255 : vector<8x128xf32>
    %257 = arith.truncf %256 : vector<8x128xf32> to vector<8x128xbf16>
    %c48_74 = arith.constant 48 : index
    %c0_75 = arith.constant 0 : index
    %258 = vector.load %arg8[%c48_74, %c0_75] : memref<64x128xbf16, #tpu.memory_space<vmem>>, vector<8x128xbf16>
    tpu.vector_store %arg8[%c48_74, %c0_75], %257 {strides = array<i32>} : memref<64x128xbf16, #tpu.memory_space<vmem>>, vector<8x128xbf16>,
    %c0_76 = arith.constant 0 : index
    %c0_77 = arith.constant 0 : index
    %259 = vector.load %arg3[%c0_76, %c0_77] : memref<128x512xbf16, #tpu.memory_space<vmem>>, vector<128x512xbf16>
    %cst_78 = arith.constant dense<0.000000e+00> : vector<8x512xf32>
    %260 = tpu.matmul %257, %259, %cst_78 {dimension_numbers = #tpu.dot_dimension_numbers<[1], [0], [0], [1], [0, 0, 1, 1], [], []>} : vector<8x128xbf16>, vector<128x512xbf16>, vector<8x512xf32> -> vector<8x512xf32>
    %c64 = arith.constant 64 : index
    %c0_79 = arith.constant 0 : index
    %261 = vector.load %arg7[%c64, %c0_79] : memref<72x512xf32, #tpu.memory_space<vmem>>, vector<8x512xf32>
    %262 = arith.addf %260, %261 : vector<8x512xf32>
    %263 = vector.extract_strided_slice %262 {offsets = [0, 0], sizes = [8, 128], strides = [1, 1]} : vector<8x512xf32> to vector<8x128xf32>
    %264 = arith.negf %263 : vector<8x128xf32>
    %265 = math.exp %264 : vector<8x128xf32>
    %cst_80 = arith.constant 1.000000e+00 : f32
    %266 = vector.broadcast %cst_80 : f32 to vector<8x128xf32>
    %267 = arith.addf %266, %265 : vector<8x128xf32>
    %268 = arith.divf %266, %267 : vector<8x128xf32>
    %269 = vector.extract_strided_slice %262 {offsets = [0, 128], sizes = [8, 128], strides = [1, 1]} : vector<8x512xf32> to vector<8x128xf32>
    %270 = arith.negf %269 : vector<8x128xf32>
    %271 = math.exp %270 : vector<8x128xf32>
    %cst_81 = arith.constant 1.000000e+00 : f32
    %272 = vector.broadcast %cst_81 : f32 to vector<8x128xf32>
    %273 = arith.addf %272, %271 : vector<8x128xf32>
    %274 = arith.divf %272, %273 : vector<8x128xf32>
    %275 = vector.extract_strided_slice %262 {offsets = [0, 256], sizes = [8, 128], strides = [1, 1]} : vector<8x512xf32> to vector<8x128xf32>
    %276 = math.tanh %275 : vector<8x128xf32>
    %277 = vector.extract_strided_slice %262 {offsets = [0, 384], sizes = [8, 128], strides = [1, 1]} : vector<8x512xf32> to vector<8x128xf32>
    %278 = arith.negf %277 : vector<8x128xf32>
    %279 = math.exp %278 : vector<8x128xf32>
    %cst_82 = arith.constant 1.000000e+00 : f32
    %280 = vector.broadcast %cst_82 : f32 to vector<8x128xf32>
    %281 = arith.addf %280, %279 : vector<8x128xf32>
    %282 = arith.divf %280, %281 : vector<8x128xf32>
    %283 = arith.mulf %274, %254 : vector<8x128xf32>
    %284 = arith.mulf %268, %276 : vector<8x128xf32>
    %285 = arith.addf %283, %284 : vector<8x128xf32>
    %286 = math.tanh %285 : vector<8x128xf32>
    %287 = arith.mulf %282, %286 : vector<8x128xf32>
    %288 = arith.truncf %287 : vector<8x128xf32> to vector<8x128xbf16>
    %c56_83 = arith.constant 56 : index
    %c0_84 = arith.constant 0 : index
    %289 = vector.load %arg8[%c56_83, %c0_84] : memref<64x128xbf16, #tpu.memory_space<vmem>>, vector<8x128xbf16>
    tpu.vector_store %arg8[%c56_83, %c0_84], %288 {strides = array<i32>} : memref<64x128xbf16, #tpu.memory_space<vmem>>, vector<8x128xbf16>,
    %c0_85 = arith.constant 0 : index
    %c0_86 = arith.constant 0 : index
    %290 = vector.load %arg8[%c0_85, %c0_86] : memref<64x128xbf16, #tpu.memory_space<vmem>>, vector<64x128xbf16>
    %c0_87 = arith.constant 0 : index
    %c0_88 = arith.constant 0 : index
    %291 = vector.load %arg4[%c0_87, %c0_88] : memref<128x128xbf16, #tpu.memory_space<vmem>>, vector<128x128xbf16>
    %cst_89 = arith.constant dense<0.000000e+00> : vector<64x128xf32>
    %292 = tpu.matmul %290, %291, %cst_89 {dimension_numbers = #tpu.dot_dimension_numbers<[1], [0], [0], [1], [0, 0, 1, 1], [], []>} : vector<64x128xbf16>, vector<128x128xbf16>, vector<64x128xf32> -> vector<64x128xf32>
    %c0_90 = arith.constant 0 : index
    %c0_91 = arith.constant 0 : index
    %293 = vector.load %arg5[%c0_90, %c0_91] : memref<1x128xf32, #tpu.memory_space<vmem>>, vector<1x128xf32>
    %294 = vector.broadcast %293 : vector<1x128xf32> to vector<64x128xf32>
    %295 = arith.addf %292, %294 : vector<64x128xf32>
    %c0_92 = arith.constant 0 : index
    %c0_93 = arith.constant 0 : index
    %296 = vector.load %arg6[%c0_92, %c0_93] : memref<64x128xf32, #tpu.memory_space<vmem>>, vector<64x128xf32>
    tpu.vector_store %arg6[%c0_92, %c0_93], %295 {strides = array<i32>} : memref<64x128xf32, #tpu.memory_space<vmem>>, vector<64x128xf32>,
    return
  }
}

</mosaic_0001>

<llo_original>
// kernel: _forward_impl.1
$region0: #{_forward_impl.1}
  #allocation0 [shape = 'u32[]', space=smem, size = 0x4, offset = 0x4, fixed_abs, tag = 'smem constant byte address 0x4 - core index']
  #allocation1 [shape = 'u32[144,128]{1,0:T(1,128)}', space=vmem, size = 0x12000, scoped, tag = 'internal scratch']
  #allocation2 [shape = 'f32[72,512]{1,0:T(8,128)}', space=vmem, size = 0x24000, scoped, tag = 'scratch operand']
  #allocation3 [shape = 'bf16[64,128]{1,0:T(16,128)(2,1)}', space=vmem, size = 0x4000, scoped, tag = 'scratch operand']
  %s0 = inlined_call_operand.vmem [shape: bf16[72,38], index: 0, kind: input, shape index: {}]
  %s1 = inlined_call_operand.vmem [shape: bf16[38,512], index: 1, kind: input, shape index: {}]
  %s2 = inlined_call_operand.vmem [shape: f32[1,512], index: 2, kind: input, shape index: {}]
  %s3 = inlined_call_operand.hbm [shape: bf16[128,512], index: 3, kind: input, shape index: {}]
  %s4 = inlined_call_operand.hbm [shape: bf16[128,128], index: 4, kind: input, shape index: {}]
  %s5 = inlined_call_operand.vmem [shape: f32[1,128], index: 5, kind: input, shape index: {}]
  %s6 = inlined_call_operand.vmem [shape: f32[64,128], index: 6, kind: output, shape index: {}]
  %s7 = sld [smem:[#allocation0]]
  $region42: #{_forward_impl.1} parent=0
    _
  %s9 = ssub.s32 1, %s7
  %s10 = scalar_select 0, %s9, %s7
  $region1: #{_forward_impl.1} parent=0
    #allocation4 [shape = 'u8[131072]{0}', space=vmem, size = 0x20000, scoped, tag = 'input window, operand 3, single buffered']
    #allocation5 [shape = 's32[1]{0}', space=sflag, size = 0x4, scoped, tag = 'scoped memory for _forward_impl.1']
    #allocation6 [shape = 'u8[32768]{0}', space=vmem, size = 0x8000, scoped, tag = 'input window, operand 4, single buffered']
    #allocation7 [shape = 's32[1]{0}', space=sflag, size = 0x4, scoped, tag = 'scoped memory for _forward_impl.1']
    %11 = vsyncpa [#allocation5], 0
    %12 = vsyncpa [#allocation7], 0
    // Predicated region
    $region2: #{_forward_impl.1} parent=1 // pred_check
      _
    $region3: #{_forward_impl.1} parent=1 // pred_check_branch
      %14 = sbr.rel (0) target = $region5
    $region4: #{_forward_impl.1} parent=1 // pred_region
      _
    $region5: #{_forward_impl.1} parent=1 // pred_fallthru
      _
    // Predicated region
    $region6: #{_forward_impl.1} parent=1 // pred_check
      _
    $region7: #{_forward_impl.1} parent=1 // pred_check_branch
      %16 = sbr.rel (0) target = $region9
    $region8: #{_forward_impl.1} parent=1 // pred_region
      _
    $region9: #{_forward_impl.1} parent=1 // pred_fallthru
      _
    // Predicated region
    $region10: #{_forward_impl.1} parent=1 // pred_check
      _
    $region11: #{_forward_impl.1} parent=1 // pred_check_branch
      %18 = sbr.rel (0) target = $region13
    $region12: #{_forward_impl.1} parent=1 // pred_region
      _
    $region13: #{_forward_impl.1} parent=1 // pred_fallthru
      _
    // Predicated region
    $region14: #{_forward_impl.1} parent=1 // pred_check
      _
    $region15: #{_forward_impl.1} parent=1 // pred_check_branch
      %20 = sbr.rel (0) target = $region17
    $region16: #{_forward_impl.1} parent=1 // pred_region
      %s22 = ssub.s32 4096, 4096
      %23 = vsyncadd [#allocation5], %s22
      %s24 = sshll.u32 [#allocation4], 4
      %s25 = int_to_ptr.vmem [resolvable:$true] %s24
      %30 = dma.hbm_to_vmem [thread:$0]  %s3, 4096, %s25, [#allocation5], 256, 256, 16
    $region17: #{_forward_impl.1} parent=1 // pred_fallthru
      _
    // Predicated region
    $region18: #{_forward_impl.1} parent=1 // pred_check
      _
    $region19: #{_forward_impl.1} parent=1 // pred_check_branch
      %32 = sbr.rel (0) target = $region21
    $region20: #{_forward_impl.1} parent=1 // pred_region
      %s34 = ssub.s32 1024, 1024
      %35 = vsyncadd [#allocation7], %s34
      %s36 = sshll.u32 [#allocation6], 4
      %s37 = int_to_ptr.vmem [resolvable:$true] %s36
      %42 = dma.hbm_to_vmem [thread:$0]  %s4, 1024, %s37, [#allocation7], 64, 64, 4
    $region21: #{_forward_impl.1} parent=1 // pred_fallthru
      _
    // Predicated region
    $region22: #{_forward_impl.1} parent=1 // pred_check
      _
    $region23: #{_forward_impl.1} parent=1 // pred_check_branch
      %44 = sbr.rel (0) target = $region25
    $region24: #{_forward_impl.1} parent=1 // pred_region
      _
    $region25: #{_forward_impl.1} parent=1 // pred_fallthru
      _
    // Predicated region
    $region26: #{_forward_impl.1} parent=1 // pred_check
      _
    $region27: #{_forward_impl.1} parent=1 // pred_check_branch
      %46 = sbr.rel (0) target = $region29
    $region28: #{_forward_impl.1} parent=1 // pred_region
      %47 = dma.done [#allocation5], 4096
    $region29: #{_forward_impl.1} parent=1 // pred_fallthru
      _
    // Predicated region
    $region30: #{_forward_impl.1} parent=1 // pred_check
      _
    $region31: #{_forward_impl.1} parent=1 // pred_check_branch
      %49 = sbr.rel (0) target = $region33
    $region32: #{_forward_impl.1} parent=1 // pred_region
      %50 = dma.done [#allocation7], 1024
    $region33: #{_forward_impl.1} parent=1 // pred_fallthru
      _
    %v52 = vld [vmem:[%s0] sm:$0xf]
    %v53 = vld [vmem:[%s0 + $0x4] sm:$0xf]
    %v54 = vld [vmem:[%s0 + $0x8] sm:$0xf]
    %v55 = vld [vmem:[%s0 + $0xc] sm:$0xf]
    %v56 = vld [vmem:[%s0 + $0x10] sm:$0xf]
    %v57 = vld [vmem:[%s0 + $0x14] sm:$0xf]
    %v58 = vld [vmem:[%s0 + $0x18] sm:$0xf]
    %v59 = vld [vmem:[%s0 + $0x1c] sm:$0xf]
    %v60 = vld [vmem:[%s0 + $0x20] sm:$0xf]
    %v61 = vld [vmem:[%s1] sm:$0xff]
    %v62 = vld [vmem:[%s1 + $0x8] sm:$0xff]
    %v63 = vld [vmem:[%s1 + $0x10] sm:$0xff]
    %v64 = vld [vmem:[%s1 + $0x18] sm:$0xff]
    %v65 = vld [vmem:[%s1 + $0x20] sm:$0xff]
    %v66 = vld [vmem:[%s1 + $0x28] sm:$0xff]
    %v67 = vld [vmem:[%s1 + $0x30] sm:$0xff]
    %v68 = vld [vmem:[%s1 + $0x38] sm:$0xff]
    %v69 = vld [vmem:[%s1 + $0x40] sm:$0x77]
    %v70 = vld [vmem:[%s1 + $0x48] sm:$0x77]
    %v71 = vld [vmem:[%s2] sm:$0xf]
    %v73 = vlaneseq
    %v74 = vshrl.u32 %v73, 7
    %v75 = vsub.s32 0, %v74
    %v76 = vrot.slane %v71, %v75
    %v77 = vlaneseq
    %v78 = vshrl.u32 %v77, 7
    %v79 = vsub.s32 1, %v78
    %v80 = vrot.slane %v71, %v79
    %v81 = vlaneseq
    %v82 = vshrl.u32 %v81, 7
    %v83 = vsub.s32 2, %v82
    %v84 = vrot.slane %v71, %v83
    %v85 = vlaneseq
    %v86 = vshrl.u32 %v85, 7
    %v87 = vsub.s32 3, %v86
    %v88 = vrot.slane %v71, %v87
    %v102 = vunpack.c.l.b16 %v52
    %v103 = vunpack.c.l.b16 %v53
    %v104 = vunpack.c.l.b16 %v54
    %v105 = vunpack.c.l.b16 %v55
    %v106 = vunpack.c.l.b16 %v56
    %v107 = vunpack.c.l.b16 %v57
    %v108 = vunpack.c.l.b16 %v58
    %v109 = vunpack.c.l.b16 %v59
    %v110 = vunpack.c.l.b16 %v60
    %v111 = vpack.c.b16 %v103, %v102
    %v112 = vpack.c.b16 %v105, %v104
    %v113 = vpack.c.b16 %v107, %v106
    %v114 = vpack.c.b16 %v109, %v108
    %v115 = vpack.c.b16 %v110, %v110
    %v126 = vunpack.c.l.b16 %v61
    %v127 = vunpack.c.h.b16 %v61
    %v128 = vunpack.c.l.b16 %v62
    %v129 = vunpack.c.h.b16 %v62
    %v130 = vunpack.c.l.b16 %v63
    %v131 = vunpack.c.h.b16 %v63
    %v132 = vunpack.c.l.b16 %v64
    %v133 = vunpack.c.h.b16 %v64
    %v134 = vunpack.c.l.b16 %v65
    %v135 = vunpack.c.h.b16 %v65
    %v136 = vunpack.c.l.b16 %v66
    %v137 = vunpack.c.h.b16 %v66
    %v138 = vunpack.c.l.b16 %v67
    %v139 = vunpack.c.h.b16 %v67
    %v140 = vunpack.c.l.b16 %v68
    %v141 = vunpack.c.h.b16 %v68
    %v142 = vunpack.c.l.b16 %v69
    %v143 = vunpack.c.h.b16 %v69
    %v144 = vunpack.c.l.b16 %v70
    %v145 = vunpack.c.h.b16 %v70
    %v146 = vpack.c.b16 %v130, %v126
    %v147 = vpack.c.b16 %v131, %v127
    %v148 = vpack.c.b16 %v132, %v128
    %v149 = vpack.c.b16 %v133, %v129
    %v150 = vpack.c.b16 %v138, %v134
    %v151 = vpack.c.b16 %v139, %v135
    %v152 = vpack.c.b16 %v140, %v136
    %v153 = vpack.c.b16 %v141, %v137
    %v154 = vpack.c.b16 %v142, %v142
    %v155 = vpack.c.b16 %v143, %v143
    %v156 = vpack.c.b16 %v144, %v144
    %v157 = vpack.c.b16 %v145, %v145
    %vm166 = vcmask 310272
    %v168 = vsel %vm166, %v111, 0
    %v171 = vsel %vm166, %v112, 0
    %v174 = vsel %vm166, %v113, 0
    %v177 = vsel %vm166, %v114, 0
    %v180 = vsel %vm166, %v115, 0
    %vm182 = vcmask 1042432
    %v184 = vsel %vm182, %v154, 0
    %v187 = vsel %vm182, %v155, 0
    %v190 = vsel %vm182, %v156, 0
    %v193 = vsel %vm182, %v157, 0
    %195 = vmatprep.subr.bf16.mxu0 %v147
    %196 = vmatpush1.bf16.msra.mxu0 %v146
    %197 = vmatprep.subr.bf16.mxu0 %v151
    %198 = vmatpush1.bf16.msra.mxu0 %v150
    %199 = vmatprep.subr.bf16.mxu0 %v187
    %200 = vmatpush1.bf16.msra.mxu0 %v184
    %201 = vmatprep.subr.bf16.mxu0 0
    %202 = vmatpush1.bf16.msra.mxu0 0
    %203 = vmatprep.subr.bf16.mxu0 0
    %204 = vmatpush1.bf16.msra.mxu0 0
    %205 = vmatprep.subr.bf16.mxu0 0
    %206 = vmatpush1.bf16.msra.mxu0 0
    %207 = vmatprep.subr.bf16.mxu0 0
    %208 = vmatpush1.bf16.msra.mxu0 0
    %209 = vmatprep.subr.bf16.mxu0 0
    %210 = vmatpush1.bf16.msra.mxu0 0
    %211 = vmatprep.subr.bf16.mxu0 0
    %212 = vmatpush1.bf16.msra.mxu0 0
    %213 = vmatprep.subr.bf16.mxu0 0
    %214 = vmatpush1.bf16.msra.mxu0 0
    %215 = vmatprep.subr.bf16.mxu0 0
    %216 = vmatpush1.bf16.msra.mxu0 0
    %217 = vmatprep.subr.bf16.mxu0 0
    %218 = vmatpush1.bf16.msra.mxu0 0
    %219 = vmatprep.subr.bf16.mxu0 0
    %220 = vmatpush1.bf16.msra.mxu0 0
    %221 = vmatprep.subr.bf16.mxu0 0
    %222 = vmatpush1.bf16.msra.mxu0 0
    %223 = vmatprep.subr.bf16.mxu0 0
    %224 = vmatpush1.bf16.msra.mxu0 0
    %225 = vmatprep.subr.bf16.mxu0 0
    %226 = vmatpush1.bf16.msra.mxu0 0
    %227 = vmatprep.mubr.bf16.mxu0 0
    %228 = vmatmul.mubr.bf16.gmra.mrb[0].mxu0 %v168
    %v229 = vpop.f32.mrb[0].mxu0
    %v230 = vadd.f32 %v76, %v229
    %v231 = vpop.f32.mrb[0].mxu0
    %v232 = vadd.f32 %v80, %v231
    %v233 = vpop.f32.mrb[0].mxu0
    %v234 = vadd.f32 %v76, %v233
    %v235 = vpop.f32.mrb[0].mxu0
    %v236 = vadd.f32 %v80, %v235
    %237 = vmatprep.mubr.bf16.mxu0 0
    %238 = vmatmul.mubr.bf16.gmra.mrb[0].mxu0 %v171
    %v239 = vpop.f32.mrb[0].mxu0
    %v240 = vadd.f32 %v76, %v239
    %v241 = vpop.f32.mrb[0].mxu0
    %v242 = vadd.f32 %v80, %v241
    %v243 = vpop.f32.mrb[0].mxu0
    %v244 = vadd.f32 %v76, %v243
    %v245 = vpop.f32.mrb[0].mxu0
    %v246 = vadd.f32 %v80, %v245
    %247 = vmatprep.mubr.bf16.mxu0 0
    %248 = vmatmul.mubr.bf16.gmra.mrb[0].mxu0 %v174
    %v249 = vpop.f32.mrb[0].mxu0
    %v250 = vadd.f32 %v76, %v249
    %v251 = vpop.f32.mrb[0].mxu0
    %v252 = vadd.f32 %v80, %v251
    %v253 = vpop.f32.mrb[0].mxu0
    %v254 = vadd.f32 %v76, %v253
    %v255 = vpop.f32.mrb[0].mxu0
    %v256 = vadd.f32 %v80, %v255
    %257 = vmatprep.mubr.bf16.mxu0 0
    %258 = vmatmul.mubr.bf16.gmra.mrb[0].mxu0 %v177
    %v259 = vpop.f32.mrb[0].mxu0
    %v260 = vadd.f32 %v76, %v259
    %v261 = vpop.f32.mrb[0].mxu0
    %v262 = vadd.f32 %v80, %v261
    %v263 = vpop.f32.mrb[0].mxu0
    %v264 = vadd.f32 %v76, %v263
    %v265 = vpop.f32.mrb[0].mxu0
    %v266 = vadd.f32 %v80, %v265
    %267 = vmatprep.mubr.bf16.mxu0 0
    %268 = vmatmul.mubr.bf16.gmra.mrb[0].mxu0 %v180
    %v269 = vpop.f32.mrb[0].mxu0
    %v270 = vadd.f32 %v76, %v269
    %v271 = vpop.f32.mrb[0].mxu0
    %v272 = vadd.f32 %v80, %v271
    %v273 = vpop.f32.mrb[0].mxu0
    %v274 = vpop.f32.mrb[0].mxu0
    %275 = vdwg.mxu0
    %276 = vmatprep.subr.bf16.mxu0 %v149
    %277 = vmatpush1.bf16.msra.mxu0 %v148
    %278 = vmatprep.subr.bf16.mxu0 %v153
    %279 = vmatpush1.bf16.msra.mxu0 %v152
    %280 = vmatprep.subr.bf16.mxu0 %v193
    %281 = vmatpush1.bf16.msra.mxu0 %v190
    %282 = vmatprep.subr.bf16.mxu0 0
    %283 = vmatpush1.bf16.msra.mxu0 0
    %284 = vmatprep.subr.bf16.mxu0 0
    %285 = vmatpush1.bf16.msra.mxu0 0
    %286 = vmatprep.subr.bf16.mxu0 0
    %287 = vmatpush1.bf16.msra.mxu0 0
    %288 = vmatprep.subr.bf16.mxu0 0
    %289 = vmatpush1.bf16.msra.mxu0 0
    %290 = vmatprep.subr.bf16.mxu0 0
    %291 = vmatpush1.bf16.msra.mxu0 0
    %292 = vmatprep.subr.bf16.mxu0 0
    %293 = vmatpush1.bf16.msra.mxu0 0
    %294 = vmatprep.subr.bf16.mxu0 0
    %295 = vmatpush1.bf16.msra.mxu0 0
    %296 = vmatprep.subr.bf16.mxu0 0
    %297 = vmatpush1.bf16.msra.mxu0 0
    %298 = vmatprep.subr.bf16.mxu0 0
    %299 = vmatpush1.bf16.msra.mxu0 0
    %300 = vmatprep.subr.bf16.mxu0 0
    %301 = vmatpush1.bf16.msra.mxu0 0
    %302 = vmatprep.subr.bf16.mxu0 0
    %303 = vmatpush1.bf16.msra.mxu0 0
    %304 = vmatprep.subr.bf16.mxu0 0
    %305 = vmatpush1.bf16.msra.mxu0 0
    %306 = vmatprep.subr.bf16.mxu0 0
    %307 = vmatpush1.bf16.msra.mxu0 0
    %308 = vmatprep.mubr.bf16.mxu0 0
    %309 = vmatmul.mubr.bf16.gmra.mrb[0].mxu0 %v168
    %v310 = vpop.f32.mrb[0].mxu0
    %v311 = vadd.f32 %v84, %v310
    %v312 = vpop.f32.mrb[0].mxu0
    %v313 = vadd.f32 %v88, %v312
    %v314 = vpop.f32.mrb[0].mxu0
    %v315 = vadd.f32 %v84, %v314
    %v316 = vpop.f32.mrb[0].mxu0
    %v317 = vadd.f32 %v88, %v316
    %318 = vmatprep.mubr.bf16.mxu0 0
    %319 = vmatmul.mubr.bf16.gmra.mrb[0].mxu0 %v171
    %v320 = vpop.f32.mrb[0].mxu0
    %v321 = vadd.f32 %v84, %v320
    %v322 = vpop.f32.mrb[0].mxu0
    %v323 = vadd.f32 %v88, %v322
    %v324 = vpop.f32.mrb[0].mxu0
    %v325 = vadd.f32 %v84, %v324
    %v326 = vpop.f32.mrb[0].mxu0
    %v327 = vadd.f32 %v88, %v326
    %328 = vmatprep.mubr.bf16.mxu0 0
    %329 = vmatmul.mubr.bf16.gmra.mrb[0].mxu0 %v174
    %v330 = vpop.f32.mrb[0].mxu0
    %v331 = vadd.f32 %v84, %v330
    %v332 = vpop.f32.mrb[0].mxu0
    %v333 = vadd.f32 %v88, %v332
    %v334 = vpop.f32.mrb[0].mxu0
    %v335 = vadd.f32 %v84, %v334
    %v336 = vpop.f32.mrb[0].mxu0
    %v337 = vadd.f32 %v88, %v336
    %338 = vmatprep.mubr.bf16.mxu0 0
    %339 = vmatmul.mubr.bf16.gmra.mrb[0].mxu0 %v177
    %v340 = vpop.f32.mrb[0].mxu0
    %v341 = vadd.f32 %v84, %v340
    %v342 = vpop.f32.mrb[0].mxu0
    %v343 = vadd.f32 %v88, %v342
    %v344 = vpop.f32.mrb[0].mxu0
    %v345 = vadd.f32 %v84, %v344
    %v346 = vpop.f32.mrb[0].mxu0
    %v347 = vadd.f32 %v88, %v346
    %348 = vmatprep.mubr.bf16.mxu0 0
    %349 = vmatmul.mubr.bf16.gmra.mrb[0].mxu0 %v180
    %v350 = vpop.f32.mrb[0].mxu0
    %v351 = vadd.f32 %v84, %v350
    %v352 = vpop.f32.mrb[0].mxu0
    %v353 = vadd.f32 %v88, %v352
    %v354 = vpop.f32.mrb[0].mxu0
    %v355 = vpop.f32.mrb[0].mxu0
    %356 = vdwg.mxu0
    %357 = vst [vmem:[#allocation2] sm:$0xff] %v230
    %358 = vst [vmem:[#allocation2 + $0x8] sm:$0xff] %v232
    %359 = vst [vmem:[#allocation2 + $0x10] sm:$0xff] %v311
    %360 = vst [vmem:[#allocation2 + $0x18] sm:$0xff] %v313
    %361 = vst [vmem:[#allocation2 + $0x20] sm:$0xff] %v234
    %362 = vst [vmem:[#allocation2 + $0x28] sm:$0xff] %v236
    %363 = vst [vmem:[#allocation2 + $0x30] sm:$0xff] %v315
    %364 = vst [vmem:[#allocation2 + $0x38] sm:$0xff] %v317
    %365 = vst [vmem:[#allocation2 + $0x40] sm:$0xff] %v240
    %366 = vst [vmem:[#allocation2 + $0x48] sm:$0xff] %v242
    %367 = vst [vmem:[#allocation2 + $0x50] sm:$0xff] %v321
    %368 = vst [vmem:[#allocation2 + $0x58] sm:$0xff] %v323
    %369 = vst [vmem:[#allocation2 + $0x60] sm:$0xff] %v244
    %370 = vst [vmem:[#allocation2 + $0x68] sm:$0xff] %v246
    %371 = vst [vmem:[#allocation2 + $0x70] sm:$0xff] %v325
    %372 = vst [vmem:[#allocation2 + $0x78] sm:$0xff] %v327
    %373 = vst [vmem:[#allocation2 + $0x80] sm:$0xff] %v250
    %374 = vst [vmem:[#allocation2 + $0x88] sm:$0xff] %v252
    %375 = vst [vmem:[#allocation2 + $0x90] sm:$0xff] %v331
    %376 = vst [vmem:[#allocation2 + $0x98] sm:$0xff] %v333
    %377 = vst [vmem:[#allocation2 + $0xa0] sm:$0xff] %v254
    %378 = vst [vmem:[#allocation2 + $0xa8] sm:$0xff] %v256
    %379 = vst [vmem:[#allocation2 + $0xb0] sm:$0xff] %v335
    %380 = vst [vmem:[#allocation2 + $0xb8] sm:$0xff] %v337
    %381 = vst [vmem:[#allocation2 + $0xc0] sm:$0xff] %v260
    %382 = vst [vmem:[#allocation2 + $0xc8] sm:$0xff] %v262
    %383 = vst [vmem:[#allocation2 + $0xd0] sm:$0xff] %v341
    %384 = vst [vmem:[#allocation2 + $0xd8] sm:$0xff] %v343
    %385 = vst [vmem:[#allocation2 + $0xe0] sm:$0xff] %v264
    %386 = vst [vmem:[#allocation2 + $0xe8] sm:$0xff] %v266
    %387 = vst [vmem:[#allocation2 + $0xf0] sm:$0xff] %v345
    %388 = vst [vmem:[#allocation2 + $0xf8] sm:$0xff] %v347
    %389 = vst [vmem:[#allocation2 + $0x100] sm:$0xff] %v270
    %390 = vst [vmem:[#allocation2 + $0x108] sm:$0xff] %v272
    %391 = vst [vmem:[#allocation2 + $0x110] sm:$0xff] %v351
    %392 = vst [vmem:[#allocation2 + $0x118] sm:$0xff] %v353
    %v393 = vlaneseq
    %v394 = vand.u32 %v393, 127
    %vm395 = vcmp.lt.s32.totalorder %v394, 64
    %v396 = vsel %vm395, 1, 0
    %v397 = vcvt.s32.f32 %v396
    %v398 = vld [vmem:[#allocation2] sm:$0xff]
    %v399 = vld [vmem:[#allocation2 + $0x8] sm:$0xff]
    %v400 = vld [vmem:[#allocation2 + $0x10] sm:$0xff]
    %v401 = vld [vmem:[#allocation2 + $0x18] sm:$0xff]
    %v402 = vxor.u32 %v398, 2147483648
    %v403 = vmul.f32 %v402, 1.442695
    %v404 = vpow.pop %v403
    %v405 = vadd.f32 %v404, 1.0
    %v406 = vrcp.pop %v405
    %v407 = vmul.f32 1.0, %v406
    %v408 = vxor.u32 %v399, 2147483648
    %v409 = vmul.f32 %v408, 1.442695
    %v410 = vpow.pop %v409
    %v411 = vadd.f32 %v410, 1.0
    %v412 = vrcp.pop %v411
    %v413 = vmul.f32 1.0, %v412
    %v414 = vtanh.pop %v400
    %v415 = vxor.u32 %v401, 2147483648
    %v416 = vmul.f32 %v415, 1.442695
    %v417 = vpow.pop %v416
    %v418 = vadd.f32 %v417, 1.0
    %v419 = vrcp.pop %v418
    %v420 = vmul.f32 1.0, %v419
    %v421 = vmul.f32 %v413, 0.0
    %v422 = vmul.f32 %v407, %v414
    %v423 = vadd.f32 %v421, %v422
    %v424 = vtanh.pop %v423
    %v425 = vmul.f32 %v420, %v424
    %v426 = vmul.f32 %v425, %v397
    %v427 = vmul.f32 %v423, %v397
    %v428 = vpack.c.bf16 %v426, %v426
    %v429 = vld [vmem:[#allocation4] sm:$0xff]
    %v430 = vld [vmem:[#allocation4 + $0x8] sm:$0xff]
    %v431 = vld [vmem:[#allocation4 + $0x10] sm:$0xff]
    %v432 = vld [vmem:[#allocation4 + $0x18] sm:$0xff]
    %v433 = vld [vmem:[#allocation4 + $0x20] sm:$0xff]
    %v434 = vld [vmem:[#allocation4 + $0x28] sm:$0xff]
    %v435 = vld [vmem:[#allocation4 + $0x30] sm:$0xff]
    %v436 = vld [vmem:[#allocation4 + $0x38] sm:$0xff]
    %v437 = vld [vmem:[#allocation4 + $0x40] sm:$0xff]
    %v438 = vld [vmem:[#allocation4 + $0x48] sm:$0xff]
    %v439 = vld [vmem:[#allocation4 + $0x50] sm:$0xff]
    %v440 = vld [vmem:[#allocation4 + $0x58] sm:$0xff]
    %v441 = vld [vmem:[#allocation4 + $0x60] sm:$0xff]
    %v442 = vld [vmem:[#allocation4 + $0x68] sm:$0xff]
    %v443 = vld [vmem:[#allocation4 + $0x70] sm:$0xff]
    %v444 = vld [vmem:[#allocation4 + $0x78] sm:$0xff]
    %v445 = vld [vmem:[#allocation4 + $0x80] sm:$0xff]
    %v446 = vld [vmem:[#allocation4 + $0x88] sm:$0xff]
    %v447 = vld [vmem:[#allocation4 + $0x90] sm:$0xff]
    %v448 = vld [vmem:[#allocation4 + $0x98] sm:$0xff]
    %v449 = vld [vmem:[#allocation4 + $0xa0] sm:$0xff]
    %v450 = vld [vmem:[#allocation4 + $0xa8] sm:$0xff]
    %v451 = vld [vmem:[#allocation4 + $0xb0] sm:$0xff]
    %v452 = vld [vmem:[#allocation4 + $0xb8] sm:$0xff]
    %v453 = vld [vmem:[#allocation4 + $0xc0] sm:$0xff]
    %v454 = vld [vmem:[#allocation4 + $0xc8] sm:$0xff]
    %v455 = vld [vmem:[#allocation4 + $0xd0] sm:$0xff]
    %v456 = vld [vmem:[#allocation4 + $0xd8] sm:$0xff]
    %v457 = vld [vmem:[#allocation4 + $0xe0] sm:$0xff]
    %v458 = vld [vmem:[#allocation4 + $0xe8] sm:$0xff]
    %v459 = vld [vmem:[#allocation4 + $0xf0] sm:$0xff]
    %v460 = vld [vmem:[#allocation4 + $0xf8] sm:$0xff]
    %v461 = vld [vmem:[#allocation2 + $0x20] sm:$0xff]
    %v462 = vld [vmem:[#allocation2 + $0x28] sm:$0xff]
    %v463 = vld [vmem:[#allocation2 + $0x30] sm:$0xff]
    %v464 = vld [vmem:[#allocation2 + $0x38] sm:$0xff]
    %v497 = vunpack.c.l.b16 %v429
    %v498 = vunpack.c.h.b16 %v429
    %v499 = vunpack.c.l.b16 %v430
    %v500 = vunpack.c.h.b16 %v430
    %v501 = vunpack.c.l.b16 %v431
    %v502 = vunpack.c.h.b16 %v431
    %v503 = vunpack.c.l.b16 %v432
    %v504 = vunpack.c.h.b16 %v432
    %v505 = vunpack.c.l.b16 %v433
    %v506 = vunpack.c.h.b16 %v433
    %v507 = vunpack.c.l.b16 %v434
    %v508 = vunpack.c.h.b16 %v434
    %v509 = vunpack.c.l.b16 %v435
    %v510 = vunpack.c.h.b16 %v435
    %v511 = vunpack.c.l.b16 %v436
    %v512 = vunpack.c.h.b16 %v436
    %v513 = vunpack.c.l.b16 %v437
    %v514 = vunpack.c.h.b16 %v437
    %v515 = vunpack.c.l.b16 %v438
    %v516 = vunpack.c.h.b16 %v438
    %v517 = vunpack.c.l.b16 %v439
    %v518 = vunpack.c.h.b16 %v439
    %v519 = vunpack.c.l.b16 %v440
    %v520 = vunpack.c.h.b16 %v440
    %v521 = vunpack.c.l.b16 %v441
    %v522 = vunpack.c.h.b16 %v441
    %v523 = vunpack.c.l.b16 %v442
    %v524 = vunpack.c.h.b16 %v442
    %v525 = vunpack.c.l.b16 %v443
    %v526 = vunpack.c.h.b16 %v443
    %v527 = vunpack.c.l.b16 %v444
    %v528 = vunpack.c.h.b16 %v444
    %v529 = vunpack.c.l.b16 %v445
    %v530 = vunpack.c.h.b16 %v445
    %v531 = vunpack.c.l.b16 %v446
    %v532 = vunpack.c.h.b16 %v446
    %v533 = vunpack.c.l.b16 %v447
    %v534 = vunpack.c.h.b16 %v447
    %v535 = vunpack.c.l.b16 %v448
    %v536 = vunpack.c.h.b16 %v448
    %v537 = vunpack.c.l.b16 %v449
    %v538 = vunpack.c.h.b16 %v449
    %v539 = vunpack.c.l.b16 %v450
    %v540 = vunpack.c.h.b16 %v450
    %v541 = vunpack.c.l.b16 %v451
    %v542 = vunpack.c.h.b16 %v451
    %v543 = vunpack.c.l.b16 %v452
    %v544 = vunpack.c.h.b16 %v452
    %v545 = vunpack.c.l.b16 %v453
    %v546 = vunpack.c.h.b16 %v453
    %v547 = vunpack.c.l.b16 %v454
    %v548 = vunpack.c.h.b16 %v454
    %v549 = vunpack.c.l.b16 %v455
    %v550 = vunpack.c.h.b16 %v455
    %v551 = vunpack.c.l.b16 %v456
    %v552 = vunpack.c.h.b16 %v456
    %v553 = vunpack.c.l.b16 %v457
    %v554 = vunpack.c.h.b16 %v457
    %v555 = vunpack.c.l.b16 %v458
    %v556 = vunpack.c.h.b16 %v458
    %v557 = vunpack.c.l.b16 %v459
    %v558 = vunpack.c.h.b16 %v459
    %v559 = vunpack.c.l.b16 %v460
    %v560 = vunpack.c.h.b16 %v460
    %v561 = vpack.c.b16 %v501, %v497
    %v562 = vpack.c.b16 %v502, %v498
    %v563 = vpack.c.b16 %v503, %v499
    %v564 = vpack.c.b16 %v504, %v500
    %v565 = vpack.c.b16 %v509, %v505
    %v566 = vpack.c.b16 %v510, %v506
    %v567 = vpack.c.b16 %v511, %v507
    %v568 = vpack.c.b16 %v512, %v508
    %v569 = vpack.c.b16 %v517, %v513
    %v570 = vpack.c.b16 %v518, %v514
    %v571 = vpack.c.b16 %v519, %v515
    %v572 = vpack.c.b16 %v520, %v516
    %v573 = vpack.c.b16 %v525, %v521
    %v574 = vpack.c.b16 %v526, %v522
    %v575 = vpack.c.b16 %v527, %v523
    %v576 = vpack.c.b16 %v528, %v524
    %v577 = vpack.c.b16 %v533, %v529
    %v578 = vpack.c.b16 %v534, %v530
    %v579 = vpack.c.b16 %v535, %v531
    %v580 = vpack.c.b16 %v536, %v532
    %v581 = vpack.c.b16 %v541, %v537
    %v582 = vpack.c.b16 %v542, %v538
    %v583 = vpack.c.b16 %v543, %v539
    %v584 = vpack.c.b16 %v544, %v540
    %v585 = vpack.c.b16 %v549, %v545
    %v586 = vpack.c.b16 %v550, %v546
    %v587 = vpack.c.b16 %v551, %v547
    %v588 = vpack.c.b16 %v552, %v548
    %v589 = vpack.c.b16 %v557, %v553
    %v590 = vpack.c.b16 %v558, %v554
    %v591 = vpack.c.b16 %v559, %v555
    %v592 = vpack.c.b16 %v560, %v556
    %625 = vmatprep.subr.bf16.mxu0 %v562
    %626 = vmatpush1.bf16.msra.mxu0 %v561
    %627 = vmatprep.subr.bf16.mxu0 %v566
    %628 = vmatpush1.bf16.msra.mxu0 %v565
    %629 = vmatprep.subr.bf16.mxu0 %v570
    %630 = vmatpush1.bf16.msra.mxu0 %v569
    %631 = vmatprep.subr.bf16.mxu0 %v574
    %632 = vmatpush1.bf16.msra.mxu0 %v573
    %633 = vmatprep.subr.bf16.mxu0 %v578
    %634 = vmatpush1.bf16.msra.mxu0 %v577
    %635 = vmatprep.subr.bf16.mxu0 %v582
    %636 = vmatpush1.bf16.msra.mxu0 %v581
    %637 = vmatprep.subr.bf16.mxu0 %v586
    %638 = vmatpush1.bf16.msra.mxu0 %v585
    %639 = vmatprep.subr.bf16.mxu0 %v590
    %640 = vmatpush1.bf16.msra.mxu0 %v589
    %641 = vmatprep.subr.bf16.mxu0 0
    %642 = vmatpush1.bf16.msra.mxu0 0
    %643 = vmatprep.subr.bf16.mxu0 0
    %644 = vmatpush1.bf16.msra.mxu0 0
    %645 = vmatprep.subr.bf16.mxu0 0
    %646 = vmatpush1.bf16.msra.mxu0 0
    %647 = vmatprep.subr.bf16.mxu0 0
    %648 = vmatpush1.bf16.msra.mxu0 0
    %649 = vmatprep.subr.bf16.mxu0 0
    %650 = vmatpush1.bf16.msra.mxu0 0
    %651 = vmatprep.subr.bf16.mxu0 0
    %652 = vmatpush1.bf16.msra.mxu0 0
    %653 = vmatprep.subr.bf16.mxu0 0
    %654 = vmatpush1.bf16.msra.mxu0 0
    %655 = vmatprep.subr.bf16.mxu0 0
    %656 = vmatpush1.bf16.msra.mxu0 0
    %657 = vmatprep.mubr.bf16.mxu0 0
    %658 = vmatmul.mubr.bf16.gmra.mrb[0].mxu0 %v428
    %v659 = vpop.f32.mrb[0].mxu0
    %v660 = vadd.f32 %v461, %v659
    %v661 = vpop.f32.mrb[0].mxu0
    %v662 = vadd.f32 %v462, %v661
    %v663 = vpop.f32.mrb[0].mxu0
    %v664 = vpop.f32.mrb[0].mxu0
    %665 = vdwg.mxu0
    %666 = vmatprep.subr.bf16.mxu0 %v564
    %667 = vmatpush1.bf16.msra.mxu0 %v563
    %668 = vmatprep.subr.bf16.mxu0 %v568
    %669 = vmatpush1.bf16.msra.mxu0 %v567
    %670 = vmatprep.subr.bf16.mxu0 %v572
    %671 = vmatpush1.bf16.msra.mxu0 %v571
    %672 = vmatprep.subr.bf16.mxu0 %v576
    %673 = vmatpush1.bf16.msra.mxu0 %v575
    %674 = vmatprep.subr.bf16.mxu0 %v580
    %675 = vmatpush1.bf16.msra.mxu0 %v579
    %676 = vmatprep.subr.bf16.mxu0 %v584
    %677 = vmatpush1.bf16.msra.mxu0 %v583
    %678 = vmatprep.subr.bf16.mxu0 %v588
    %679 = vmatpush1.bf16.msra.mxu0 %v587
    %680 = vmatprep.subr.bf16.mxu0 %v592
    %681 = vmatpush1.bf16.msra.mxu0 %v591
    %682 = vmatprep.subr.bf16.mxu0 0
    %683 = vmatpush1.bf16.msra.mxu0 0
    %684 = vmatprep.subr.bf16.mxu0 0
    %685 = vmatpush1.bf16.msra.mxu0 0
    %686 = vmatprep.subr.bf16.mxu0 0
    %687 = vmatpush1.bf16.msra.mxu0 0
    %688 = vmatprep.subr.bf16.mxu0 0
    %689 = vmatpush1.bf16.msra.mxu0 0
    %690 = vmatprep.subr.bf16.mxu0 0
    %691 = vmatpush1.bf16.msra.mxu0 0
    %692 = vmatprep.subr.bf16.mxu0 0
    %693 = vmatpush1.bf16.msra.mxu0 0
    %694 = vmatprep.subr.bf16.mxu0 0
    %695 = vmatpush1.bf16.msra.mxu0 0
    %696 = vmatprep.subr.bf16.mxu0 0
    %697 = vmatpush1.bf16.msra.mxu0 0
    %698 = vmatprep.mubr.bf16.mxu0 0
    %699 = vmatmul.mubr.bf16.gmra.mrb[0].mxu0 %v428
    %v700 = vpop.f32.mrb[0].mxu0
    %v701 = vadd.f32 %v463, %v700
    %v702 = vpop.f32.mrb[0].mxu0
    %v703 = vadd.f32 %v464, %v702
    %v704 = vpop.f32.mrb[0].mxu0
    %v705 = vpop.f32.mrb[0].mxu0
    %706 = vdwg.mxu0
    %v707 = vxor.u32 %v660, 2147483648
    %v708 = vmul.f32 %v707, 1.442695
    %v709 = vpow.pop %v708
    %v710 = vadd.f32 %v709, 1.0
    %v711 = vrcp.pop %v710
    %v712 = vmul.f32 1.0, %v711
    %v713 = vxor.u32 %v662, 2147483648
    %v714 = vmul.f32 %v713, 1.442695
    %v715 = vpow.pop %v714
    %v716 = vadd.f32 %v715, 1.0
    %v717 = vrcp.pop %v716
    %v718 = vmul.f32 1.0, %v717
    %v719 = vtanh.pop %v701
    %v720 = vxor.u32 %v703, 2147483648
    %v721 = vmul.f32 %v720, 1.442695
    %v722 = vpow.pop %v721
    %v723 = vadd.f32 %v722, 1.0
    %v724 = vrcp.pop %v723
    %v725 = vmul.f32 1.0, %v724
    %v726 = vmul.f32 %v718, %v427
    %v727 = vmul.f32 %v712, %v719
    %v728 = vadd.f32 %v726, %v727
    %v729 = vtanh.pop %v728
    %v730 = vmul.f32 %v725, %v729
    %v731 = vpack.c.bf16 %v730, %v730
    %732 = vst [vmem:[#allocation3] sm:$0xf] %v731
    %v733 = vld [vmem:[#allocation4] sm:$0xff]
    %v734 = vld [vmem:[#allocation4 + $0x8] sm:$0xff]
    %v735 = vld [vmem:[#allocation4 + $0x10] sm:$0xff]
    %v736 = vld [vmem:[#allocation4 + $0x18] sm:$0xff]
    %v737 = vld [vmem:[#allocation4 + $0x20] sm:$0xff]
    %v738 = vld [vmem:[#allocation4 + $0x28] sm:$0xff]
    %v739 = vld [vmem:[#allocation4 + $0x30] sm:$0xff]
    %v740 = vld [vmem:[#allocation4 + $0x38] sm:$0xff]
    %v741 = vld [vmem:[#allocation4 + $0x40] sm:$0xff]
    %v742 = vld [vmem:[#allocation4 + $0x48] sm:$0xff]
    %v743 = vld [vmem:[#allocation4 + $0x50] sm:$0xff]
    %v744 = vld [vmem:[#allocation4 + $0x58] sm:$0xff]
    %v745 = vld [vmem:[#allocation4 + $0x60] sm:$0xff]
    %v746 = vld [vmem:[#allocation4 + $0x68] sm:$0xff]
    %v747 = vld [vmem:[#allocation4 + $0x70] sm:$0xff]
    %v748 = vld [vmem:[#allocation4 + $0x78] sm:$0xff]
    %v749 = vld [vmem:[#allocation4 + $0x80] sm:$0xff]
    %v750 = vld [vmem:[#allocation4 + $0x88] sm:$0xff]
    %v751 = vld [vmem:[#allocation4 + $0x90] sm:$0xff]
    %v752 = vld [vmem:[#allocation4 + $0x98] sm:$0xff]
    %v753 = vld [vmem:[#allocation4 + $0xa0] sm:$0xff]
    %v754 = vld [vmem:[#allocation4 + $0xa8] sm:$0xff]
    %v755 = vld [vmem:[#allocation4 + $0xb0] sm:$0xff]
    %v756 = vld [vmem:[#allocation4 + $0xb8] sm:$0xff]
    %v757 = vld [vmem:[#allocation4 + $0xc0] sm:$0xff]
    %v758 = vld [vmem:[#allocation4 + $0xc8] sm:$0xff]
    %v759 = vld [vmem:[#allocation4 + $0xd0] sm:$0xff]
    %v760 = vld [vmem:[#allocation4 + $0xd8] sm:$0xff]
    %v761 = vld [vmem:[#allocation4 + $0xe0] sm:$0xff]
    %v762 = vld [vmem:[#allocation4 + $0xe8] sm:$0xff]
    %v763 = vld [vmem:[#allocation4 + $0xf0] sm:$0xff]
    %v764 = vld [vmem:[#allocation4 + $0xf8] sm:$0xff]
    %v765 = vld [vmem:[#allocation2 + $0x40] sm:$0xff]
    %v766 = vld [vmem:[#allocation2 + $0x48] sm:$0xff]
    %v767 = vld [vmem:[#allocation2 + $0x50] sm:$0xff]
    %v768 = vld [vmem:[#allocation2 + $0x58] sm:$0xff]
    %v801 = vunpack.c.l.b16 %v733
    %v802 = vunpack.c.h.b16 %v733
    %v803 = vunpack.c.l.b16 %v734
    %v804 = vunpack.c.h.b16 %v734
    %v805 = vunpack.c.l.b16 %v735
    %v806 = vunpack.c.h.b16 %v735
    %v807 = vunpack.c.l.b16 %v736
    %v808 = vunpack.c.h.b16 %v736
    %v809 = vunpack.c.l.b16 %v737
    %v810 = vunpack.c.h.b16 %v737
    %v811 = vunpack.c.l.b16 %v738
    %v812 = vunpack.c.h.b16 %v738
    %v813 = vunpack.c.l.b16 %v739
    %v814 = vunpack.c.h.b16 %v739
    %v815 = vunpack.c.l.b16 %v740
    %v816 = vunpack.c.h.b16 %v740
    %v817 = vunpack.c.l.b16 %v741
    %v818 = vunpack.c.h.b16 %v741
    %v819 = vunpack.c.l.b16 %v742
    %v820 = vunpack.c.h.b16 %v742
    %v821 = vunpack.c.l.b16 %v743
    %v822 = vunpack.c.h.b16 %v743
    %v823 = vunpack.c.l.b16 %v744
    %v824 = vunpack.c.h.b16 %v744
    %v825 = vunpack.c.l.b16 %v745
    %v826 = vunpack.c.h.b16 %v745
    %v827 = vunpack.c.l.b16 %v746
    %v828 = vunpack.c.h.b16 %v746
    %v829 = vunpack.c.l.b16 %v747
    %v830 = vunpack.c.h.b16 %v747
    %v831 = vunpack.c.l.b16 %v748
    %v832 = vunpack.c.h.b16 %v748
    %v833 = vunpack.c.l.b16 %v749
    %v834 = vunpack.c.h.b16 %v749
    %v835 = vunpack.c.l.b16 %v750
    %v836 = vunpack.c.h.b16 %v750
    %v837 = vunpack.c.l.b16 %v751
    %v838 = vunpack.c.h.b16 %v751
    %v839 = vunpack.c.l.b16 %v752
    %v840 = vunpack.c.h.b16 %v752
    %v841 = vunpack.c.l.b16 %v753
    %v842 = vunpack.c.h.b16 %v753
    %v843 = vunpack.c.l.b16 %v754
    %v844 = vunpack.c.h.b16 %v754
    %v845 = vunpack.c.l.b16 %v755
    %v846 = vunpack.c.h.b16 %v755
    %v847 = vunpack.c.l.b16 %v756
    %v848 = vunpack.c.h.b16 %v756
    %v849 = vunpack.c.l.b16 %v757
    %v850 = vunpack.c.h.b16 %v757
    %v851 = vunpack.c.l.b16 %v758
    %v852 = vunpack.c.h.b16 %v758
    %v853 = vunpack.c.l.b16 %v759
    %v854 = vunpack.c.h.b16 %v759
    %v855 = vunpack.c.l.b16 %v760
    %v856 = vunpack.c.h.b16 %v760
    %v857 = vunpack.c.l.b16 %v761
    %v858 = vunpack.c.h.b16 %v761
    %v859 = vunpack.c.l.b16 %v762
    %v860 = vunpack.c.h.b16 %v762
    %v861 = vunpack.c.l.b16 %v763
    %v862 = vunpack.c.h.b16 %v763
    %v863 = vunpack.c.l.b16 %v764
    %v864 = vunpack.c.h.b16 %v764
    %v865 = vpack.c.b16 %v805, %v801
    %v866 = vpack.c.b16 %v806, %v802
    %v867 = vpack.c.b16 %v807, %v803
    %v868 = vpack.c.b16 %v808, %v804
    %v869 = vpack.c.b16 %v813, %v809
    %v870 = vpack.c.b16 %v814, %v810
    %v871 = vpack.c.b16 %v815, %v811
    %v872 = vpack.c.b16 %v816, %v812
    %v873 = vpack.c.b16 %v821, %v817
    %v874 = vpack.c.b16 %v822, %v818
    %v875 = vpack.c.b16 %v823, %v819
    %v876 = vpack.c.b16 %v824, %v820
    %v877 = vpack.c.b16 %v829, %v825
    %v878 = vpack.c.b16 %v830, %v826
    %v879 = vpack.c.b16 %v831, %v827
    %v880 = vpack.c.b16 %v832, %v828
    %v881 = vpack.c.b16 %v837, %v833
    %v882 = vpack.c.b16 %v838, %v834
    %v883 = vpack.c.b16 %v839, %v835
    %v884 = vpack.c.b16 %v840, %v836
    %v885 = vpack.c.b16 %v845, %v841
    %v886 = vpack.c.b16 %v846, %v842
    %v887 = vpack.c.b16 %v847, %v843
    %v888 = vpack.c.b16 %v848, %v844
    %v889 = vpack.c.b16 %v853, %v849
    %v890 = vpack.c.b16 %v854, %v850
    %v891 = vpack.c.b16 %v855, %v851
    %v892 = vpack.c.b16 %v856, %v852
    %v893 = vpack.c.b16 %v861, %v857
    %v894 = vpack.c.b16 %v862, %v858
    %v895 = vpack.c.b16 %v863, %v859
    %v896 = vpack.c.b16 %v864, %v860
    %929 = vmatprep.subr.bf16.mxu0 %v866
    %930 = vmatpush1.bf16.msra.mxu0 %v865
    %931 = vmatprep.subr.bf16.mxu0 %v870
    %932 = vmatpush1.bf16.msra.mxu0 %v869
    %933 = vmatprep.subr.bf16.mxu0 %v874
    %934 = vmatpush1.bf16.msra.mxu0 %v873
    %935 = vmatprep.subr.bf16.mxu0 %v878
    %936 = vmatpush1.bf16.msra.mxu0 %v877
    %937 = vmatprep.subr.bf16.mxu0 %v882
    %938 = vmatpush1.bf16.msra.mxu0 %v881
    %939 = vmatprep.subr.bf16.mxu0 %v886
    %940 = vmatpush1.bf16.msra.mxu0 %v885
    %941 = vmatprep.subr.bf16.mxu0 %v890
    %942 = vmatpush1.bf16.msra.mxu0 %v889
    %943 = vmatprep.subr.bf16.mxu0 %v894
    %944 = vmatpush1.bf16.msra.mxu0 %v893
    %945 = vmatprep.subr.bf16.mxu0 0
    %946 = vmatpush1.bf16.msra.mxu0 0
    %947 = vmatprep.subr.bf16.mxu0 0
    %948 = vmatpush1.bf16.msra.mxu0 0
    %949 = vmatprep.subr.bf16.mxu0 0
    %950 = vmatpush1.bf16.msra.mxu0 0
    %951 = vmatprep.subr.bf16.mxu0 0
    %952 = vmatpush1.bf16.msra.mxu0 0
    %953 = vmatprep.subr.bf16.mxu0 0
    %954 = vmatpush1.bf16.msra.mxu0 0
    %955 = vmatprep.subr.bf16.mxu0 0
    %956 = vmatpush1.bf16.msra.mxu0 0
    %957 = vmatprep.subr.bf16.mxu0 0
    %958 = vmatpush1.bf16.msra.mxu0 0
    %959 = vmatprep.subr.bf16.mxu0 0
    %960 = vmatpush1.bf16.msra.mxu0 0
    %961 = vmatprep.mubr.bf16.mxu0 0
    %962 = vmatmul.mubr.bf16.gmra.mrb[0].mxu0 %v731
    %v963 = vpop.f32.mrb[0].mxu0
    %v964 = vadd.f32 %v765, %v963
    %v965 = vpop.f32.mrb[0].mxu0
    %v966 = vadd.f32 %v766, %v965
    %v967 = vpop.f32.mrb[0].mxu0
    %v968 = vpop.f32.mrb[0].mxu0
    %969 = vdwg.mxu0
    %970 = vmatprep.subr.bf16.mxu0 %v868
    %971 = vmatpush1.bf16.msra.mxu0 %v867
    %972 = vmatprep.subr.bf16.mxu0 %v872
    %973 = vmatpush1.bf16.msra.mxu0 %v871
    %974 = vmatprep.subr.bf16.mxu0 %v876
    %975 = vmatpush1.bf16.msra.mxu0 %v875
    %976 = vmatprep.subr.bf16.mxu0 %v880
    %977 = vmatpush1.bf16.msra.mxu0 %v879
    %978 = vmatprep.subr.bf16.mxu0 %v884
    %979 = vmatpush1.bf16.msra.mxu0 %v883
    %980 = vmatprep.subr.bf16.mxu0 %v888
    %981 = vmatpush1.bf16.msra.mxu0 %v887
    %982 = vmatprep.subr.bf16.mxu0 %v892
    %983 = vmatpush1.bf16.msra.mxu0 %v891
    %984 = vmatprep.subr.bf16.mxu0 %v896
    %985 = vmatpush1.bf16.msra.mxu0 %v895
    %986 = vmatprep.subr.bf16.mxu0 0
    %987 = vmatpush1.bf16.msra.mxu0 0
    %988 = vmatprep.subr.bf16.mxu0 0
    %989 = vmatpush1.bf16.msra.mxu0 0
    %990 = vmatprep.subr.bf16.mxu0 0
    %991 = vmatpush1.bf16.msra.mxu0 0
    %992 = vmatprep.subr.bf16.mxu0 0
    %993 = vmatpush1.bf16.msra.mxu0 0
    %994 = vmatprep.subr.bf16.mxu0 0
    %995 = vmatpush1.bf16.msra.mxu0 0
    %996 = vmatprep.subr.bf16.mxu0 0
    %997 = vmatpush1.bf16.msra.mxu0 0
    %998 = vmatprep.subr.bf16.mxu0 0
    %999 = vmatpush1.bf16.msra.mxu0 0
    %1000 = vmatprep.subr.bf16.mxu0 0
    %1001 = vmatpush1.bf16.msra.mxu0 0
    %1002 = vmatprep.mubr.bf16.mxu0 0
    %1003 = vmatmul.mubr.bf16.gmra.mrb[0].mxu0 %v731
    %v1004 = vpop.f32.mrb[0].mxu0
    %v1005 = vadd.f32 %v767, %v1004
    %v1006 = vpop.f32.mrb[0].mxu0
    %v1007 = vadd.f32 %v768, %v1006
    %v1008 = vpop.f32.mrb[0].mxu0
    %v1009 = vpop.f32.mrb[0].mxu0
    %1010 = vdwg.mxu0
    %v1011 = vxor.u32 %v964, 2147483648
    %v1012 = vmul.f32 %v1011, 1.442695
    %v1013 = vpow.pop %v1012
    %v1014 = vadd.f32 %v1013, 1.0
    %v1015 = vrcp.pop %v1014
    %v1016 = vmul.f32 1.0, %v1015
    %v1017 = vxor.u32 %v966, 2147483648
    %v1018 = vmul.f32 %v1017, 1.442695
    %v1019 = vpow.pop %v1018
    %v1020 = vadd.f32 %v1019, 1.0
    %v1021 = vrcp.pop %v1020
    %v1022 = vmul.f32 1.0, %v1021
    %v1023 = vtanh.pop %v1005
    %v1024 = vxor.u32 %v1007, 2147483648
    %v1025 = vmul.f32 %v1024, 1.442695
    %v1026 = vpow.pop %v1025
    %v1027 = vadd.f32 %v1026, 1.0
    %v1028 = vrcp.pop %v1027
    %v1029 = vmul.f32 1.0, %v1028
    %v1030 = vmul.f32 %v1022, %v728
    %v1031 = vmul.f32 %v1016, %v1023
    %v1032 = vadd.f32 %v1030, %v1031
    %v1033 = vtanh.pop %v1032
    %v1034 = vmul.f32 %v1029, %v1033
    %v1035 = vpack.c.bf16 %v1034, %v1034
    %v1037 = vrot.slane %v1035, 4
    %1039 = vst [vmem:[#allocation3] sm:$0xf0] %v1037
    %v1040 = vld [vmem:[#allocation4] sm:$0xff]
    %v1041 = vld [vmem:[#allocation4 + $0x8] sm:$0xff]
    %v1042 = vld [vmem:[#allocation4 + $0x10] sm:$0xff]
    %v1043 = vld [vmem:[#allocation4 + $0x18] sm:$0xff]
    %v1044 = vld [vmem:[#allocation4 + $0x20] sm:$0xff]
    %v1045 = vld [vmem:[#allocation4 + $0x28] sm:$0xff]
    %v1046 = vld [vmem:[#allocation4 + $0x30] sm:$0xff]
    %v1047 = vld [vmem:[#allocation4 + $0x38] sm:$0xff]
    %v1048 = vld [vmem:[#allocation4 + $0x40] sm:$0xff]
    %v1049 = vld [vmem:[#allocation4 + $0x48] sm:$0xff]
    %v1050 = vld [vmem:[#allocation4 + $0x50] sm:$0xff]
    %v1051 = vld [vmem:[#allocation4 + $0x58] sm:$0xff]
    %v1052 = vld [vmem:[#allocation4 + $0x60] sm:$0xff]
    %v1053 = vld [vmem:[#allocation4 + $0x68] sm:$0xff]
    %v1054 = vld [vmem:[#allocation4 + $0x70] sm:$0xff]
    %v1055 = vld [vmem:[#allocation4 + $0x78] sm:$0xff]
    %v1056 = vld [vmem:[#allocation4 + $0x80] sm:$0xff]
    %v1057 = vld [vmem:[#allocation4 + $0x88] sm:$0xff]
    %v1058 = vld [vmem:[#allocation4 + $0x90] sm:$0xff]
    %v1059 = vld [vmem:[#allocation4 + $0x98] sm:$0xff]
    %v1060 = vld [vmem:[#allocation4 + $0xa0] sm:$0xff]
    %v1061 = vld [vmem:[#allocation4 + $0xa8] sm:$0xff]
    %v1062 = vld [vmem:[#allocation4 + $0xb0] sm:$0xff]
    %v1063 = vld [vmem:[#allocation4 + $0xb8] sm:$0xff]
    %v1064 = vld [vmem:[#allocation4 + $0xc0] sm:$0xff]
    %v1065 = vld [vmem:[#allocation4 + $0xc8] sm:$0xff]
    %v1066 = vld [vmem:[#allocation4 + $0xd0] sm:$0xff]
    %v1067 = vld [vmem:[#allocation4 + $0xd8] sm:$0xff]
    %v1068 = vld [vmem:[#allocation4 + $0xe0] sm:$0xff]
    %v1069 = vld [vmem:[#allocation4 + $0xe8] sm:$0xff]
    %v1070 = vld [vmem:[#allocation4 + $0xf0] sm:$0xff]
    %v1071 = vld [vmem:[#allocation4 + $0xf8] sm:$0xff]
    %v1072 = vld [vmem:[#allocation2 + $0x60] sm:$0xff]
    %v1073 = vld [vmem:[#allocation2 + $0x68] sm:$0xff]
    %v1074 = vld [vmem:[#allocation2 + $0x70] sm:$0xff]
    %v1075 = vld [vmem:[#allocation2 + $0x78] sm:$0xff]
    %v1108 = vunpack.c.l.b16 %v1040
    %v1109 = vunpack.c.h.b16 %v1040
    %v1110 = vunpack.c.l.b16 %v1041
    %v1111 = vunpack.c.h.b16 %v1041
    %v1112 = vunpack.c.l.b16 %v1042
    %v1113 = vunpack.c.h.b16 %v1042
    %v1114 = vunpack.c.l.b16 %v1043
    %v1115 = vunpack.c.h.b16 %v1043
    %v1116 = vunpack.c.l.b16 %v1044
    %v1117 = vunpack.c.h.b16 %v1044
    %v1118 = vunpack.c.l.b16 %v1045
    %v1119 = vunpack.c.h.b16 %v1045
    %v1120 = vunpack.c.l.b16 %v1046
    %v1121 = vunpack.c.h.b16 %v1046
    %v1122 = vunpack.c.l.b16 %v1047
    %v1123 = vunpack.c.h.b16 %v1047
    %v1124 = vunpack.c.l.b16 %v1048
    %v1125 = vunpack.c.h.b16 %v1048
    %v1126 = vunpack.c.l.b16 %v1049
    %v1127 = vunpack.c.h.b16 %v1049
    %v1128 = vunpack.c.l.b16 %v1050
    %v1129 = vunpack.c.h.b16 %v1050
    %v1130 = vunpack.c.l.b16 %v1051
    %v1131 = vunpack.c.h.b16 %v1051
    %v1132 = vunpack.c.l.b16 %v1052
    %v1133 = vunpack.c.h.b16 %v1052
    %v1134 = vunpack.c.l.b16 %v1053
    %v1135 = vunpack.c.h.b16 %v1053
    %v1136 = vunpack.c.l.b16 %v1054
    %v1137 = vunpack.c.h.b16 %v1054
    %v1138 = vunpack.c.l.b16 %v1055
    %v1139 = vunpack.c.h.b16 %v1055
    %v1140 = vunpack.c.l.b16 %v1056
    %v1141 = vunpack.c.h.b16 %v1056
    %v1142 = vunpack.c.l.b16 %v1057
    %v1143 = vunpack.c.h.b16 %v1057
    %v1144 = vunpack.c.l.b16 %v1058
    %v1145 = vunpack.c.h.b16 %v1058
    %v1146 = vunpack.c.l.b16 %v1059
    %v1147 = vunpack.c.h.b16 %v1059
    %v1148 = vunpack.c.l.b16 %v1060
    %v1149 = vunpack.c.h.b16 %v1060
    %v1150 = vunpack.c.l.b16 %v1061
    %v1151 = vunpack.c.h.b16 %v1061
    %v1152 = vunpack.c.l.b16 %v1062
    %v1153 = vunpack.c.h.b16 %v1062
    %v1154 = vunpack.c.l.b16 %v1063
    %v1155 = vunpack.c.h.b16 %v1063
    %v1156 = vunpack.c.l.b16 %v1064
    %v1157 = vunpack.c.h.b16 %v1064
    %v1158 = vunpack.c.l.b16 %v1065
    %v1159 = vunpack.c.h.b16 %v1065
    %v1160 = vunpack.c.l.b16 %v1066
    %v1161 = vunpack.c.h.b16 %v1066
    %v1162 = vunpack.c.l.b16 %v1067
    %v1163 = vunpack.c.h.b16 %v1067
    %v1164 = vunpack.c.l.b16 %v1068
    %v1165 = vunpack.c.h.b16 %v1068
    %v1166 = vunpack.c.l.b16 %v1069
    %v1167 = vunpack.c.h.b16 %v1069
    %v1168 = vunpack.c.l.b16 %v1070
    %v1169 = vunpack.c.h.b16 %v1070
    %v1170 = vunpack.c.l.b16 %v1071
    %v1171 = vunpack.c.h.b16 %v1071
    %v1172 = vpack.c.b16 %v1112, %v1108
    %v1173 = vpack.c.b16 %v1113, %v1109
    %v1174 = vpack.c.b16 %v1114, %v1110
    %v1175 = vpack.c.b16 %v1115, %v1111
    %v1176 = vpack.c.b16 %v1120, %v1116
    %v1177 = vpack.c.b16 %v1121, %v1117
    %v1178 = vpack.c.b16 %v1122, %v1118
    %v1179 = vpack.c.b16 %v1123, %v1119
    %v1180 = vpack.c.b16 %v1128, %v1124
    %v1181 = vpack.c.b16 %v1129, %v1125
    %v1182 = vpack.c.b16 %v1130, %v1126
    %v1183 = vpack.c.b16 %v1131, %v1127
    %v1184 = vpack.c.b16 %v1136, %v1132
    %v1185 = vpack.c.b16 %v1137, %v1133
    %v1186 = vpack.c.b16 %v1138, %v1134
    %v1187 = vpack.c.b16 %v1139, %v1135
    %v1188 = vpack.c.b16 %v1144, %v1140
    %v1189 = vpack.c.b16 %v1145, %v1141
    %v1190 = vpack.c.b16 %v1146, %v1142
    %v1191 = vpack.c.b16 %v1147, %v1143
    %v1192 = vpack.c.b16 %v1152, %v1148
    %v1193 = vpack.c.b16 %v1153, %v1149
    %v1194 = vpack.c.b16 %v1154, %v1150
    %v1195 = vpack.c.b16 %v1155, %v1151
    %v1196 = vpack.c.b16 %v1160, %v1156
    %v1197 = vpack.c.b16 %v1161, %v1157
    %v1198 = vpack.c.b16 %v1162, %v1158
    %v1199 = vpack.c.b16 %v1163, %v1159
    %v1200 = vpack.c.b16 %v1168, %v1164
    %v1201 = vpack.c.b16 %v1169, %v1165
    %v1202 = vpack.c.b16 %v1170, %v1166
    %v1203 = vpack.c.b16 %v1171, %v1167
    %1236 = vmatprep.subr.bf16.mxu0 %v1173
    %1237 = vmatpush1.bf16.msra.mxu0 %v1172
    %1238 = vmatprep.subr.bf16.mxu0 %v1177
    %1239 = vmatpush1.bf16.msra.mxu0 %v1176
    %1240 = vmatprep.subr.bf16.mxu0 %v1181
    %1241 = vmatpush1.bf16.msra.mxu0 %v1180
    %1242 = vmatprep.subr.bf16.mxu0 %v1185
    %1243 = vmatpush1.bf16.msra.mxu0 %v1184
    %1244 = vmatprep.subr.bf16.mxu0 %v1189
    %1245 = vmatpush1.bf16.msra.mxu0 %v1188
    %1246 = vmatprep.subr.bf16.mxu0 %v1193
    %1247 = vmatpush1.bf16.msra.mxu0 %v1192
    %1248 = vmatprep.subr.bf16.mxu0 %v1197
    %1249 = vmatpush1.bf16.msra.mxu0 %v1196
    %1250 = vmatprep.subr.bf16.mxu0 %v1201
    %1251 = vmatpush1.bf16.msra.mxu0 %v1200
    %1252 = vmatprep.subr.bf16.mxu0 0
    %1253 = vmatpush1.bf16.msra.mxu0 0
    %1254 = vmatprep.subr.bf16.mxu0 0
    %1255 = vmatpush1.bf16.msra.mxu0 0
    %1256 = vmatprep.subr.bf16.mxu0 0
    %1257 = vmatpush1.bf16.msra.mxu0 0
    %1258 = vmatprep.subr.bf16.mxu0 0
    %1259 = vmatpush1.bf16.msra.mxu0 0
    %1260 = vmatprep.subr.bf16.mxu0 0
    %1261 = vmatpush1.bf16.msra.mxu0 0
    %1262 = vmatprep.subr.bf16.mxu0 0
    %1263 = vmatpush1.bf16.msra.mxu0 0
    %1264 = vmatprep.subr.bf16.mxu0 0
    %1265 = vmatpush1.bf16.msra.mxu0 0
    %1266 = vmatprep.subr.bf16.mxu0 0
    %1267 = vmatpush1.bf16.msra.mxu0 0
    %1268 = vmatprep.mubr.bf16.mxu0 0
    %1269 = vmatmul.mubr.bf16.gmra.mrb[0].mxu0 %v1035
    %v1270 = vpop.f32.mrb[0].mxu0
    %v1271 = vadd.f32 %v1072, %v1270
    %v1272 = vpop.f32.mrb[0].mxu0
    %v1273 = vadd.f32 %v1073, %v1272
    %v1274 = vpop.f32.mrb[0].mxu0
    %v1275 = vpop.f32.mrb[0].mxu0
    %1276 = vdwg.mxu0
    %1277 = vmatprep.subr.bf16.mxu0 %v1175
    %1278 = vmatpush1.bf16.msra.mxu0 %v1174
    %1279 = vmatprep.subr.bf16.mxu0 %v1179
    %1280 = vmatpush1.bf16.msra.mxu0 %v1178
    %1281 = vmatprep.subr.bf16.mxu0 %v1183
    %1282 = vmatpush1.bf16.msra.mxu0 %v1182
    %1283 = vmatprep.subr.bf16.mxu0 %v1187
    %1284 = vmatpush1.bf16.msra.mxu0 %v1186
    %1285 = vmatprep.subr.bf16.mxu0 %v1191
    %1286 = vmatpush1.bf16.msra.mxu0 %v1190
    %1287 = vmatprep.subr.bf16.mxu0 %v1195
    %1288 = vmatpush1.bf16.msra.mxu0 %v1194
    %1289 = vmatprep.subr.bf16.mxu0 %v1199
    %1290 = vmatpush1.bf16.msra.mxu0 %v1198
    %1291 = vmatprep.subr.bf16.mxu0 %v1203
    %1292 = vmatpush1.bf16.msra.mxu0 %v1202
    %1293 = vmatprep.subr.bf16.mxu0 0
    %1294 = vmatpush1.bf16.msra.mxu0 0
    %1295 = vmatprep.subr.bf16.mxu0 0
    %1296 = vmatpush1.bf16.msra.mxu0 0
    %1297 = vmatprep.subr.bf16.mxu0 0
    %1298 = vmatpush1.bf16.msra.mxu0 0
    %1299 = vmatprep.subr.bf16.mxu0 0
    %1300 = vmatpush1.bf16.msra.mxu0 0
    %1301 = vmatprep.subr.bf16.mxu0 0
    %1302 = vmatpush1.bf16.msra.mxu0 0
    %1303 = vmatprep.subr.bf16.mxu0 0
    %1304 = vmatpush1.bf16.msra.mxu0 0
    %1305 = vmatprep.subr.bf16.mxu0 0
    %1306 = vmatpush1.bf16.msra.mxu0 0
    %1307 = vmatprep.subr.bf16.mxu0 0
    %1308 = vmatpush1.bf16.msra.mxu0 0
    %1309 = vmatprep.mubr.bf16.mxu0 0
    %1310 = vmatmul.mubr.bf16.gmra.mrb[0].mxu0 %v1035
    %v1311 = vpop.f32.mrb[0].mxu0
    %v1312 = vadd.f32 %v1074, %v1311
    %v1313 = vpop.f32.mrb[0].mxu0
    %v1314 = vadd.f32 %v1075, %v1313
    %v1315 = vpop.f32.mrb[0].mxu0
    %v1316 = vpop.f32.mrb[0].mxu0
    %1317 = vdwg.mxu0
    %v1318 = vxor.u32 %v1271, 2147483648
    %v1319 = vmul.f32 %v1318, 1.442695
    %v1320 = vpow.pop %v1319
    %v1321 = vadd.f32 %v1320, 1.0
    %v1322 = vrcp.pop %v1321
    %v1323 = vmul.f32 1.0, %v1322
    %v1324 = vxor.u32 %v1273, 2147483648
    %v1325 = vmul.f32 %v1324, 1.442695
    %v1326 = vpow.pop %v1325
    %v1327 = vadd.f32 %v1326, 1.0
    %v1328 = vrcp.pop %v1327
    %v1329 = vmul.f32 1.0, %v1328
    %v1330 = vtanh.pop %v1312
    %v1331 = vxor.u32 %v1314, 2147483648
    %v1332 = vmul.f32 %v1331, 1.442695
    %v1333 = vpow.pop %v1332
    %v1334 = vadd.f32 %v1333, 1.0
    %v1335 = vrcp.pop %v1334
    %v1336 = vmul.f32 1.0, %v1335
    %v1337 = vmul.f32 %v1329, %v1032
    %v1338 = vmul.f32 %v1323, %v1330
    %v1339 = vadd.f32 %v1337, %v1338
    %v1340 = vtanh.pop %v1339
    %v1341 = vmul.f32 %v1336, %v1340
    %v1342 = vpack.c.bf16 %v1341, %v1341
    %1343 = vst [vmem:[#allocation3 + $0x8] sm:$0xf] %v1342
    %v1344 = vld [vmem:[#allocation4] sm:$0xff]
    %v1345 = vld [vmem:[#allocation4 + $0x8] sm:$0xff]
    %v1346 = vld [vmem:[#allocation4 + $0x10] sm:$0xff]
    %v1347 = vld [vmem:[#allocation4 + $0x18] sm:$0xff]
    %v1348 = vld [vmem:[#allocation4 + $0x20] sm:$0xff]
    %v1349 = vld [vmem:[#allocation4 + $0x28] sm:$0xff]
    %v1350 = vld [vmem:[#allocation4 + $0x30] sm:$0xff]
    %v1351 = vld [vmem:[#allocation4 + $0x38] sm:$0xff]
    %v1352 = vld [vmem:[#allocation4 + $0x40] sm:$0xff]
    %v1353 = vld [vmem:[#allocation4 + $0x48] sm:$0xff]
    %v1354 = vld [vmem:[#allocation4 + $0x50] sm:$0xff]
    %v1355 = vld [vmem:[#allocation4 + $0x58] sm:$0xff]
    %v1356 = vld [vmem:[#allocation4 + $0x60] sm:$0xff]
    %v1357 = vld [vmem:[#allocation4 + $0x68] sm:$0xff]
    %v1358 = vld [vmem:[#allocation4 + $0x70] sm:$0xff]
    %v1359 = vld [vmem:[#allocation4 + $0x78] sm:$0xff]
    %v1360 = vld [vmem:[#allocation4 + $0x80] sm:$0xff]
    %v1361 = vld [vmem:[#allocation4 + $0x88] sm:$0xff]
    %v1362 = vld [vmem:[#allocation4 + $0x90] sm:$0xff]
    %v1363 = vld [vmem:[#allocation4 + $0x98] sm:$0xff]
    %v1364 = vld [vmem:[#allocation4 + $0xa0] sm:$0xff]
    %v1365 = vld [vmem:[#allocation4 + $0xa8] sm:$0xff]
    %v1366 = vld [vmem:[#allocation4 + $0xb0] sm:$0xff]
    %v1367 = vld [vmem:[#allocation4 + $0xb8] sm:$0xff]
    %v1368 = vld [vmem:[#allocation4 + $0xc0] sm:$0xff]
    %v1369 = vld [vmem:[#allocation4 + $0xc8] sm:$0xff]
    %v1370 = vld [vmem:[#allocation4 + $0xd0] sm:$0xff]
    %v1371 = vld [vmem:[#allocation4 + $0xd8] sm:$0xff]
    %v1372 = vld [vmem:[#allocation4 + $0xe0] sm:$0xff]
    %v1373 = vld [vmem:[#allocation4 + $0xe8] sm:$0xff]
    %v1374 = vld [vmem:[#allocation4 + $0xf0] sm:$0xff]
    %v1375 = vld [vmem:[#allocation4 + $0xf8] sm:$0xff]
    %v1376 = vld [vmem:[#allocation2 + $0x80] sm:$0xff]
    %v1377 = vld [vmem:[#allocation2 + $0x88] sm:$0xff]
    %v1378 = vld [vmem:[#allocation2 + $0x90] sm:$0xff]
    %v1379 = vld [vmem:[#allocation2 + $0x98] sm:$0xff]
    %v1412 = vunpack.c.l.b16 %v1344
    %v1413 = vunpack.c.h.b16 %v1344
    %v1414 = vunpack.c.l.b16 %v1345
    %v1415 = vunpack.c.h.b16 %v1345
    %v1416 = vunpack.c.l.b16 %v1346
    %v1417 = vunpack.c.h.b16 %v1346
    %v1418 = vunpack.c.l.b16 %v1347
    %v1419 = vunpack.c.h.b16 %v1347
    %v1420 = vunpack.c.l.b16 %v1348
    %v1421 = vunpack.c.h.b16 %v1348
    %v1422 = vunpack.c.l.b16 %v1349
    %v1423 = vunpack.c.h.b16 %v1349
    %v1424 = vunpack.c.l.b16 %v1350
    %v1425 = vunpack.c.h.b16 %v1350
    %v1426 = vunpack.c.l.b16 %v1351
    %v1427 = vunpack.c.h.b16 %v1351
    %v1428 = vunpack.c.l.b16 %v1352
    %v1429 = vunpack.c.h.b16 %v1352
    %v1430 = vunpack.c.l.b16 %v1353
    %v1431 = vunpack.c.h.b16 %v1353
    %v1432 = vunpack.c.l.b16 %v1354
    %v1433 = vunpack.c.h.b16 %v1354
    %v1434 = vunpack.c.l.b16 %v1355
    %v1435 = vunpack.c.h.b16 %v1355
    %v1436 = vunpack.c.l.b16 %v1356
    %v1437 = vunpack.c.h.b16 %v1356
    %v1438 = vunpack.c.l.b16 %v1357
    %v1439 = vunpack.c.h.b16 %v1357
    %v1440 = vunpack.c.l.b16 %v1358
    %v1441 = vunpack.c.h.b16 %v1358
    %v1442 = vunpack.c.l.b16 %v1359
    %v1443 = vunpack.c.h.b16 %v1359
    %v1444 = vunpack.c.l.b16 %v1360
    %v1445 = vunpack.c.h.b16 %v1360
    %v1446 = vunpack.c.l.b16 %v1361
    %v1447 = vunpack.c.h.b16 %v1361
    %v1448 = vunpack.c.l.b16 %v1362
    %v1449 = vunpack.c.h.b16 %v1362
    %v1450 = vunpack.c.l.b16 %v1363
    %v1451 = vunpack.c.h.b16 %v1363
    %v1452 = vunpack.c.l.b16 %v1364
    %v1453 = vunpack.c.h.b16 %v1364
    %v1454 = vunpack.c.l.b16 %v1365
    %v1455 = vunpack.c.h.b16 %v1365
    %v1456 = vunpack.c.l.b16 %v1366
    %v1457 = vunpack.c.h.b16 %v1366
    %v1458 = vunpack.c.l.b16 %v1367
    %v1459 = vunpack.c.h.b16 %v1367
    %v1460 = vunpack.c.l.b16 %v1368
    %v1461 = vunpack.c.h.b16 %v1368
    %v1462 = vunpack.c.l.b16 %v1369
    %v1463 = vunpack.c.h.b16 %v1369
    %v1464 = vunpack.c.l.b16 %v1370
    %v1465 = vunpack.c.h.b16 %v1370
    %v1466 = vunpack.c.l.b16 %v1371
    %v1467 = vunpack.c.h.b16 %v1371
    %v1468 = vunpack.c.l.b16 %v1372
    %v1469 = vunpack.c.h.b16 %v1372
    %v1470 = vunpack.c.l.b16 %v1373
    %v1471 = vunpack.c.h.b16 %v1373
    %v1472 = vunpack.c.l.b16 %v1374
    %v1473 = vunpack.c.h.b16 %v1374
    %v1474 = vunpack.c.l.b16 %v1375
    %v1475 = vunpack.c.h.b16 %v1375
    %v1476 = vpack.c.b16 %v1416, %v1412
    %v1477 = vpack.c.b16 %v1417, %v1413
    %v1478 = vpack.c.b16 %v1418, %v1414
    %v1479 = vpack.c.b16 %v1419, %v1415
    %v1480 = vpack.c.b16 %v1424, %v1420
    %v1481 = vpack.c.b16 %v1425, %v1421
    %v1482 = vpack.c.b16 %v1426, %v1422
    %v1483 = vpack.c.b16 %v1427, %v1423
    %v1484 = vpack.c.b16 %v1432, %v1428
    %v1485 = vpack.c.b16 %v1433, %v1429
    %v1486 = vpack.c.b16 %v1434, %v1430
    %v1487 = vpack.c.b16 %v1435, %v1431
    %v1488 = vpack.c.b16 %v1440, %v1436
    %v1489 = vpack.c.b16 %v1441, %v1437
    %v1490 = vpack.c.b16 %v1442, %v1438
    %v1491 = vpack.c.b16 %v1443, %v1439
    %v1492 = vpack.c.b16 %v1448, %v1444
    %v1493 = vpack.c.b16 %v1449, %v1445
    %v1494 = vpack.c.b16 %v1450, %v1446
    %v1495 = vpack.c.b16 %v1451, %v1447
    %v1496 = vpack.c.b16 %v1456, %v1452
    %v1497 = vpack.c.b16 %v1457, %v1453
    %v1498 = vpack.c.b16 %v1458, %v1454
    %v1499 = vpack.c.b16 %v1459, %v1455
    %v1500 = vpack.c.b16 %v1464, %v1460
    %v1501 = vpack.c.b16 %v1465, %v1461
    %v1502 = vpack.c.b16 %v1466, %v1462
    %v1503 = vpack.c.b16 %v1467, %v1463
    %v1504 = vpack.c.b16 %v1472, %v1468
    %v1505 = vpack.c.b16 %v1473, %v1469
    %v1506 = vpack.c.b16 %v1474, %v1470
    %v1507 = vpack.c.b16 %v1475, %v1471
    %1540 = vmatprep.subr.bf16.mxu0 %v1477
    %1541 = vmatpush1.bf16.msra.mxu0 %v1476
    %1542 = vmatprep.subr.bf16.mxu0 %v1481
    %1543 = vmatpush1.bf16.msra.mxu0 %v1480
    %1544 = vmatprep.subr.bf16.mxu0 %v1485
    %1545 = vmatpush1.bf16.msra.mxu0 %v1484
    %1546 = vmatprep.subr.bf16.mxu0 %v1489
    %1547 = vmatpush1.bf16.msra.mxu0 %v1488
    %1548 = vmatprep.subr.bf16.mxu0 %v1493
    %1549 = vmatpush1.bf16.msra.mxu0 %v1492
    %1550 = vmatprep.subr.bf16.mxu0 %v1497
    %1551 = vmatpush1.bf16.msra.mxu0 %v1496
    %1552 = vmatprep.subr.bf16.mxu0 %v1501
    %1553 = vmatpush1.bf16.msra.mxu0 %v1500
    %1554 = vmatprep.subr.bf16.mxu0 %v1505
    %1555 = vmatpush1.bf16.msra.mxu0 %v1504
    %1556 = vmatprep.subr.bf16.mxu0 0
    %1557 = vmatpush1.bf16.msra.mxu0 0
    %1558 = vmatprep.subr.bf16.mxu0 0
    %1559 = vmatpush1.bf16.msra.mxu0 0
    %1560 = vmatprep.subr.bf16.mxu0 0
    %1561 = vmatpush1.bf16.msra.mxu0 0
    %1562 = vmatprep.subr.bf16.mxu0 0
    %1563 = vmatpush1.bf16.msra.mxu0 0
    %1564 = vmatprep.subr.bf16.mxu0 0
    %1565 = vmatpush1.bf16.msra.mxu0 0
    %1566 = vmatprep.subr.bf16.mxu0 0
    %1567 = vmatpush1.bf16.msra.mxu0 0
    %1568 = vmatprep.subr.bf16.mxu0 0
    %1569 = vmatpush1.bf16.msra.mxu0 0
    %1570 = vmatprep.subr.bf16.mxu0 0
    %1571 = vmatpush1.bf16.msra.mxu0 0
    %1572 = vmatprep.mubr.bf16.mxu0 0
    %1573 = vmatmul.mubr.bf16.gmra.mrb[0].mxu0 %v1342
    %v1574 = vpop.f32.mrb[0].mxu0
    %v1575 = vadd.f32 %v1376, %v1574
    %v1576 = vpop.f32.mrb[0].mxu0
    %v1577 = vadd.f32 %v1377, %v1576
    %v1578 = vpop.f32.mrb[0].mxu0
    %v1579 = vpop.f32.mrb[0].mxu0
    %1580 = vdwg.mxu0
    %1581 = vmatprep.subr.bf16.mxu0 %v1479
    %1582 = vmatpush1.bf16.msra.mxu0 %v1478
    %1583 = vmatprep.subr.bf16.mxu0 %v1483
    %1584 = vmatpush1.bf16.msra.mxu0 %v1482
    %1585 = vmatprep.subr.bf16.mxu0 %v1487
    %1586 = vmatpush1.bf16.msra.mxu0 %v1486
    %1587 = vmatprep.subr.bf16.mxu0 %v1491
    %1588 = vmatpush1.bf16.msra.mxu0 %v1490
    %1589 = vmatprep.subr.bf16.mxu0 %v1495
    %1590 = vmatpush1.bf16.msra.mxu0 %v1494
    %1591 = vmatprep.subr.bf16.mxu0 %v1499
    %1592 = vmatpush1.bf16.msra.mxu0 %v1498
    %1593 = vmatprep.subr.bf16.mxu0 %v1503
    %1594 = vmatpush1.bf16.msra.mxu0 %v1502
    %1595 = vmatprep.subr.bf16.mxu0 %v1507
    %1596 = vmatpush1.bf16.msra.mxu0 %v1506
    %1597 = vmatprep.subr.bf16.mxu0 0
    %1598 = vmatpush1.bf16.msra.mxu0 0
    %1599 = vmatprep.subr.bf16.mxu0 0
    %1600 = vmatpush1.bf16.msra.mxu0 0
    %1601 = vmatprep.subr.bf16.mxu0 0
    %1602 = vmatpush1.bf16.msra.mxu0 0
    %1603 = vmatprep.subr.bf16.mxu0 0
    %1604 = vmatpush1.bf16.msra.mxu0 0
    %1605 = vmatprep.subr.bf16.mxu0 0
    %1606 = vmatpush1.bf16.msra.mxu0 0
    %1607 = vmatprep.subr.bf16.mxu0 0
    %1608 = vmatpush1.bf16.msra.mxu0 0
    %1609 = vmatprep.subr.bf16.mxu0 0
    %1610 = vmatpush1.bf16.msra.mxu0 0
    %1611 = vmatprep.subr.bf16.mxu0 0
    %1612 = vmatpush1.bf16.msra.mxu0 0
    %1613 = vmatprep.mubr.bf16.mxu0 0
    %1614 = vmatmul.mubr.bf16.gmra.mrb[0].mxu0 %v1342
    %v1615 = vpop.f32.mrb[0].mxu0
    %v1616 = vadd.f32 %v1378, %v1615
    %v1617 = vpop.f32.mrb[0].mxu0
    %v1618 = vadd.f32 %v1379, %v1617
    %v1619 = vpop.f32.mrb[0].mxu0
    %v1620 = vpop.f32.mrb[0].mxu0
    %1621 = vdwg.mxu0
    %v1622 = vxor.u32 %v1575, 2147483648
    %v1623 = vmul.f32 %v1622, 1.442695
    %v1624 = vpow.pop %v1623
    %v1625 = vadd.f32 %v1624, 1.0
    %v1626 = vrcp.pop %v1625
    %v1627 = vmul.f32 1.0, %v1626
    %v1628 = vxor.u32 %v1577, 2147483648
    %v1629 = vmul.f32 %v1628, 1.442695
    %v1630 = vpow.pop %v1629
    %v1631 = vadd.f32 %v1630, 1.0
    %v1632 = vrcp.pop %v1631
    %v1633 = vmul.f32 1.0, %v1632
    %v1634 = vtanh.pop %v1616
    %v1635 = vxor.u32 %v1618, 2147483648
    %v1636 = vmul.f32 %v1635, 1.442695
    %v1637 = vpow.pop %v1636
    %v1638 = vadd.f32 %v1637, 1.0
    %v1639 = vrcp.pop %v1638
    %v1640 = vmul.f32 1.0, %v1639
    %v1641 = vmul.f32 %v1633, %v1339
    %v1642 = vmul.f32 %v1627, %v1634
    %v1643 = vadd.f32 %v1641, %v1642
    %v1644 = vtanh.pop %v1643
    %v1645 = vmul.f32 %v1640, %v1644
    %v1646 = vpack.c.bf16 %v1645, %v1645
    %v1648 = vrot.slane %v1646, 4
    %1650 = vst [vmem:[#allocation3 + $0x8] sm:$0xf0] %v1648
    %v1651 = vld [vmem:[#allocation4] sm:$0xff]
    %v1652 = vld [vmem:[#allocation4 + $0x8] sm:$0xff]
    %v1653 = vld [vmem:[#allocation4 + $0x10] sm:$0xff]
    %v1654 = vld [vmem:[#allocation4 + $0x18] sm:$0xff]
    %v1655 = vld [vmem:[#allocation4 + $0x20] sm:$0xff]
    %v1656 = vld [vmem:[#allocation4 + $0x28] sm:$0xff]
    %v1657 = vld [vmem:[#allocation4 + $0x30] sm:$0xff]
    %v1658 = vld [vmem:[#allocation4 + $0x38] sm:$0xff]
    %v1659 = vld [vmem:[#allocation4 + $0x40] sm:$0xff]
    %v1660 = vld [vmem:[#allocation4 + $0x48] sm:$0xff]
    %v1661 = vld [vmem:[#allocation4 + $0x50] sm:$0xff]
    %v1662 = vld [vmem:[#allocation4 + $0x58] sm:$0xff]
    %v1663 = vld [vmem:[#allocation4 + $0x60] sm:$0xff]
    %v1664 = vld [vmem:[#allocation4 + $0x68] sm:$0xff]
    %v1665 = vld [vmem:[#allocation4 + $0x70] sm:$0xff]
    %v1666 = vld [vmem:[#allocation4 + $0x78] sm:$0xff]
    %v1667 = vld [vmem:[#allocation4 + $0x80] sm:$0xff]
    %v1668 = vld [vmem:[#allocation4 + $0x88] sm:$0xff]
    %v1669 = vld [vmem:[#allocation4 + $0x90] sm:$0xff]
    %v1670 = vld [vmem:[#allocation4 + $0x98] sm:$0xff]
    %v1671 = vld [vmem:[#allocation4 + $0xa0] sm:$0xff]
    %v1672 = vld [vmem:[#allocation4 + $0xa8] sm:$0xff]
    %v1673 = vld [vmem:[#allocation4 + $0xb0] sm:$0xff]
    %v1674 = vld [vmem:[#allocation4 + $0xb8] sm:$0xff]
    %v1675 = vld [vmem:[#allocation4 + $0xc0] sm:$0xff]
    %v1676 = vld [vmem:[#allocation4 + $0xc8] sm:$0xff]
    %v1677 = vld [vmem:[#allocation4 + $0xd0] sm:$0xff]
    %v1678 = vld [vmem:[#allocation4 + $0xd8] sm:$0xff]
    %v1679 = vld [vmem:[#allocation4 + $0xe0] sm:$0xff]
    %v1680 = vld [vmem:[#allocation4 + $0xe8] sm:$0xff]
    %v1681 = vld [vmem:[#allocation4 + $0xf0] sm:$0xff]
    %v1682 = vld [vmem:[#allocation4 + $0xf8] sm:$0xff]
    %v1683 = vld [vmem:[#allocation2 + $0xa0] sm:$0xff]
    %v1684 = vld [vmem:[#allocation2 + $0xa8] sm:$0xff]
    %v1685 = vld [vmem:[#allocation2 + $0xb0] sm:$0xff]
    %v1686 = vld [vmem:[#allocation2 + $0xb8] sm:$0xff]
    %v1719 = vunpack.c.l.b16 %v1651
    %v1720 = vunpack.c.h.b16 %v1651
    %v1721 = vunpack.c.l.b16 %v1652
    %v1722 = vunpack.c.h.b16 %v1652
    %v1723 = vunpack.c.l.b16 %v1653
    %v1724 = vunpack.c.h.b16 %v1653
    %v1725 = vunpack.c.l.b16 %v1654
    %v1726 = vunpack.c.h.b16 %v1654
    %v1727 = vunpack.c.l.b16 %v1655
    %v1728 = vunpack.c.h.b16 %v1655
    %v1729 = vunpack.c.l.b16 %v1656
    %v1730 = vunpack.c.h.b16 %v1656
    %v1731 = vunpack.c.l.b16 %v1657
    %v1732 = vunpack.c.h.b16 %v1657
    %v1733 = vunpack.c.l.b16 %v1658
    %v1734 = vunpack.c.h.b16 %v1658
    %v1735 = vunpack.c.l.b16 %v1659
    %v1736 = vunpack.c.h.b16 %v1659
    %v1737 = vunpack.c.l.b16 %v1660
    %v1738 = vunpack.c.h.b16 %v1660
    %v1739 = vunpack.c.l.b16 %v1661
    %v1740 = vunpack.c.h.b16 %v1661
    %v1741 = vunpack.c.l.b16 %v1662
    %v1742 = vunpack.c.h.b16 %v1662
    %v1743 = vunpack.c.l.b16 %v1663
    %v1744 = vunpack.c.h.b16 %v1663
    %v1745 = vunpack.c.l.b16 %v1664
    %v1746 = vunpack.c.h.b16 %v1664
    %v1747 = vunpack.c.l.b16 %v1665
    %v1748 = vunpack.c.h.b16 %v1665
    %v1749 = vunpack.c.l.b16 %v1666
    %v1750 = vunpack.c.h.b16 %v1666
    %v1751 = vunpack.c.l.b16 %v1667
    %v1752 = vunpack.c.h.b16 %v1667
    %v1753 = vunpack.c.l.b16 %v1668
    %v1754 = vunpack.c.h.b16 %v1668
    %v1755 = vunpack.c.l.b16 %v1669
    %v1756 = vunpack.c.h.b16 %v1669
    %v1757 = vunpack.c.l.b16 %v1670
    %v1758 = vunpack.c.h.b16 %v1670
    %v1759 = vunpack.c.l.b16 %v1671
    %v1760 = vunpack.c.h.b16 %v1671
    %v1761 = vunpack.c.l.b16 %v1672
    %v1762 = vunpack.c.h.b16 %v1672
    %v1763 = vunpack.c.l.b16 %v1673
    %v1764 = vunpack.c.h.b16 %v1673
    %v1765 = vunpack.c.l.b16 %v1674
    %v1766 = vunpack.c.h.b16 %v1674
    %v1767 = vunpack.c.l.b16 %v1675
    %v1768 = vunpack.c.h.b16 %v1675
    %v1769 = vunpack.c.l.b16 %v1676
    %v1770 = vunpack.c.h.b16 %v1676
    %v1771 = vunpack.c.l.b16 %v1677
    %v1772 = vunpack.c.h.b16 %v1677
    %v1773 = vunpack.c.l.b16 %v1678
    %v1774 = vunpack.c.h.b16 %v1678
    %v1775 = vunpack.c.l.b16 %v1679
    %v1776 = vunpack.c.h.b16 %v1679
    %v1777 = vunpack.c.l.b16 %v1680
    %v1778 = vunpack.c.h.b16 %v1680
    %v1779 = vunpack.c.l.b16 %v1681
    %v1780 = vunpack.c.h.b16 %v1681
    %v1781 = vunpack.c.l.b16 %v1682
    %v1782 = vunpack.c.h.b16 %v1682
    %v1783 = vpack.c.b16 %v1723, %v1719
    %v1784 = vpack.c.b16 %v1724, %v1720
    %v1785 = vpack.c.b16 %v1725, %v1721
    %v1786 = vpack.c.b16 %v1726, %v1722
    %v1787 = vpack.c.b16 %v1731, %v1727
    %v1788 = vpack.c.b16 %v1732, %v1728
    %v1789 = vpack.c.b16 %v1733, %v1729
    %v1790 = vpack.c.b16 %v1734, %v1730
    %v1791 = vpack.c.b16 %v1739, %v1735
    %v1792 = vpack.c.b16 %v1740, %v1736
    %v1793 = vpack.c.b16 %v1741, %v1737
    %v1794 = vpack.c.b16 %v1742, %v1738
    %v1795 = vpack.c.b16 %v1747, %v1743
    %v1796 = vpack.c.b16 %v1748, %v1744
    %v1797 = vpack.c.b16 %v1749, %v1745
    %v1798 = vpack.c.b16 %v1750, %v1746
    %v1799 = vpack.c.b16 %v1755, %v1751
    %v1800 = vpack.c.b16 %v1756, %v1752
    %v1801 = vpack.c.b16 %v1757, %v1753
    %v1802 = vpack.c.b16 %v1758, %v1754
    %v1803 = vpack.c.b16 %v1763, %v1759
    %v1804 = vpack.c.b16 %v1764, %v1760
    %v1805 = vpack.c.b16 %v1765, %v1761
    %v1806 = vpack.c.b16 %v1766, %v1762
    %v1807 = vpack.c.b16 %v1771, %v1767
    %v1808 = vpack.c.b16 %v1772, %v1768
    %v1809 = vpack.c.b16 %v1773, %v1769
    %v1810 = vpack.c.b16 %v1774, %v1770
    %v1811 = vpack.c.b16 %v1779, %v1775
    %v1812 = vpack.c.b16 %v1780, %v1776
    %v1813 = vpack.c.b16 %v1781, %v1777
    %v1814 = vpack.c.b16 %v1782, %v1778
    %1847 = vmatprep.subr.bf16.mxu0 %v1784
    %1848 = vmatpush1.bf16.msra.mxu0 %v1783
    %1849 = vmatprep.subr.bf16.mxu0 %v1788
    %1850 = vmatpush1.bf16.msra.mxu0 %v1787
    %1851 = vmatprep.subr.bf16.mxu0 %v1792
    %1852 = vmatpush1.bf16.msra.mxu0 %v1791
    %1853 = vmatprep.subr.bf16.mxu0 %v1796
    %1854 = vmatpush1.bf16.msra.mxu0 %v1795
    %1855 = vmatprep.subr.bf16.mxu0 %v1800
    %1856 = vmatpush1.bf16.msra.mxu0 %v1799
    %1857 = vmatprep.subr.bf16.mxu0 %v1804
    %1858 = vmatpush1.bf16.msra.mxu0 %v1803
    %1859 = vmatprep.subr.bf16.mxu0 %v1808
    %1860 = vmatpush1.bf16.msra.mxu0 %v1807
    %1861 = vmatprep.subr.bf16.mxu0 %v1812
    %1862 = vmatpush1.bf16.msra.mxu0 %v1811
    %1863 = vmatprep.subr.bf16.mxu0 0
    %1864 = vmatpush1.bf16.msra.mxu0 0
    %1865 = vmatprep.subr.bf16.mxu0 0
    %1866 = vmatpush1.bf16.msra.mxu0 0
    %1867 = vmatprep.subr.bf16.mxu0 0
    %1868 = vmatpush1.bf16.msra.mxu0 0
    %1869 = vmatprep.subr.bf16.mxu0 0
    %1870 = vmatpush1.bf16.msra.mxu0 0
    %1871 = vmatprep.subr.bf16.mxu0 0
    %1872 = vmatpush1.bf16.msra.mxu0 0
    %1873 = vmatprep.subr.bf16.mxu0 0
    %1874 = vmatpush1.bf16.msra.mxu0 0
    %1875 = vmatprep.subr.bf16.mxu0 0
    %1876 = vmatpush1.bf16.msra.mxu0 0
    %1877 = vmatprep.subr.bf16.mxu0 0
    %1878 = vmatpush1.bf16.msra.mxu0 0
    %1879 = vmatprep.mubr.bf16.mxu0 0
    %1880 = vmatmul.mubr.bf16.gmra.mrb[0].mxu0 %v1646
    %v1881 = vpop.f32.mrb[0].mxu0
    %v1882 = vadd.f32 %v1683, %v1881
    %v1883 = vpop.f32.mrb[0].mxu0
    %v1884 = vadd.f32 %v1684, %v1883
    %v1885 = vpop.f32.mrb[0].mxu0
    %v1886 = vpop.f32.mrb[0].mxu0
    %1887 = vdwg.mxu0
    %1888 = vmatprep.subr.bf16.mxu0 %v1786
    %1889 = vmatpush1.bf16.msra.mxu0 %v1785
    %1890 = vmatprep.subr.bf16.mxu0 %v1790
    %1891 = vmatpush1.bf16.msra.mxu0 %v1789
    %1892 = vmatprep.subr.bf16.mxu0 %v1794
    %1893 = vmatpush1.bf16.msra.mxu0 %v1793
    %1894 = vmatprep.subr.bf16.mxu0 %v1798
    %1895 = vmatpush1.bf16.msra.mxu0 %v1797
    %1896 = vmatprep.subr.bf16.mxu0 %v1802
    %1897 = vmatpush1.bf16.msra.mxu0 %v1801
    %1898 = vmatprep.subr.bf16.mxu0 %v1806
    %1899 = vmatpush1.bf16.msra.mxu0 %v1805
    %1900 = vmatprep.subr.bf16.mxu0 %v1810
    %1901 = vmatpush1.bf16.msra.mxu0 %v1809
    %1902 = vmatprep.subr.bf16.mxu0 %v1814
    %1903 = vmatpush1.bf16.msra.mxu0 %v1813
    %1904 = vmatprep.subr.bf16.mxu0 0
    %1905 = vmatpush1.bf16.msra.mxu0 0
    %1906 = vmatprep.subr.bf16.mxu0 0
    %1907 = vmatpush1.bf16.msra.mxu0 0
    %1908 = vmatprep.subr.bf16.mxu0 0
    %1909 = vmatpush1.bf16.msra.mxu0 0
    %1910 = vmatprep.subr.bf16.mxu0 0
    %1911 = vmatpush1.bf16.msra.mxu0 0
    %1912 = vmatprep.subr.bf16.mxu0 0
    %1913 = vmatpush1.bf16.msra.mxu0 0
    %1914 = vmatprep.subr.bf16.mxu0 0
    %1915 = vmatpush1.bf16.msra.mxu0 0
    %1916 = vmatprep.subr.bf16.mxu0 0
    %1917 = vmatpush1.bf16.msra.mxu0 0
    %1918 = vmatprep.subr.bf16.mxu0 0
    %1919 = vmatpush1.bf16.msra.mxu0 0
    %1920 = vmatprep.mubr.bf16.mxu0 0
    %1921 = vmatmul.mubr.bf16.gmra.mrb[0].mxu0 %v1646
    %v1922 = vpop.f32.mrb[0].mxu0
    %v1923 = vadd.f32 %v1685, %v1922
    %v1924 = vpop.f32.mrb[0].mxu0
    %v1925 = vadd.f32 %v1686, %v1924
    %v1926 = vpop.f32.mrb[0].mxu0
    %v1927 = vpop.f32.mrb[0].mxu0
    %1928 = vdwg.mxu0
    %v1929 = vxor.u32 %v1882, 2147483648
    %v1930 = vmul.f32 %v1929, 1.442695
    %v1931 = vpow.pop %v1930
    %v1932 = vadd.f32 %v1931, 1.0
    %v1933 = vrcp.pop %v1932
    %v1934 = vmul.f32 1.0, %v1933
    %v1935 = vxor.u32 %v1884, 2147483648
    %v1936 = vmul.f32 %v1935, 1.442695
    %v1937 = vpow.pop %v1936
    %v1938 = vadd.f32 %v1937, 1.0
    %v1939 = vrcp.pop %v1938
    %v1940 = vmul.f32 1.0, %v1939
    %v1941 = vtanh.pop %v1923
    %v1942 = vxor.u32 %v1925, 2147483648
    %v1943 = vmul.f32 %v1942, 1.442695
    %v1944 = vpow.pop %v1943
    %v1945 = vadd.f32 %v1944, 1.0
    %v1946 = vrcp.pop %v1945
    %v1947 = vmul.f32 1.0, %v1946
    %v1948 = vmul.f32 %v1940, %v1643
    %v1949 = vmul.f32 %v1934, %v1941
    %v1950 = vadd.f32 %v1948, %v1949
    %v1951 = vtanh.pop %v1950
    %v1952 = vmul.f32 %v1947, %v1951
    %v1953 = vpack.c.bf16 %v1952, %v1952
    %1954 = vst [vmem:[#allocation3 + $0x10] sm:$0xf] %v1953
    %v1955 = vld [vmem:[#allocation4] sm:$0xff]
    %v1956 = vld [vmem:[#allocation4 + $0x8] sm:$0xff]
    %v1957 = vld [vmem:[#allocation4 + $0x10] sm:$0xff]
    %v1958 = vld [vmem:[#allocation4 + $0x18] sm:$0xff]
    %v1959 = vld [vmem:[#allocation4 + $0x20] sm:$0xff]
    %v1960 = vld [vmem:[#allocation4 + $0x28] sm:$0xff]
    %v1961 = vld [vmem:[#allocation4 + $0x30] sm:$0xff]
    %v1962 = vld [vmem:[#allocation4 + $0x38] sm:$0xff]
    %v1963 = vld [vmem:[#allocation4 + $0x40] sm:$0xff]
    %v1964 = vld [vmem:[#allocation4 + $0x48] sm:$0xff]
    %v1965 = vld [vmem:[#allocation4 + $0x50] sm:$0xff]
    %v1966 = vld [vmem:[#allocation4 + $0x58] sm:$0xff]
    %v1967 = vld [vmem:[#allocation4 + $0x60] sm:$0xff]
    %v1968 = vld [vmem:[#allocation4 + $0x68] sm:$0xff]
    %v1969 = vld [vmem:[#allocation4 + $0x70] sm:$0xff]
    %v1970 = vld [vmem:[#allocation4 + $0x78] sm:$0xff]
    %v1971 = vld [vmem:[#allocation4 + $0x80] sm:$0xff]
    %v1972 = vld [vmem:[#allocation4 + $0x88] sm:$0xff]
    %v1973 = vld [vmem:[#allocation4 + $0x90] sm:$0xff]
    %v1974 = vld [vmem:[#allocation4 + $0x98] sm:$0xff]
    %v1975 = vld [vmem:[#allocation4 + $0xa0] sm:$0xff]
    %v1976 = vld [vmem:[#allocation4 + $0xa8] sm:$0xff]
    %v1977 = vld [vmem:[#allocation4 + $0xb0] sm:$0xff]
    %v1978 = vld [vmem:[#allocation4 + $0xb8] sm:$0xff]
    %v1979 = vld [vmem:[#allocation4 + $0xc0] sm:$0xff]
    %v1980 = vld [vmem:[#allocation4 + $0xc8] sm:$0xff]
    %v1981 = vld [vmem:[#allocation4 + $0xd0] sm:$0xff]
    %v1982 = vld [vmem:[#allocation4 + $0xd8] sm:$0xff]
    %v1983 = vld [vmem:[#allocation4 + $0xe0] sm:$0xff]
    %v1984 = vld [vmem:[#allocation4 + $0xe8] sm:$0xff]
    %v1985 = vld [vmem:[#allocation4 + $0xf0] sm:$0xff]
    %v1986 = vld [vmem:[#allocation4 + $0xf8] sm:$0xff]
    %v1987 = vld [vmem:[#allocation2 + $0xc0] sm:$0xff]
    %v1988 = vld [vmem:[#allocation2 + $0xc8] sm:$0xff]
    %v1989 = vld [vmem:[#allocation2 + $0xd0] sm:$0xff]
    %v1990 = vld [vmem:[#allocation2 + $0xd8] sm:$0xff]
    %v2023 = vunpack.c.l.b16 %v1955
    %v2024 = vunpack.c.h.b16 %v1955
    %v2025 = vunpack.c.l.b16 %v1956
    %v2026 = vunpack.c.h.b16 %v1956
    %v2027 = vunpack.c.l.b16 %v1957
    %v2028 = vunpack.c.h.b16 %v1957
    %v2029 = vunpack.c.l.b16 %v1958
    %v2030 = vunpack.c.h.b16 %v1958
    %v2031 = vunpack.c.l.b16 %v1959
    %v2032 = vunpack.c.h.b16 %v1959
    %v2033 = vunpack.c.l.b16 %v1960
    %v2034 = vunpack.c.h.b16 %v1960
    %v2035 = vunpack.c.l.b16 %v1961
    %v2036 = vunpack.c.h.b16 %v1961
    %v2037 = vunpack.c.l.b16 %v1962
    %v2038 = vunpack.c.h.b16 %v1962
    %v2039 = vunpack.c.l.b16 %v1963
    %v2040 = vunpack.c.h.b16 %v1963
    %v2041 = vunpack.c.l.b16 %v1964
    %v2042 = vunpack.c.h.b16 %v1964
    %v2043 = vunpack.c.l.b16 %v1965
    %v2044 = vunpack.c.h.b16 %v1965
    %v2045 = vunpack.c.l.b16 %v1966
    %v2046 = vunpack.c.h.b16 %v1966
    %v2047 = vunpack.c.l.b16 %v1967
    %v2048 = vunpack.c.h.b16 %v1967
    %v2049 = vunpack.c.l.b16 %v1968
    %v2050 = vunpack.c.h.b16 %v1968
    %v2051 = vunpack.c.l.b16 %v1969
    %v2052 = vunpack.c.h.b16 %v1969
    %v2053 = vunpack.c.l.b16 %v1970
    %v2054 = vunpack.c.h.b16 %v1970
    %v2055 = vunpack.c.l.b16 %v1971
    %v2056 = vunpack.c.h.b16 %v1971
    %v2057 = vunpack.c.l.b16 %v1972
    %v2058 = vunpack.c.h.b16 %v1972
    %v2059 = vunpack.c.l.b16 %v1973
    %v2060 = vunpack.c.h.b16 %v1973
    %v2061 = vunpack.c.l.b16 %v1974
    %v2062 = vunpack.c.h.b16 %v1974
    %v2063 = vunpack.c.l.b16 %v1975
    %v2064 = vunpack.c.h.b16 %v1975
    %v2065 = vunpack.c.l.b16 %v1976
    %v2066 = vunpack.c.h.b16 %v1976
    %v2067 = vunpack.c.l.b16 %v1977
    %v2068 = vunpack.c.h.b16 %v1977
    %v2069 = vunpack.c.l.b16 %v1978
    %v2070 = vunpack.c.h.b16 %v1978
    %v2071 = vunpack.c.l.b16 %v1979
    %v2072 = vunpack.c.h.b16 %v1979
    %v2073 = vunpack.c.l.b16 %v1980
    %v2074 = vunpack.c.h.b16 %v1980
    %v2075 = vunpack.c.l.b16 %v1981
    %v2076 = vunpack.c.h.b16 %v1981
    %v2077 = vunpack.c.l.b16 %v1982
    %v2078 = vunpack.c.h.b16 %v1982
    %v2079 = vunpack.c.l.b16 %v1983
    %v2080 = vunpack.c.h.b16 %v1983
    %v2081 = vunpack.c.l.b16 %v1984
    %v2082 = vunpack.c.h.b16 %v1984
    %v2083 = vunpack.c.l.b16 %v1985
    %v2084 = vunpack.c.h.b16 %v1985
    %v2085 = vunpack.c.l.b16 %v1986
    %v2086 = vunpack.c.h.b16 %v1986
    %v2087 = vpack.c.b16 %v2027, %v2023
    %v2088 = vpack.c.b16 %v2028, %v2024
    %v2089 = vpack.c.b16 %v2029, %v2025
    %v2090 = vpack.c.b16 %v2030, %v2026
    %v2091 = vpack.c.b16 %v2035, %v2031
    %v2092 = vpack.c.b16 %v2036, %v2032
    %v2093 = vpack.c.b16 %v2037, %v2033
    %v2094 = vpack.c.b16 %v2038, %v2034
    %v2095 = vpack.c.b16 %v2043, %v2039
    %v2096 = vpack.c.b16 %v2044, %v2040
    %v2097 = vpack.c.b16 %v2045, %v2041
    %v2098 = vpack.c.b16 %v2046, %v2042
    %v2099 = vpack.c.b16 %v2051, %v2047
    %v2100 = vpack.c.b16 %v2052, %v2048
    %v2101 = vpack.c.b16 %v2053, %v2049
    %v2102 = vpack.c.b16 %v2054, %v2050
    %v2103 = vpack.c.b16 %v2059, %v2055
    %v2104 = vpack.c.b16 %v2060, %v2056
    %v2105 = vpack.c.b16 %v2061, %v2057
    %v2106 = vpack.c.b16 %v2062, %v2058
    %v2107 = vpack.c.b16 %v2067, %v2063
    %v2108 = vpack.c.b16 %v2068, %v2064
    %v2109 = vpack.c.b16 %v2069, %v2065
    %v2110 = vpack.c.b16 %v2070, %v2066
    %v2111 = vpack.c.b16 %v2075, %v2071
    %v2112 = vpack.c.b16 %v2076, %v2072
    %v2113 = vpack.c.b16 %v2077, %v2073
    %v2114 = vpack.c.b16 %v2078, %v2074
    %v2115 = vpack.c.b16 %v2083, %v2079
    %v2116 = vpack.c.b16 %v2084, %v2080
    %v2117 = vpack.c.b16 %v2085, %v2081
    %v2118 = vpack.c.b16 %v2086, %v2082
    %2151 = vmatprep.subr.bf16.mxu0 %v2088
    %2152 = vmatpush1.bf16.msra.mxu0 %v2087
    %2153 = vmatprep.subr.bf16.mxu0 %v2092
    %2154 = vmatpush1.bf16.msra.mxu0 %v2091
    %2155 = vmatprep.subr.bf16.mxu0 %v2096
    %2156 = vmatpush1.bf16.msra.mxu0 %v2095
    %2157 = vmatprep.subr.bf16.mxu0 %v2100
    %2158 = vmatpush1.bf16.msra.mxu0 %v2099
    %2159 = vmatprep.subr.bf16.mxu0 %v2104
    %2160 = vmatpush1.bf16.msra.mxu0 %v2103
    %2161 = vmatprep.subr.bf16.mxu0 %v2108
    %2162 = vmatpush1.bf16.msra.mxu0 %v2107
    %2163 = vmatprep.subr.bf16.mxu0 %v2112
    %2164 = vmatpush1.bf16.msra.mxu0 %v2111
    %2165 = vmatprep.subr.bf16.mxu0 %v2116
    %2166 = vmatpush1.bf16.msra.mxu0 %v2115
    %2167 = vmatprep.subr.bf16.mxu0 0
    %2168 = vmatpush1.bf16.msra.mxu0 0
    %2169 = vmatprep.subr.bf16.mxu0 0
    %2170 = vmatpush1.bf16.msra.mxu0 0
    %2171 = vmatprep.subr.bf16.mxu0 0
    %2172 = vmatpush1.bf16.msra.mxu0 0
    %2173 = vmatprep.subr.bf16.mxu0 0
    %2174 = vmatpush1.bf16.msra.mxu0 0
    %2175 = vmatprep.subr.bf16.mxu0 0
    %2176 = vmatpush1.bf16.msra.mxu0 0
    %2177 = vmatprep.subr.bf16.mxu0 0
    %2178 = vmatpush1.bf16.msra.mxu0 0
    %2179 = vmatprep.subr.bf16.mxu0 0
    %2180 = vmatpush1.bf16.msra.mxu0 0
    %2181 = vmatprep.subr.bf16.mxu0 0
    %2182 = vmatpush1.bf16.msra.mxu0 0
    %2183 = vmatprep.mubr.bf16.mxu0 0
    %2184 = vmatmul.mubr.bf16.gmra.mrb[0].mxu0 %v1953
    %v2185 = vpop.f32.mrb[0].mxu0
    %v2186 = vadd.f32 %v1987, %v2185
    %v2187 = vpop.f32.mrb[0].mxu0
    %v2188 = vadd.f32 %v1988, %v2187
    %v2189 = vpop.f32.mrb[0].mxu0
    %v2190 = vpop.f32.mrb[0].mxu0
    %2191 = vdwg.mxu0
    %2192 = vmatprep.subr.bf16.mxu0 %v2090
    %2193 = vmatpush1.bf16.msra.mxu0 %v2089
    %2194 = vmatprep.subr.bf16.mxu0 %v2094
    %2195 = vmatpush1.bf16.msra.mxu0 %v2093
    %2196 = vmatprep.subr.bf16.mxu0 %v2098
    %2197 = vmatpush1.bf16.msra.mxu0 %v2097
    %2198 = vmatprep.subr.bf16.mxu0 %v2102
    %2199 = vmatpush1.bf16.msra.mxu0 %v2101
    %2200 = vmatprep.subr.bf16.mxu0 %v2106
    %2201 = vmatpush1.bf16.msra.mxu0 %v2105
    %2202 = vmatprep.subr.bf16.mxu0 %v2110
    %2203 = vmatpush1.bf16.msra.mxu0 %v2109
    %2204 = vmatprep.subr.bf16.mxu0 %v2114
    %2205 = vmatpush1.bf16.msra.mxu0 %v2113
    %2206 = vmatprep.subr.bf16.mxu0 %v2118
    %2207 = vmatpush1.bf16.msra.mxu0 %v2117
    %2208 = vmatprep.subr.bf16.mxu0 0
    %2209 = vmatpush1.bf16.msra.mxu0 0
    %2210 = vmatprep.subr.bf16.mxu0 0
    %2211 = vmatpush1.bf16.msra.mxu0 0
    %2212 = vmatprep.subr.bf16.mxu0 0
    %2213 = vmatpush1.bf16.msra.mxu0 0
    %2214 = vmatprep.subr.bf16.mxu0 0
    %2215 = vmatpush1.bf16.msra.mxu0 0
    %2216 = vmatprep.subr.bf16.mxu0 0
    %2217 = vmatpush1.bf16.msra.mxu0 0
    %2218 = vmatprep.subr.bf16.mxu0 0
    %2219 = vmatpush1.bf16.msra.mxu0 0
    %2220 = vmatprep.subr.bf16.mxu0 0
    %2221 = vmatpush1.bf16.msra.mxu0 0
    %2222 = vmatprep.subr.bf16.mxu0 0
    %2223 = vmatpush1.bf16.msra.mxu0 0
    %2224 = vmatprep.mubr.bf16.mxu0 0
    %2225 = vmatmul.mubr.bf16.gmra.mrb[0].mxu0 %v1953
    %v2226 = vpop.f32.mrb[0].mxu0
    %v2227 = vadd.f32 %v1989, %v2226
    %v2228 = vpop.f32.mrb[0].mxu0
    %v2229 = vadd.f32 %v1990, %v2228
    %v2230 = vpop.f32.mrb[0].mxu0
    %v2231 = vpop.f32.mrb[0].mxu0
    %2232 = vdwg.mxu0
    %v2233 = vxor.u32 %v2186, 2147483648
    %v2234 = vmul.f32 %v2233, 1.442695
    %v2235 = vpow.pop %v2234
    %v2236 = vadd.f32 %v2235, 1.0
    %v2237 = vrcp.pop %v2236
    %v2238 = vmul.f32 1.0, %v2237
    %v2239 = vxor.u32 %v2188, 2147483648
    %v2240 = vmul.f32 %v2239, 1.442695
    %v2241 = vpow.pop %v2240
    %v2242 = vadd.f32 %v2241, 1.0
    %v2243 = vrcp.pop %v2242
    %v2244 = vmul.f32 1.0, %v2243
    %v2245 = vtanh.pop %v2227
    %v2246 = vxor.u32 %v2229, 2147483648
    %v2247 = vmul.f32 %v2246, 1.442695
    %v2248 = vpow.pop %v2247
    %v2249 = vadd.f32 %v2248, 1.0
    %v2250 = vrcp.pop %v2249
    %v2251 = vmul.f32 1.0, %v2250
    %v2252 = vmul.f32 %v2244, %v1950
    %v2253 = vmul.f32 %v2238, %v2245
    %v2254 = vadd.f32 %v2252, %v2253
    %v2255 = vtanh.pop %v2254
    %v2256 = vmul.f32 %v2251, %v2255
    %v2257 = vpack.c.bf16 %v2256, %v2256
    %v2259 = vrot.slane %v2257, 4
    %2261 = vst [vmem:[#allocation3 + $0x10] sm:$0xf0] %v2259
    %v2262 = vld [vmem:[#allocation4] sm:$0xff]
    %v2263 = vld [vmem:[#allocation4 + $0x8] sm:$0xff]
    %v2264 = vld [vmem:[#allocation4 + $0x10] sm:$0xff]
    %v2265 = vld [vmem:[#allocation4 + $0x18] sm:$0xff]
    %v2266 = vld [vmem:[#allocation4 + $0x20] sm:$0xff]
    %v2267 = vld [vmem:[#allocation4 + $0x28] sm:$0xff]
    %v2268 = vld [vmem:[#allocation4 + $0x30] sm:$0xff]
    %v2269 = vld [vmem:[#allocation4 + $0x38] sm:$0xff]
    %v2270 = vld [vmem:[#allocation4 + $0x40] sm:$0xff]
    %v2271 = vld [vmem:[#allocation4 + $0x48] sm:$0xff]
    %v2272 = vld [vmem:[#allocation4 + $0x50] sm:$0xff]
    %v2273 = vld [vmem:[#allocation4 + $0x58] sm:$0xff]
    %v2274 = vld [vmem:[#allocation4 + $0x60] sm:$0xff]
    %v2275 = vld [vmem:[#allocation4 + $0x68] sm:$0xff]
    %v2276 = vld [vmem:[#allocation4 + $0x70] sm:$0xff]
    %v2277 = vld [vmem:[#allocation4 + $0x78] sm:$0xff]
    %v2278 = vld [vmem:[#allocation4 + $0x80] sm:$0xff]
    %v2279 = vld [vmem:[#allocation4 + $0x88] sm:$0xff]
    %v2280 = vld [vmem:[#allocation4 + $0x90] sm:$0xff]
    %v2281 = vld [vmem:[#allocation4 + $0x98] sm:$0xff]
    %v2282 = vld [vmem:[#allocation4 + $0xa0] sm:$0xff]
    %v2283 = vld [vmem:[#allocation4 + $0xa8] sm:$0xff]
    %v2284 = vld [vmem:[#allocation4 + $0xb0] sm:$0xff]
    %v2285 = vld [vmem:[#allocation4 + $0xb8] sm:$0xff]
    %v2286 = vld [vmem:[#allocation4 + $0xc0] sm:$0xff]
    %v2287 = vld [vmem:[#allocation4 + $0xc8] sm:$0xff]
    %v2288 = vld [vmem:[#allocation4 + $0xd0] sm:$0xff]
    %v2289 = vld [vmem:[#allocation4 + $0xd8] sm:$0xff]
    %v2290 = vld [vmem:[#allocation4 + $0xe0] sm:$0xff]
    %v2291 = vld [vmem:[#allocation4 + $0xe8] sm:$0xff]
    %v2292 = vld [vmem:[#allocation4 + $0xf0] sm:$0xff]
    %v2293 = vld [vmem:[#allocation4 + $0xf8] sm:$0xff]
    %v2294 = vld [vmem:[#allocation2 + $0xe0] sm:$0xff]
    %v2295 = vld [vmem:[#allocation2 + $0xe8] sm:$0xff]
    %v2296 = vld [vmem:[#allocation2 + $0xf0] sm:$0xff]
    %v2297 = vld [vmem:[#allocation2 + $0xf8] sm:$0xff]
    %v2330 = vunpack.c.l.b16 %v2262
    %v2331 = vunpack.c.h.b16 %v2262
    %v2332 = vunpack.c.l.b16 %v2263
    %v2333 = vunpack.c.h.b16 %v2263
    %v2334 = vunpack.c.l.b16 %v2264
    %v2335 = vunpack.c.h.b16 %v2264
    %v2336 = vunpack.c.l.b16 %v2265
    %v2337 = vunpack.c.h.b16 %v2265
    %v2338 = vunpack.c.l.b16 %v2266
    %v2339 = vunpack.c.h.b16 %v2266
    %v2340 = vunpack.c.l.b16 %v2267
    %v2341 = vunpack.c.h.b16 %v2267
    %v2342 = vunpack.c.l.b16 %v2268
    %v2343 = vunpack.c.h.b16 %v2268
    %v2344 = vunpack.c.l.b16 %v2269
    %v2345 = vunpack.c.h.b16 %v2269
    %v2346 = vunpack.c.l.b16 %v2270
    %v2347 = vunpack.c.h.b16 %v2270
    %v2348 = vunpack.c.l.b16 %v2271
    %v2349 = vunpack.c.h.b16 %v2271
    %v2350 = vunpack.c.l.b16 %v2272
    %v2351 = vunpack.c.h.b16 %v2272
    %v2352 = vunpack.c.l.b16 %v2273
    %v2353 = vunpack.c.h.b16 %v2273
    %v2354 = vunpack.c.l.b16 %v2274
    %v2355 = vunpack.c.h.b16 %v2274
    %v2356 = vunpack.c.l.b16 %v2275
    %v2357 = vunpack.c.h.b16 %v2275
    %v2358 = vunpack.c.l.b16 %v2276
    %v2359 = vunpack.c.h.b16 %v2276
    %v2360 = vunpack.c.l.b16 %v2277
    %v2361 = vunpack.c.h.b16 %v2277
    %v2362 = vunpack.c.l.b16 %v2278
    %v2363 = vunpack.c.h.b16 %v2278
    %v2364 = vunpack.c.l.b16 %v2279
    %v2365 = vunpack.c.h.b16 %v2279
    %v2366 = vunpack.c.l.b16 %v2280
    %v2367 = vunpack.c.h.b16 %v2280
    %v2368 = vunpack.c.l.b16 %v2281
    %v2369 = vunpack.c.h.b16 %v2281
    %v2370 = vunpack.c.l.b16 %v2282
    %v2371 = vunpack.c.h.b16 %v2282
    %v2372 = vunpack.c.l.b16 %v2283
    %v2373 = vunpack.c.h.b16 %v2283
    %v2374 = vunpack.c.l.b16 %v2284
    %v2375 = vunpack.c.h.b16 %v2284
    %v2376 = vunpack.c.l.b16 %v2285
    %v2377 = vunpack.c.h.b16 %v2285
    %v2378 = vunpack.c.l.b16 %v2286
    %v2379 = vunpack.c.h.b16 %v2286
    %v2380 = vunpack.c.l.b16 %v2287
    %v2381 = vunpack.c.h.b16 %v2287
    %v2382 = vunpack.c.l.b16 %v2288
    %v2383 = vunpack.c.h.b16 %v2288
    %v2384 = vunpack.c.l.b16 %v2289
    %v2385 = vunpack.c.h.b16 %v2289
    %v2386 = vunpack.c.l.b16 %v2290
    %v2387 = vunpack.c.h.b16 %v2290
    %v2388 = vunpack.c.l.b16 %v2291
    %v2389 = vunpack.c.h.b16 %v2291
    %v2390 = vunpack.c.l.b16 %v2292
    %v2391 = vunpack.c.h.b16 %v2292
    %v2392 = vunpack.c.l.b16 %v2293
    %v2393 = vunpack.c.h.b16 %v2293
    %v2394 = vpack.c.b16 %v2334, %v2330
    %v2395 = vpack.c.b16 %v2335, %v2331
    %v2396 = vpack.c.b16 %v2336, %v2332
    %v2397 = vpack.c.b16 %v2337, %v2333
    %v2398 = vpack.c.b16 %v2342, %v2338
    %v2399 = vpack.c.b16 %v2343, %v2339
    %v2400 = vpack.c.b16 %v2344, %v2340
    %v2401 = vpack.c.b16 %v2345, %v2341
    %v2402 = vpack.c.b16 %v2350, %v2346
    %v2403 = vpack.c.b16 %v2351, %v2347
    %v2404 = vpack.c.b16 %v2352, %v2348
    %v2405 = vpack.c.b16 %v2353, %v2349
    %v2406 = vpack.c.b16 %v2358, %v2354
    %v2407 = vpack.c.b16 %v2359, %v2355
    %v2408 = vpack.c.b16 %v2360, %v2356
    %v2409 = vpack.c.b16 %v2361, %v2357
    %v2410 = vpack.c.b16 %v2366, %v2362
    %v2411 = vpack.c.b16 %v2367, %v2363
    %v2412 = vpack.c.b16 %v2368, %v2364
    %v2413 = vpack.c.b16 %v2369, %v2365
    %v2414 = vpack.c.b16 %v2374, %v2370
    %v2415 = vpack.c.b16 %v2375, %v2371
    %v2416 = vpack.c.b16 %v2376, %v2372
    %v2417 = vpack.c.b16 %v2377, %v2373
    %v2418 = vpack.c.b16 %v2382, %v2378
    %v2419 = vpack.c.b16 %v2383, %v2379
    %v2420 = vpack.c.b16 %v2384, %v2380
    %v2421 = vpack.c.b16 %v2385, %v2381
    %v2422 = vpack.c.b16 %v2390, %v2386
    %v2423 = vpack.c.b16 %v2391, %v2387
    %v2424 = vpack.c.b16 %v2392, %v2388
    %v2425 = vpack.c.b16 %v2393, %v2389
    %2458 = vmatprep.subr.bf16.mxu0 %v2395
    %2459 = vmatpush1.bf16.msra.mxu0 %v2394
    %2460 = vmatprep.subr.bf16.mxu0 %v2399
    %2461 = vmatpush1.bf16.msra.mxu0 %v2398
    %2462 = vmatprep.subr.bf16.mxu0 %v2403
    %2463 = vmatpush1.bf16.msra.mxu0 %v2402
    %2464 = vmatprep.subr.bf16.mxu0 %v2407
    %2465 = vmatpush1.bf16.msra.mxu0 %v2406
    %2466 = vmatprep.subr.bf16.mxu0 %v2411
    %2467 = vmatpush1.bf16.msra.mxu0 %v2410
    %2468 = vmatprep.subr.bf16.mxu0 %v2415
    %2469 = vmatpush1.bf16.msra.mxu0 %v2414
    %2470 = vmatprep.subr.bf16.mxu0 %v2419
    %2471 = vmatpush1.bf16.msra.mxu0 %v2418
    %2472 = vmatprep.subr.bf16.mxu0 %v2423
    %2473 = vmatpush1.bf16.msra.mxu0 %v2422
    %2474 = vmatprep.subr.bf16.mxu0 0
    %2475 = vmatpush1.bf16.msra.mxu0 0
    %2476 = vmatprep.subr.bf16.mxu0 0
    %2477 = vmatpush1.bf16.msra.mxu0 0
    %2478 = vmatprep.subr.bf16.mxu0 0
    %2479 = vmatpush1.bf16.msra.mxu0 0
    %2480 = vmatprep.subr.bf16.mxu0 0
    %2481 = vmatpush1.bf16.msra.mxu0 0
    %2482 = vmatprep.subr.bf16.mxu0 0
    %2483 = vmatpush1.bf16.msra.mxu0 0
    %2484 = vmatprep.subr.bf16.mxu0 0
    %2485 = vmatpush1.bf16.msra.mxu0 0
    %2486 = vmatprep.subr.bf16.mxu0 0
    %2487 = vmatpush1.bf16.msra.mxu0 0
    %2488 = vmatprep.subr.bf16.mxu0 0
    %2489 = vmatpush1.bf16.msra.mxu0 0
    %2490 = vmatprep.mubr.bf16.mxu0 0
    %2491 = vmatmul.mubr.bf16.gmra.mrb[0].mxu0 %v2257
    %v2492 = vpop.f32.mrb[0].mxu0
    %v2493 = vadd.f32 %v2294, %v2492
    %v2494 = vpop.f32.mrb[0].mxu0
    %v2495 = vadd.f32 %v2295, %v2494
    %v2496 = vpop.f32.mrb[0].mxu0
    %v2497 = vpop.f32.mrb[0].mxu0
    %2498 = vdwg.mxu0
    %2499 = vmatprep.subr.bf16.mxu0 %v2397
    %2500 = vmatpush1.bf16.msra.mxu0 %v2396
    %2501 = vmatprep.subr.bf16.mxu0 %v2401
    %2502 = vmatpush1.bf16.msra.mxu0 %v2400
    %2503 = vmatprep.subr.bf16.mxu0 %v2405
    %2504 = vmatpush1.bf16.msra.mxu0 %v2404
    %2505 = vmatprep.subr.bf16.mxu0 %v2409
    %2506 = vmatpush1.bf16.msra.mxu0 %v2408
    %2507 = vmatprep.subr.bf16.mxu0 %v2413
    %2508 = vmatpush1.bf16.msra.mxu0 %v2412
    %2509 = vmatprep.subr.bf16.mxu0 %v2417
    %2510 = vmatpush1.bf16.msra.mxu0 %v2416
    %2511 = vmatprep.subr.bf16.mxu0 %v2421
    %2512 = vmatpush1.bf16.msra.mxu0 %v2420
    %2513 = vmatprep.subr.bf16.mxu0 %v2425
    %2514 = vmatpush1.bf16.msra.mxu0 %v2424
    %2515 = vmatprep.subr.bf16.mxu0 0
    %2516 = vmatpush1.bf16.msra.mxu0 0
    %2517 = vmatprep.subr.bf16.mxu0 0
    %2518 = vmatpush1.bf16.msra.mxu0 0
    %2519 = vmatprep.subr.bf16.mxu0 0
    %2520 = vmatpush1.bf16.msra.mxu0 0
    %2521 = vmatprep.subr.bf16.mxu0 0
    %2522 = vmatpush1.bf16.msra.mxu0 0
    %2523 = vmatprep.subr.bf16.mxu0 0
    %2524 = vmatpush1.bf16.msra.mxu0 0
    %2525 = vmatprep.subr.bf16.mxu0 0
    %2526 = vmatpush1.bf16.msra.mxu0 0
    %2527 = vmatprep.subr.bf16.mxu0 0
    %2528 = vmatpush1.bf16.msra.mxu0 0
    %2529 = vmatprep.subr.bf16.mxu0 0
    %2530 = vmatpush1.bf16.msra.mxu0 0
    %2531 = vmatprep.mubr.bf16.mxu0 0
    %2532 = vmatmul.mubr.bf16.gmra.mrb[0].mxu0 %v2257
    %v2533 = vpop.f32.mrb[0].mxu0
    %v2534 = vadd.f32 %v2296, %v2533
    %v2535 = vpop.f32.mrb[0].mxu0
    %v2536 = vadd.f32 %v2297, %v2535
    %v2537 = vpop.f32.mrb[0].mxu0
    %v2538 = vpop.f32.mrb[0].mxu0
    %2539 = vdwg.mxu0
    %v2540 = vxor.u32 %v2493, 2147483648
    %v2541 = vmul.f32 %v2540, 1.442695
    %v2542 = vpow.pop %v2541
    %v2543 = vadd.f32 %v2542, 1.0
    %v2544 = vrcp.pop %v2543
    %v2545 = vmul.f32 1.0, %v2544
    %v2546 = vxor.u32 %v2495, 2147483648
    %v2547 = vmul.f32 %v2546, 1.442695
    %v2548 = vpow.pop %v2547
    %v2549 = vadd.f32 %v2548, 1.0
    %v2550 = vrcp.pop %v2549
    %v2551 = vmul.f32 1.0, %v2550
    %v2552 = vtanh.pop %v2534
    %v2553 = vxor.u32 %v2536, 2147483648
    %v2554 = vmul.f32 %v2553, 1.442695
    %v2555 = vpow.pop %v2554
    %v2556 = vadd.f32 %v2555, 1.0
    %v2557 = vrcp.pop %v2556
    %v2558 = vmul.f32 1.0, %v2557
    %v2559 = vmul.f32 %v2551, %v2254
    %v2560 = vmul.f32 %v2545, %v2552
    %v2561 = vadd.f32 %v2559, %v2560
    %v2562 = vtanh.pop %v2561
    %v2563 = vmul.f32 %v2558, %v2562
    %v2564 = vpack.c.bf16 %v2563, %v2563
    %2565 = vst [vmem:[#allocation3 + $0x18] sm:$0xf] %v2564
    %v2566 = vld [vmem:[#allocation4] sm:$0xff]
    %v2567 = vld [vmem:[#allocation4 + $0x8] sm:$0xff]
    %v2568 = vld [vmem:[#allocation4 + $0x10] sm:$0xff]
    %v2569 = vld [vmem:[#allocation4 + $0x18] sm:$0xff]
    %v2570 = vld [vmem:[#allocation4 + $0x20] sm:$0xff]
    %v2571 = vld [vmem:[#allocation4 + $0x28] sm:$0xff]
    %v2572 = vld [vmem:[#allocation4 + $0x30] sm:$0xff]
    %v2573 = vld [vmem:[#allocation4 + $0x38] sm:$0xff]
    %v2574 = vld [vmem:[#allocation4 + $0x40] sm:$0xff]
    %v2575 = vld [vmem:[#allocation4 + $0x48] sm:$0xff]
    %v2576 = vld [vmem:[#allocation4 + $0x50] sm:$0xff]
    %v2577 = vld [vmem:[#allocation4 + $0x58] sm:$0xff]
    %v2578 = vld [vmem:[#allocation4 + $0x60] sm:$0xff]
    %v2579 = vld [vmem:[#allocation4 + $0x68] sm:$0xff]
    %v2580 = vld [vmem:[#allocation4 + $0x70] sm:$0xff]
    %v2581 = vld [vmem:[#allocation4 + $0x78] sm:$0xff]
    %v2582 = vld [vmem:[#allocation4 + $0x80] sm:$0xff]
    %v2583 = vld [vmem:[#allocation4 + $0x88] sm:$0xff]
    %v2584 = vld [vmem:[#allocation4 + $0x90] sm:$0xff]
    %v2585 = vld [vmem:[#allocation4 + $0x98] sm:$0xff]
    %v2586 = vld [vmem:[#allocation4 + $0xa0] sm:$0xff]
    %v2587 = vld [vmem:[#allocation4 + $0xa8] sm:$0xff]
    %v2588 = vld [vmem:[#allocation4 + $0xb0] sm:$0xff]
    %v2589 = vld [vmem:[#allocation4 + $0xb8] sm:$0xff]
    %v2590 = vld [vmem:[#allocation4 + $0xc0] sm:$0xff]
    %v2591 = vld [vmem:[#allocation4 + $0xc8] sm:$0xff]
    %v2592 = vld [vmem:[#allocation4 + $0xd0] sm:$0xff]
    %v2593 = vld [vmem:[#allocation4 + $0xd8] sm:$0xff]
    %v2594 = vld [vmem:[#allocation4 + $0xe0] sm:$0xff]
    %v2595 = vld [vmem:[#allocation4 + $0xe8] sm:$0xff]
    %v2596 = vld [vmem:[#allocation4 + $0xf0] sm:$0xff]
    %v2597 = vld [vmem:[#allocation4 + $0xf8] sm:$0xff]
    %v2598 = vld [vmem:[#allocation2 + $0x100] sm:$0xff]
    %v2599 = vld [vmem:[#allocation2 + $0x108] sm:$0xff]
    %v2600 = vld [vmem:[#allocation2 + $0x110] sm:$0xff]
    %v2601 = vld [vmem:[#allocation2 + $0x118] sm:$0xff]
    %v2634 = vunpack.c.l.b16 %v2566
    %v2635 = vunpack.c.h.b16 %v2566
    %v2636 = vunpack.c.l.b16 %v2567
    %v2637 = vunpack.c.h.b16 %v2567
    %v2638 = vunpack.c.l.b16 %v2568
    %v2639 = vunpack.c.h.b16 %v2568
    %v2640 = vunpack.c.l.b16 %v2569
    %v2641 = vunpack.c.h.b16 %v2569
    %v2642 = vunpack.c.l.b16 %v2570
    %v2643 = vunpack.c.h.b16 %v2570
    %v2644 = vunpack.c.l.b16 %v2571
    %v2645 = vunpack.c.h.b16 %v2571
    %v2646 = vunpack.c.l.b16 %v2572
    %v2647 = vunpack.c.h.b16 %v2572
    %v2648 = vunpack.c.l.b16 %v2573
    %v2649 = vunpack.c.h.b16 %v2573
    %v2650 = vunpack.c.l.b16 %v2574
    %v2651 = vunpack.c.h.b16 %v2574
    %v2652 = vunpack.c.l.b16 %v2575
    %v2653 = vunpack.c.h.b16 %v2575
    %v2654 = vunpack.c.l.b16 %v2576
    %v2655 = vunpack.c.h.b16 %v2576
    %v2656 = vunpack.c.l.b16 %v2577
    %v2657 = vunpack.c.h.b16 %v2577
    %v2658 = vunpack.c.l.b16 %v2578
    %v2659 = vunpack.c.h.b16 %v2578
    %v2660 = vunpack.c.l.b16 %v2579
    %v2661 = vunpack.c.h.b16 %v2579
    %v2662 = vunpack.c.l.b16 %v2580
    %v2663 = vunpack.c.h.b16 %v2580
    %v2664 = vunpack.c.l.b16 %v2581
    %v2665 = vunpack.c.h.b16 %v2581
    %v2666 = vunpack.c.l.b16 %v2582
    %v2667 = vunpack.c.h.b16 %v2582
    %v2668 = vunpack.c.l.b16 %v2583
    %v2669 = vunpack.c.h.b16 %v2583
    %v2670 = vunpack.c.l.b16 %v2584
    %v2671 = vunpack.c.h.b16 %v2584
    %v2672 = vunpack.c.l.b16 %v2585
    %v2673 = vunpack.c.h.b16 %v2585
    %v2674 = vunpack.c.l.b16 %v2586
    %v2675 = vunpack.c.h.b16 %v2586
    %v2676 = vunpack.c.l.b16 %v2587
    %v2677 = vunpack.c.h.b16 %v2587
    %v2678 = vunpack.c.l.b16 %v2588
    %v2679 = vunpack.c.h.b16 %v2588
    %v2680 = vunpack.c.l.b16 %v2589
    %v2681 = vunpack.c.h.b16 %v2589
    %v2682 = vunpack.c.l.b16 %v2590
    %v2683 = vunpack.c.h.b16 %v2590
    %v2684 = vunpack.c.l.b16 %v2591
    %v2685 = vunpack.c.h.b16 %v2591
    %v2686 = vunpack.c.l.b16 %v2592
    %v2687 = vunpack.c.h.b16 %v2592
    %v2688 = vunpack.c.l.b16 %v2593
    %v2689 = vunpack.c.h.b16 %v2593
    %v2690 = vunpack.c.l.b16 %v2594
    %v2691 = vunpack.c.h.b16 %v2594
    %v2692 = vunpack.c.l.b16 %v2595
    %v2693 = vunpack.c.h.b16 %v2595
    %v2694 = vunpack.c.l.b16 %v2596
    %v2695 = vunpack.c.h.b16 %v2596
    %v2696 = vunpack.c.l.b16 %v2597
    %v2697 = vunpack.c.h.b16 %v2597
    %v2698 = vpack.c.b16 %v2638, %v2634
    %v2699 = vpack.c.b16 %v2639, %v2635
    %v2700 = vpack.c.b16 %v2640, %v2636
    %v2701 = vpack.c.b16 %v2641, %v2637
    %v2702 = vpack.c.b16 %v2646, %v2642
    %v2703 = vpack.c.b16 %v2647, %v2643
    %v2704 = vpack.c.b16 %v2648, %v2644
    %v2705 = vpack.c.b16 %v2649, %v2645
    %v2706 = vpack.c.b16 %v2654, %v2650
    %v2707 = vpack.c.b16 %v2655, %v2651
    %v2708 = vpack.c.b16 %v2656, %v2652
    %v2709 = vpack.c.b16 %v2657, %v2653
    %v2710 = vpack.c.b16 %v2662, %v2658
    %v2711 = vpack.c.b16 %v2663, %v2659
    %v2712 = vpack.c.b16 %v2664, %v2660
    %v2713 = vpack.c.b16 %v2665, %v2661
    %v2714 = vpack.c.b16 %v2670, %v2666
    %v2715 = vpack.c.b16 %v2671, %v2667
    %v2716 = vpack.c.b16 %v2672, %v2668
    %v2717 = vpack.c.b16 %v2673, %v2669
    %v2718 = vpack.c.b16 %v2678, %v2674
    %v2719 = vpack.c.b16 %v2679, %v2675
    %v2720 = vpack.c.b16 %v2680, %v2676
    %v2721 = vpack.c.b16 %v2681, %v2677
    %v2722 = vpack.c.b16 %v2686, %v2682
    %v2723 = vpack.c.b16 %v2687, %v2683
    %v2724 = vpack.c.b16 %v2688, %v2684
    %v2725 = vpack.c.b16 %v2689, %v2685
    %v2726 = vpack.c.b16 %v2694, %v2690
    %v2727 = vpack.c.b16 %v2695, %v2691
    %v2728 = vpack.c.b16 %v2696, %v2692
    %v2729 = vpack.c.b16 %v2697, %v2693
    %2762 = vmatprep.subr.bf16.mxu0 %v2699
    %2763 = vmatpush1.bf16.msra.mxu0 %v2698
    %2764 = vmatprep.subr.bf16.mxu0 %v2703
    %2765 = vmatpush1.bf16.msra.mxu0 %v2702
    %2766 = vmatprep.subr.bf16.mxu0 %v2707
    %2767 = vmatpush1.bf16.msra.mxu0 %v2706
    %2768 = vmatprep.subr.bf16.mxu0 %v2711
    %2769 = vmatpush1.bf16.msra.mxu0 %v2710
    %2770 = vmatprep.subr.bf16.mxu0 %v2715
    %2771 = vmatpush1.bf16.msra.mxu0 %v2714
    %2772 = vmatprep.subr.bf16.mxu0 %v2719
    %2773 = vmatpush1.bf16.msra.mxu0 %v2718
    %2774 = vmatprep.subr.bf16.mxu0 %v2723
    %2775 = vmatpush1.bf16.msra.mxu0 %v2722
    %2776 = vmatprep.subr.bf16.mxu0 %v2727
    %2777 = vmatpush1.bf16.msra.mxu0 %v2726
    %2778 = vmatprep.subr.bf16.mxu0 0
    %2779 = vmatpush1.bf16.msra.mxu0 0
    %2780 = vmatprep.subr.bf16.mxu0 0
    %2781 = vmatpush1.bf16.msra.mxu0 0
    %2782 = vmatprep.subr.bf16.mxu0 0
    %2783 = vmatpush1.bf16.msra.mxu0 0
    %2784 = vmatprep.subr.bf16.mxu0 0
    %2785 = vmatpush1.bf16.msra.mxu0 0
    %2786 = vmatprep.subr.bf16.mxu0 0
    %2787 = vmatpush1.bf16.msra.mxu0 0
    %2788 = vmatprep.subr.bf16.mxu0 0
    %2789 = vmatpush1.bf16.msra.mxu0 0
    %2790 = vmatprep.subr.bf16.mxu0 0
    %2791 = vmatpush1.bf16.msra.mxu0 0
    %2792 = vmatprep.subr.bf16.mxu0 0
    %2793 = vmatpush1.bf16.msra.mxu0 0
    %2794 = vmatprep.mubr.bf16.mxu0 0
    %2795 = vmatmul.mubr.bf16.gmra.mrb[0].mxu0 %v2564
    %v2796 = vpop.f32.mrb[0].mxu0
    %v2797 = vadd.f32 %v2598, %v2796
    %v2798 = vpop.f32.mrb[0].mxu0
    %v2799 = vadd.f32 %v2599, %v2798
    %v2800 = vpop.f32.mrb[0].mxu0
    %v2801 = vpop.f32.mrb[0].mxu0
    %2802 = vdwg.mxu0
    %2803 = vmatprep.subr.bf16.mxu0 %v2701
    %2804 = vmatpush1.bf16.msra.mxu0 %v2700
    %2805 = vmatprep.subr.bf16.mxu0 %v2705
    %2806 = vmatpush1.bf16.msra.mxu0 %v2704
    %2807 = vmatprep.subr.bf16.mxu0 %v2709
    %2808 = vmatpush1.bf16.msra.mxu0 %v2708
    %2809 = vmatprep.subr.bf16.mxu0 %v2713
    %2810 = vmatpush1.bf16.msra.mxu0 %v2712
    %2811 = vmatprep.subr.bf16.mxu0 %v2717
    %2812 = vmatpush1.bf16.msra.mxu0 %v2716
    %2813 = vmatprep.subr.bf16.mxu0 %v2721
    %2814 = vmatpush1.bf16.msra.mxu0 %v2720
    %2815 = vmatprep.subr.bf16.mxu0 %v2725
    %2816 = vmatpush1.bf16.msra.mxu0 %v2724
    %2817 = vmatprep.subr.bf16.mxu0 %v2729
    %2818 = vmatpush1.bf16.msra.mxu0 %v2728
    %2819 = vmatprep.subr.bf16.mxu0 0
    %2820 = vmatpush1.bf16.msra.mxu0 0
    %2821 = vmatprep.subr.bf16.mxu0 0
    %2822 = vmatpush1.bf16.msra.mxu0 0
    %2823 = vmatprep.subr.bf16.mxu0 0
    %2824 = vmatpush1.bf16.msra.mxu0 0
    %2825 = vmatprep.subr.bf16.mxu0 0
    %2826 = vmatpush1.bf16.msra.mxu0 0
    %2827 = vmatprep.subr.bf16.mxu0 0
    %2828 = vmatpush1.bf16.msra.mxu0 0
    %2829 = vmatprep.subr.bf16.mxu0 0
    %2830 = vmatpush1.bf16.msra.mxu0 0
    %2831 = vmatprep.subr.bf16.mxu0 0
    %2832 = vmatpush1.bf16.msra.mxu0 0
    %2833 = vmatprep.subr.bf16.mxu0 0
    %2834 = vmatpush1.bf16.msra.mxu0 0
    %2835 = vmatprep.mubr.bf16.mxu0 0
    %2836 = vmatmul.mubr.bf16.gmra.mrb[0].mxu0 %v2564
    %v2837 = vpop.f32.mrb[0].mxu0
    %v2838 = vadd.f32 %v2600, %v2837
    %v2839 = vpop.f32.mrb[0].mxu0
    %v2840 = vadd.f32 %v2601, %v2839
    %v2841 = vpop.f32.mrb[0].mxu0
    %v2842 = vpop.f32.mrb[0].mxu0
    %2843 = vdwg.mxu0
    %v2844 = vxor.u32 %v2797, 2147483648
    %v2845 = vmul.f32 %v2844, 1.442695
    %v2846 = vpow.pop %v2845
    %v2847 = vadd.f32 %v2846, 1.0
    %v2848 = vrcp.pop %v2847
    %v2849 = vmul.f32 1.0, %v2848
    %v2850 = vxor.u32 %v2799, 2147483648
    %v2851 = vmul.f32 %v2850, 1.442695
    %v2852 = vpow.pop %v2851
    %v2853 = vadd.f32 %v2852, 1.0
    %v2854 = vrcp.pop %v2853
    %v2855 = vmul.f32 1.0, %v2854
    %v2856 = vtanh.pop %v2838
    %v2857 = vxor.u32 %v2840, 2147483648
    %v2858 = vmul.f32 %v2857, 1.442695
    %v2859 = vpow.pop %v2858
    %v2860 = vadd.f32 %v2859, 1.0
    %v2861 = vrcp.pop %v2860
    %v2862 = vmul.f32 1.0, %v2861
    %v2863 = vmul.f32 %v2855, %v2561
    %v2864 = vmul.f32 %v2849, %v2856
    %v2865 = vadd.f32 %v2863, %v2864
    %v2866 = vtanh.pop %v2865
    %v2867 = vmul.f32 %v2862, %v2866
    %v2868 = vpack.c.bf16 %v2867, %v2867
    %v2870 = vrot.slane %v2868, 4
    %2872 = vst [vmem:[#allocation3 + $0x18] sm:$0xf0] %v2870
    %v2873 = vld [vmem:[#allocation3] sm:$0xff]
    %v2874 = vld [vmem:[#allocation3 + $0x8] sm:$0xff]
    %v2875 = vld [vmem:[#allocation3 + $0x10] sm:$0xff]
    %v2876 = vld [vmem:[#allocation3 + $0x18] sm:$0xff]
    %v2877 = vld [vmem:[#allocation6] sm:$0xf]
    %v2878 = vld [vmem:[#allocation6 + $0x4] sm:$0xf]
    %v2879 = vld [vmem:[#allocation6 + $0x8] sm:$0xf]
    %v2880 = vld [vmem:[#allocation6 + $0xc] sm:$0xf]
    %v2881 = vld [vmem:[#allocation6 + $0x10] sm:$0xf]
    %v2882 = vld [vmem:[#allocation6 + $0x14] sm:$0xf]
    %v2883 = vld [vmem:[#allocation6 + $0x18] sm:$0xf]
    %v2884 = vld [vmem:[#allocation6 + $0x1c] sm:$0xf]
    %v2885 = vld [vmem:[#allocation6 + $0x20] sm:$0xf]
    %v2886 = vld [vmem:[#allocation6 + $0x24] sm:$0xf]
    %v2887 = vld [vmem:[#allocation6 + $0x28] sm:$0xf]
    %v2888 = vld [vmem:[#allocation6 + $0x2c] sm:$0xf]
    %v2889 = vld [vmem:[#allocation6 + $0x30] sm:$0xf]
    %v2890 = vld [vmem:[#allocation6 + $0x34] sm:$0xf]
    %v2891 = vld [vmem:[#allocation6 + $0x38] sm:$0xf]
    %v2892 = vld [vmem:[#allocation6 + $0x3c] sm:$0xf]
    %v2893 = vld [vmem:[%s5] sm:$0x1]
    %v2895 = vlaneseq
    %v2896 = vshrl.u32 %v2895, 7
    %v2897 = vsub.s32 0, %v2896
    %v2898 = vrot.slane %v2893, %v2897
    %v2916 = vunpack.c.l.b16 %v2877
    %v2917 = vunpack.c.l.b16 %v2878
    %v2918 = vunpack.c.l.b16 %v2879
    %v2919 = vunpack.c.l.b16 %v2880
    %v2920 = vunpack.c.l.b16 %v2881
    %v2921 = vunpack.c.l.b16 %v2882
    %v2922 = vunpack.c.l.b16 %v2883
    %v2923 = vunpack.c.l.b16 %v2884
    %v2924 = vunpack.c.l.b16 %v2885
    %v2925 = vunpack.c.l.b16 %v2886
    %v2926 = vunpack.c.l.b16 %v2887
    %v2927 = vunpack.c.l.b16 %v2888
    %v2928 = vunpack.c.l.b16 %v2889
    %v2929 = vunpack.c.l.b16 %v2890
    %v2930 = vunpack.c.l.b16 %v2891
    %v2931 = vunpack.c.l.b16 %v2892
    %v2932 = vpack.c.b16 %v2917, %v2916
    %v2933 = vpack.c.b16 %v2919, %v2918
    %v2934 = vpack.c.b16 %v2921, %v2920
    %v2935 = vpack.c.b16 %v2923, %v2922
    %v2936 = vpack.c.b16 %v2925, %v2924
    %v2937 = vpack.c.b16 %v2927, %v2926
    %v2938 = vpack.c.b16 %v2929, %v2928
    %v2939 = vpack.c.b16 %v2931, %v2930
    %2948 = vmatprep.subr.bf16.mxu0 0
    %2949 = vmatpush1.bf16.msra.mxu0 %v2932
    %2950 = vmatprep.subr.bf16.mxu0 0
    %2951 = vmatpush1.bf16.msra.mxu0 %v2933
    %2952 = vmatprep.subr.bf16.mxu0 0
    %2953 = vmatpush1.bf16.msra.mxu0 %v2934
    %2954 = vmatprep.subr.bf16.mxu0 0
    %2955 = vmatpush1.bf16.msra.mxu0 %v2935
    %2956 = vmatprep.subr.bf16.mxu0 0
    %2957 = vmatpush1.bf16.msra.mxu0 %v2936
    %2958 = vmatprep.subr.bf16.mxu0 0
    %2959 = vmatpush1.bf16.msra.mxu0 %v2937
    %2960 = vmatprep.subr.bf16.mxu0 0
    %2961 = vmatpush1.bf16.msra.mxu0 %v2938
    %2962 = vmatprep.subr.bf16.mxu0 0
    %2963 = vmatpush1.bf16.msra.mxu0 %v2939
    %2964 = vmatprep.subr.bf16.mxu0 0
    %2965 = vmatpush1.bf16.msra.mxu0 0
    %2966 = vmatprep.subr.bf16.mxu0 0
    %2967 = vmatpush1.bf16.msra.mxu0 0
    %2968 = vmatprep.subr.bf16.mxu0 0
    %2969 = vmatpush1.bf16.msra.mxu0 0
    %2970 = vmatprep.subr.bf16.mxu0 0
    %2971 = vmatpush1.bf16.msra.mxu0 0
    %2972 = vmatprep.subr.bf16.mxu0 0
    %2973 = vmatpush1.bf16.msra.mxu0 0
    %2974 = vmatprep.subr.bf16.mxu0 0
    %2975 = vmatpush1.bf16.msra.mxu0 0
    %2976 = vmatprep.subr.bf16.mxu0 0
    %2977 = vmatpush1.bf16.msra.mxu0 0
    %2978 = vmatprep.subr.bf16.mxu0 0
    %2979 = vmatpush1.bf16.msra.mxu0 0
    %2980 = vmatprep.mubr.bf16.mxu0 0
    %2981 = vmatmul.mubr.bf16.gmra.mrb[0].mxu0 %v2873
    %v2982 = vpop.f32.mrb[0].mxu0
    %v2983 = vadd.f32 %v2898, %v2982
    %v2984 = vpop.f32.mrb[0].mxu0
    %v2985 = vpop.f32.mrb[0].mxu0
    %v2986 = vadd.f32 %v2898, %v2985
    %v2987 = vpop.f32.mrb[0].mxu0
    %2988 = vmatprep.mubr.bf16.mxu0 0
    %2989 = vmatmul.mubr.bf16.gmra.mrb[0].mxu0 %v2874
    %v2990 = vpop.f32.mrb[0].mxu0
    %v2991 = vadd.f32 %v2898, %v2990
    %v2992 = vpop.f32.mrb[0].mxu0
    %v2993 = vpop.f32.mrb[0].mxu0
    %v2994 = vadd.f32 %v2898, %v2993
    %v2995 = vpop.f32.mrb[0].mxu0
    %2996 = vmatprep.mubr.bf16.mxu0 0
    %2997 = vmatmul.mubr.bf16.gmra.mrb[0].mxu0 %v2875
    %v2998 = vpop.f32.mrb[0].mxu0
    %v2999 = vadd.f32 %v2898, %v2998
    %v3000 = vpop.f32.mrb[0].mxu0
    %v3001 = vpop.f32.mrb[0].mxu0
    %v3002 = vadd.f32 %v2898, %v3001
    %v3003 = vpop.f32.mrb[0].mxu0
    %3004 = vmatprep.mubr.bf16.mxu0 0
    %3005 = vmatmul.mubr.bf16.gmra.mrb[0].mxu0 %v2876
    %v3006 = vpop.f32.mrb[0].mxu0
    %v3007 = vadd.f32 %v2898, %v3006
    %v3008 = vpop.f32.mrb[0].mxu0
    %v3009 = vpop.f32.mrb[0].mxu0
    %v3010 = vadd.f32 %v2898, %v3009
    %v3011 = vpop.f32.mrb[0].mxu0
    %3012 = vdwg.mxu0
    %3013 = vst [vmem:[%s6] sm:$0xff] %v2983
    %3014 = vst [vmem:[%s6 + $0x8] sm:$0xff] %v2986
    %3015 = vst [vmem:[%s6 + $0x10] sm:$0xff] %v2991
    %3016 = vst [vmem:[%s6 + $0x18] sm:$0xff] %v2994
    %3017 = vst [vmem:[%s6 + $0x20] sm:$0xff] %v2999
    %3018 = vst [vmem:[%s6 + $0x28] sm:$0xff] %v3002
    %3019 = vst [vmem:[%s6 + $0x30] sm:$0xff] %v3007
    %3020 = vst [vmem:[%s6 + $0x38] sm:$0xff] %v3010
    // Predicated region
    $region34: #{_forward_impl.1} parent=1 // pred_check
      _
    $region35: #{_forward_impl.1} parent=1 // pred_check_branch
      %3022 = sbr.rel (0) target = $region37
    $region36: #{_forward_impl.1} parent=1 // pred_region
      _
    $region37: #{_forward_impl.1} parent=1 // pred_fallthru
      _
    // Predicated region
    $region38: #{_forward_impl.1} parent=1 // pred_check
      _
    $region39: #{_forward_impl.1} parent=1 // pred_check_branch
      %3024 = sbr.rel (0) target = $region41
    $region40: #{_forward_impl.1} parent=1 // pred_region
      _
    $region41: #{_forward_impl.1} parent=1 // pred_fallthru
      _
    %3025 = vsyncpa [#allocation5], 1
    %3026 = vsyncpa [#allocation7], 1

</llo_original>
